<compile_context>
chip_gen: v5e
topology: v5e:2x2
jax: 0.10.0
libtpu: 0.0.40
codegen_flags: <defaults>
</compile_context>

<pallas_src>
import jax
import jax.numpy as jnp
from jax.experimental import pallas as pl
from jax.experimental.pallas import tpu as pltpu

_LANE = 128     # per-gate lane padding (vreg lane width)
_SUBLANE = 8    # f32 sublane tile


def _gru_dnn_kernel(x_ref, g_ref, wih0_ref, whhblk_ref, wih1_ref,
                    wdnn_ref, head_ref, bias_ref, out_ref, gi0_scr):
    G3 = wih0_ref.shape[1]
    HP = G3 // 3
    Bp = g_ref.shape[0]
    T = x_ref.shape[0] // Bp
    GH = wdnn_ref.shape[2]
    LN = out_ref.shape[1]

    # ---- layer-0 input projection hoisted out of the recurrence -------------
    # b_ih0 is folded into the trailing ones-column of x. The result is spilled
    # to VMEM scratch; the loop re-loads a (Bp, G3) slice per step so the whole
    # (T*Bp, G3) value is never live across the unrolled recurrence.
    gi0_scr[...] = jnp.dot(x_ref[...], wih0_ref[...],
                           preferred_element_type=jnp.float32)

    whhblk = whhblk_ref[...]          # (2*HP, 2*G3) bf16 blockdiag(W_hh0, W_hh1)
    wih1 = wih1_ref[...]              # (HP, G3)     bf16

    # Pre-broadcast biases, lane-concatenated into one f32 slab.
    bhh = bias_ref[:, 0:2 * G3]               # [b_hh0 | b_hh1]
    bih1 = bias_ref[:, 2 * G3:3 * G3]
    bf = bias_ref[:, 3 * G3:3 * G3 + LN]
    boff = 3 * G3 + LN
    b1 = bias_ref[:, boff:boff + GH]
    b2 = bias_ref[:, boff + GH:boff + 2 * GH]
    b3 = bias_ref[:, boff + 2 * GH:boff + 3 * GH]

    # One-EUP-op sigmoid (tanh form) instead of exp + divide.
    sig = lambda v: 0.5 * jnp.tanh(0.5 * v) + 0.5

    def gru_gates(gi, gh, h):
        # PyTorch gate order r, z, n; every slice sits on a 128-lane boundary.
        r = sig(gi[:, 0:HP] + gh[:, 0:HP])
        z = sig(gi[:, HP:2 * HP] + gh[:, HP:2 * HP])
        n = jnp.tanh(gi[:, 2 * HP:3 * HP] + r * gh[:, 2 * HP:3 * HP])
        return h + (1.0 - z) * (n - h)        # 3-op combine

    h1 = jnp.zeros((Bp, HP), jnp.float32)
    h2 = jnp.zeros((Bp, HP), jnp.float32)

    # Static unroll: T is small and known at trace time; layer-1(t) and
    # layer-0(t+1) are independent and can be scheduled against each other.
    # TODO(synk): switch to lax.fori_loop(..., unroll=2..4) reading gi0 from
    #             the VMEM scratch once T grows beyond ~32.
    for t in range(T):
        gi0 = gi0_scr[pl.ds(t * Bp, Bp), :]
        # Both gh0 and gh1 depend only on step t-1 state -> one merged K=2*HP
        # block-diagonal matmul instead of two.
        hcat = jnp.concatenate([h1, h2], axis=1).astype(jnp.bfloat16)
        gh = jnp.dot(hcat, whhblk, preferred_element_type=jnp.float32) + bhh
        h1 = gru_gates(gi0, gh[:, 0:G3], h1)
        gi1 = jnp.dot(h1.astype(jnp.bfloat16), wih1,
                      preferred_element_type=jnp.float32) + bih1
        h2 = gru_gates(gi1, gh[:, G3:2 * G3], h2)

    # ---- DNN branch (LeakyReLU 0.01 as a single max, residual adds) ---------
    leaky = lambda v: jnp.maximum(v, 0.01 * v)
    a = leaky(jnp.dot(g_ref[...], wdnn_ref[0],
                      preferred_element_type=jnp.float32) + b1)
    a = leaky(jnp.dot(a.astype(jnp.bfloat16), wdnn_ref[1],
                      preferred_element_type=jnp.float32) + a + b2)
    a = leaky(jnp.dot(a.astype(jnp.bfloat16), wdnn_ref[2],
                      preferred_element_type=jnp.float32) + a + b3)

    # ---- final Linear over concat([h_n, g_dnn]) as a split matmul ------------
    # Output is (Bp, 128) lane-dense (only column 0 is meaningful).
    out = (jnp.dot(h2.astype(jnp.bfloat16), head_ref[0:HP, :],
                   preferred_element_type=jnp.float32)
           + jnp.dot(a.astype(jnp.bfloat16), head_ref[HP:HP + GH, :],
                     preferred_element_type=jnp.float32)
           + bf)
    out_ref[...] = out


def _round_up(x, m):
    return ((x + m - 1) // m) * m


def _pad_to(a, axis, size):
    pad = [(0, 0)] * a.ndim
    pad[axis] = (0, size - a.shape[axis])
    return jnp.pad(a, pad)


def _pack_inputs(trip_feature, global_feature, p):
    """Host-side padding / stacking / bias pre-broadcast (all shapes static)."""
    T, B, In = trip_feature.shape
    H = p["whh0T"].shape[0]
    GIn, GH = p["w1T"].shape
    GO = p["w3T"].shape[1]
    assert GH == GO, "fc3 residual in the PyTorch module requires g_out == g_hidden"
    # TODO(synk): stacked wdnn slab assumes g_input <= g_hidden; keep w1 as a
    #             separate slab if that ever fails.
    assert GIn <= GH, "packing assumes g_input <= g_hidden"

    Bp = _round_up(max(B, _SUBLANE), _SUBLANE)
    HP = _round_up(H, _LANE)
    G3 = 3 * HP
    KIN = _round_up(In + 1, 16)       # bf16 sublane tile for the small K dim
    bf16 = jnp.bfloat16

    def pad_gates(w):  # (..., 3H) -> (..., 3*HP): pad each r/z/n block to HP lanes
        lead = w.shape[:-1]
        w = w.reshape(lead + (3, H))
        w = _pad_to(w, w.ndim - 1, HP)
        return w.reshape(lead + (G3,))

    def bcast(b, width):
        return jnp.broadcast_to(b, (Bp, width)).astype(jnp.float32)

    # trip features: pad batch, append ones column (b_ih0 fold), pad K to 16.
    x_pad = _pad_to(trip_feature, 1, Bp)                               # (T, Bp, In)
    ones = jnp.ones((T, Bp, 1), jnp.float32)
    x_aug = jnp.concatenate([x_pad, ones], axis=2)
    x_aug = _pad_to(x_aug, 2, KIN).reshape(T * Bp, KIN).astype(bf16)   # (T*Bp, KIN)

    wih0_aug = jnp.concatenate([pad_gates(p["wih0T"]),
                                pad_gates(p["bih0"])], axis=0)
    wih0_aug = _pad_to(wih0_aug, 0, KIN).astype(bf16)                  # (KIN, G3)

    whh0 = _pad_to(pad_gates(p["whh0T"]), 0, HP)                       # (HP, G3)
    whh1 = _pad_to(pad_gates(p["whh1T"]), 0, HP)
    wih1 = _pad_to(pad_gates(p["wih1T"]), 0, HP).astype(bf16)          # (HP, G3)
    z = jnp.zeros((HP, G3), jnp.float32)
    whhblk = jnp.concatenate(
        [jnp.concatenate([whh0, z], axis=1),
         jnp.concatenate([z, whh1], axis=1)], axis=0).astype(bf16)     # (2HP, 2G3)

    # Single f32 bias slab: [b_hh0 | b_hh1 | b_ih1 | b_final | b1 | b2 | b3].
    biases = jnp.concatenate(
        [bcast(pad_gates(p["bhh0"]), G3),
         bcast(pad_gates(p["bhh1"]), G3),
         bcast(pad_gates(p["bih1"]), G3),
         jnp.broadcast_to(_pad_to(p["bf"], 1, _LANE), (Bp, _LANE)).astype(jnp.float32),
         bcast(p["b1"], GH), bcast(p["b2"], GH), bcast(p["b3"], GH)],
        axis=1)                                                        # (Bp, 3G3+128+3GH)

    # DNN weights: w1 zero-padded to (GH, GH) rows and stacked with w2 / w3.
    w1p = _pad_to(p["w1T"], 0, GH)
    wdnn = jnp.stack([w1p, p["w2T"], p["w3T"]]).astype(bf16)           # (3, GH, GH)

    g_pad = _pad_to(_pad_to(global_feature, 0, Bp), 1, GH).astype(bf16)  # (Bp, GH)

    # Head slab: [w_final_h ; w_final_g], lane-padded to 128.
    wfh = _pad_to(_pad_to(p["wfhT"], 0, HP), 1, _LANE)                 # (HP, 128)
    wfg = _pad_to(p["wfgT"], 1, _LANE)                                 # (GH, 128)
    head = jnp.concatenate([wfh, wfg], axis=0).astype(bf16)            # (HP+GH, 128)

    inputs = (x_aug, g_pad, wih0_aug, whhblk, wih1, wdnn, head, biases)
    scratch = pltpu.VMEM((T * Bp, G3), jnp.float32)
    return inputs, scratch, Bp


@jax.jit
def gru_dnn_forward(trip_feature, global_feature, params):
    _, B, _ = trip_feature.shape
    inputs, scratch, Bp = _pack_inputs(trip_feature, global_feature, params)
    vmem = pl.BlockSpec(memory_space=pltpu.MemorySpace.VMEM)
    out = pl.pallas_call(
        _gru_dnn_kernel,
        out_shape=jax.ShapeDtypeStruct((Bp, _LANE), jnp.float32),
        in_specs=[vmem] * len(inputs),
        out_specs=vmem,
        scratch_shapes=[scratch],
    )(*inputs)
    return out[:B, :1]


def init_params(key, input_size, hidden_size, g_input, g_hidden, g_out):
    """Deterministic synthetic init (PyTorch-style uniform bounds)."""
    ks = jax.random.split(key, 19)

    def u(k, shape, fan_in):
        bound = 1.0 / float(fan_in) ** 0.5
        return jax.random.uniform(k, shape, jnp.float32, -bound, bound)

    H = hidden_size
    p = {}
    # GRU layer 0 (input_size -> H), gates [r|z|n] stacked on the output dim.
    p["wih0T"] = u(ks[0], (input_size, 3 * H), H)
    p["whh0T"] = u(ks[1], (H, 3 * H), H)
    p["bih0"] = u(ks[2], (1, 3 * H), H)
    p["bhh0"] = u(ks[3], (1, 3 * H), H)
    # GRU layer 1 (H -> H)
    p["wih1T"] = u(ks[4], (H, 3 * H), H)
    p["whh1T"] = u(ks[5], (H, 3 * H), H)
    p["bih1"] = u(ks[6], (1, 3 * H), H)
    p["bhh1"] = u(ks[7], (1, 3 * H), H)
    # DNN: fc1 (g_input -> g_hidden), fc2 (g_hidden -> g_hidden), fc3 (g_hidden -> g_out)
    p["w1T"] = u(ks[8], (g_input, g_hidden), g_input)
    p["b1"] = u(ks[9], (1, g_hidden), g_input)
    p["w2T"] = u(ks[10], (g_hidden, g_hidden), g_hidden)
    p["b2"] = u(ks[11], (1, g_hidden), g_hidden)
    p["w3T"] = u(ks[12], (g_hidden, g_out), g_hidden)
    p["b3"] = u(ks[13], (1, g_out), g_hidden)
    # final Linear(hidden_size + g_out -> 1), split into the h_n part and the g part
    p["wfhT"] = u(ks[14], (H, 1), H + g_out)
    p["wfgT"] = u(ks[15], (g_out, 1), H + g_out)
    p["bf"] = u(ks[16], (1, 1), H + g_out)
    return p


def reference_forward(trip, gfeat, p):
    """Pure-JAX f32 reference of the PyTorch forward (eval mode)."""
    T, B, _ = trip.shape
    H = p["whh0T"].shape[0]

    def cell(x_t, h, wihT, whhT, bih, bhh):
        gi = x_t @ wihT + bih
        gh = h @ whhT + bhh
        r = jax.nn.sigmoid(gi[:, :H] + gh[:, :H])
        z = jax.nn.sigmoid(gi[:, H:2 * H] + gh[:, H:2 * H])
        n = jnp.tanh(gi[:, 2 * H:] + r * gh[:, 2 * H:])
        return (1.0 - z) * n + z * h

    h1 = jnp.zeros((B, H), jnp.float32)
    h2 = jnp.zeros((B, H), jnp.float32)
    for t in range(T):
        h1 = cell(trip[t], h1, p["wih0T"], p["whh0T"], p["bih0"], p["bhh0"])
        h2 = cell(h1, h2, p["wih1T"], p["whh1T"], p["bih1"], p["bhh1"])
    leaky = lambda v: jnp.where(v > 0, v, 0.01 * v)
    a = leaky(gfeat @ p["w1T"] + p["b1"])
    a = leaky(a @ p["w2T"] + p["b2"] + a)
    a = leaky(a @ p["w3T"] + p["b3"] + a)
    return h2 @ p["wfhT"] + a @ p["wfgT"] + p["bf"]


if __name__ == "__main__":
    # Small shapes consistent with the module. The DNN residual `fc3(x) + x`
    # requires g_out == g_hidden for the PyTorch forward to be well-formed.
    T, B = 8, 2
    input_size, hidden_size = 4, 32
    g_input, g_hidden, g_out = 8, 16, 16

    key = jax.random.PRNGKey(0)
    k_trip, k_glob, k_par = jax.random.split(key, 3)
    trip_feature = jax.random.normal(k_trip, (T, B, input_size), jnp.float32)
    global_feature = jax.random.normal(k_glob, (B, g_input), jnp.float32)
    params = init_params(k_par, input_size, hidden_size, g_input, g_hidden, g_out)

    out = gru_dnn_forward(trip_feature, global_feature, params)
    out = jax.block_until_ready(out)

    ref = reference_forward(trip_feature, global_feature, params)
    assert out.shape == (B, 1), out.shape
    # bf16 MXU operands (f32 accumulation / f32 gate math) over an 8-step
    # recurrence: tolerance vs. the pure-f32 reference is loosened accordingly.
    assert jnp.allclose(out, ref, rtol=5e-2, atol=5e-2), (out, ref)

    print("KERNEL_OK")
</pallas_src>

<mosaic_0001>
module attributes {stable_mosaic.version = 11 : i64} {
  func.func @_gru_dnn_kernel(%arg0: memref<64x16xbf16, #tpu.memory_space<vmem>>, %arg1: memref<8x16xbf16, #tpu.memory_space<vmem>>, %arg2: memref<16x384xbf16, #tpu.memory_space<vmem>>, %arg3: memref<256x768xbf16, #tpu.memory_space<vmem>>, %arg4: memref<128x384xbf16, #tpu.memory_space<vmem>>, %arg5: memref<3x16x16xbf16, #tpu.memory_space<vmem>>, %arg6: memref<144x128xbf16, #tpu.memory_space<vmem>>, %arg7: memref<8x1328xf32, #tpu.memory_space<vmem>>, %arg8: memref<8x128xf32, #tpu.memory_space<vmem>>, %arg9: memref<64x384xf32, #tpu.memory_space<vmem>>) attributes {dimension_semantics = [], scalar_prefetch = 0 : i64, scratch_operands = 1 : i64, tpu.core_type = #tpu.core_type<tc>} {
    %c0 = arith.constant 0 : index
    %c0_0 = arith.constant 0 : index
    %0 = vector.load %arg0[%c0, %c0_0] : memref<64x16xbf16, #tpu.memory_space<vmem>>, vector<64x16xbf16>
    %c0_1 = arith.constant 0 : index
    %c0_2 = arith.constant 0 : index
    %1 = vector.load %arg2[%c0_1, %c0_2] : memref<16x384xbf16, #tpu.memory_space<vmem>>, vector<16x384xbf16>
    %cst = arith.constant dense<0.000000e+00> : vector<64x384xf32>
    %2 = tpu.matmul %0, %1, %cst {dimension_numbers = #tpu.dot_dimension_numbers<[1], [0], [0], [1], [0, 0, 1, 1], [], []>} : vector<64x16xbf16>, vector<16x384xbf16>, vector<64x384xf32> -> vector<64x384xf32>
    %c0_3 = arith.constant 0 : index
    %c0_4 = arith.constant 0 : index
    %3 = vector.load %arg9[%c0_3, %c0_4] : memref<64x384xf32, #tpu.memory_space<vmem>>, vector<64x384xf32>
    tpu.vector_store %arg9[%c0_3, %c0_4], %2 {strides = array<i32>} : memref<64x384xf32, #tpu.memory_space<vmem>>, vector<64x384xf32>,
    %c0_5 = arith.constant 0 : index
    %c0_6 = arith.constant 0 : index
    %4 = vector.load %arg3[%c0_5, %c0_6] : memref<256x768xbf16, #tpu.memory_space<vmem>>, vector<256x768xbf16>
    %c0_7 = arith.constant 0 : index
    %c0_8 = arith.constant 0 : index
    %5 = vector.load %arg4[%c0_7, %c0_8] : memref<128x384xbf16, #tpu.memory_space<vmem>>, vector<128x384xbf16>
    %c0_9 = arith.constant 0 : index
    %c0_10 = arith.constant 0 : index
    %6 = vector.load %arg7[%c0_9, %c0_10] : memref<8x1328xf32, #tpu.memory_space<vmem>>, vector<8x768xf32>
    %c0_11 = arith.constant 0 : index
    %c768 = arith.constant 768 : index
    %7 = vector.load %arg7[%c0_11, %c768] : memref<8x1328xf32, #tpu.memory_space<vmem>>, vector<8x384xf32>
    %c0_12 = arith.constant 0 : index
    %c1152 = arith.constant 1152 : index
    %8 = vector.load %arg7[%c0_12, %c1152] : memref<8x1328xf32, #tpu.memory_space<vmem>>, vector<8x128xf32>
    %c0_13 = arith.constant 0 : index
    %c1280 = arith.constant 1280 : index
    %9 = vector.load %arg7[%c0_13, %c1280] : memref<8x1328xf32, #tpu.memory_space<vmem>>, vector<8x16xf32>
    %c0_14 = arith.constant 0 : index
    %c1296 = arith.constant 1296 : index
    %10 = vector.load %arg7[%c0_14, %c1296] : memref<8x1328xf32, #tpu.memory_space<vmem>>, vector<8x16xf32>
    %c0_15 = arith.constant 0 : index
    %c1312 = arith.constant 1312 : index
    %11 = vector.load %arg7[%c0_15, %c1312] : memref<8x1328xf32, #tpu.memory_space<vmem>>, vector<8x16xf32>
    %cst_16 = arith.constant 0.000000e+00 : f32
    %12 = vector.broadcast %cst_16 : f32 to vector<8x128xf32>
    %cst_17 = arith.constant 0.000000e+00 : f32
    %13 = vector.broadcast %cst_17 : f32 to vector<8x128xf32>
    %c0_18 = arith.constant 0 : index
    %c0_19 = arith.constant 0 : index
    %14 = vector.load %arg9[%c0_18, %c0_19] : memref<64x384xf32, #tpu.memory_space<vmem>>, vector<8x384xf32>
    %15 = tpu.concatenate %12, %13 in 1 : vector<8x128xf32>, vector<8x128xf32> -> vector<8x256xf32>
    %16 = arith.truncf %15 : vector<8x256xf32> to vector<8x256xbf16>
    %cst_20 = arith.constant dense<0.000000e+00> : vector<8x768xf32>
    %17 = tpu.matmul %16, %4, %cst_20 {dimension_numbers = #tpu.dot_dimension_numbers<[1], [0], [0], [1], [0, 0, 1, 1], [], []>} : vector<8x256xbf16>, vector<256x768xbf16>, vector<8x768xf32> -> vector<8x768xf32>
    %18 = arith.addf %17, %6 : vector<8x768xf32>
    %19 = vector.extract_strided_slice %18 {offsets = [0, 0], sizes = [8, 384], strides = [1, 1]} : vector<8x768xf32> to vector<8x384xf32>
    %20 = vector.extract_strided_slice %14 {offsets = [0, 0], sizes = [8, 128], strides = [1, 1]} : vector<8x384xf32> to vector<8x128xf32>
    %21 = vector.extract_strided_slice %19 {offsets = [0, 0], sizes = [8, 128], strides = [1, 1]} : vector<8x384xf32> to vector<8x128xf32>
    %22 = arith.addf %20, %21 : vector<8x128xf32>
    %cst_21 = arith.constant 5.000000e-01 : f32
    %23 = vector.broadcast %cst_21 : f32 to vector<8x128xf32>
    %24 = arith.mulf %23, %22 : vector<8x128xf32>
    %25 = math.tanh %24 : vector<8x128xf32>
    %cst_22 = arith.constant 5.000000e-01 : f32
    %26 = vector.broadcast %cst_22 : f32 to vector<8x128xf32>
    %27 = arith.mulf %26, %25 : vector<8x128xf32>
    %cst_23 = arith.constant 5.000000e-01 : f32
    %28 = vector.broadcast %cst_23 : f32 to vector<8x128xf32>
    %29 = arith.addf %27, %28 : vector<8x128xf32>
    %30 = vector.extract_strided_slice %14 {offsets = [0, 128], sizes = [8, 128], strides = [1, 1]} : vector<8x384xf32> to vector<8x128xf32>
    %31 = vector.extract_strided_slice %19 {offsets = [0, 128], sizes = [8, 128], strides = [1, 1]} : vector<8x384xf32> to vector<8x128xf32>
    %32 = arith.addf %30, %31 : vector<8x128xf32>
    %cst_24 = arith.constant 5.000000e-01 : f32
    %33 = vector.broadcast %cst_24 : f32 to vector<8x128xf32>
    %34 = arith.mulf %33, %32 : vector<8x128xf32>
    %35 = math.tanh %34 : vector<8x128xf32>
    %cst_25 = arith.constant 5.000000e-01 : f32
    %36 = vector.broadcast %cst_25 : f32 to vector<8x128xf32>
    %37 = arith.mulf %36, %35 : vector<8x128xf32>
    %cst_26 = arith.constant 5.000000e-01 : f32
    %38 = vector.broadcast %cst_26 : f32 to vector<8x128xf32>
    %39 = arith.addf %37, %38 : vector<8x128xf32>
    %40 = vector.extract_strided_slice %14 {offsets = [0, 256], sizes = [8, 128], strides = [1, 1]} : vector<8x384xf32> to vector<8x128xf32>
    %41 = vector.extract_strided_slice %19 {offsets = [0, 256], sizes = [8, 128], strides = [1, 1]} : vector<8x384xf32> to vector<8x128xf32>
    %42 = arith.mulf %29, %41 : vector<8x128xf32>
    %43 = arith.addf %40, %42 : vector<8x128xf32>
    %44 = math.tanh %43 : vector<8x128xf32>
    %cst_27 = arith.constant 1.000000e+00 : f32
    %45 = vector.broadcast %cst_27 : f32 to vector<8x128xf32>
    %46 = arith.subf %45, %39 : vector<8x128xf32>
    %47 = arith.subf %44, %12 : vector<8x128xf32>
    %48 = arith.mulf %46, %47 : vector<8x128xf32>
    %49 = arith.addf %12, %48 : vector<8x128xf32>
    %50 = arith.truncf %49 : vector<8x128xf32> to vector<8x128xbf16>
    %cst_28 = arith.constant dense<0.000000e+00> : vector<8x384xf32>
    %51 = tpu.matmul %50, %5, %cst_28 {dimension_numbers = #tpu.dot_dimension_numbers<[1], [0], [0], [1], [0, 0, 1, 1], [], []>} : vector<8x128xbf16>, vector<128x384xbf16>, vector<8x384xf32> -> vector<8x384xf32>
    %52 = arith.addf %51, %7 : vector<8x384xf32>
    %53 = vector.extract_strided_slice %18 {offsets = [0, 384], sizes = [8, 384], strides = [1, 1]} : vector<8x768xf32> to vector<8x384xf32>
    %54 = vector.extract_strided_slice %52 {offsets = [0, 0], sizes = [8, 128], strides = [1, 1]} : vector<8x384xf32> to vector<8x128xf32>
    %55 = vector.extract_strided_slice %53 {offsets = [0, 0], sizes = [8, 128], strides = [1, 1]} : vector<8x384xf32> to vector<8x128xf32>
    %56 = arith.addf %54, %55 : vector<8x128xf32>
    %cst_29 = arith.constant 5.000000e-01 : f32
    %57 = vector.broadcast %cst_29 : f32 to vector<8x128xf32>
    %58 = arith.mulf %57, %56 : vector<8x128xf32>
    %59 = math.tanh %58 : vector<8x128xf32>
    %cst_30 = arith.constant 5.000000e-01 : f32
    %60 = vector.broadcast %cst_30 : f32 to vector<8x128xf32>
    %61 = arith.mulf %60, %59 : vector<8x128xf32>
    %cst_31 = arith.constant 5.000000e-01 : f32
    %62 = vector.broadcast %cst_31 : f32 to vector<8x128xf32>
    %63 = arith.addf %61, %62 : vector<8x128xf32>
    %64 = vector.extract_strided_slice %52 {offsets = [0, 128], sizes = [8, 128], strides = [1, 1]} : vector<8x384xf32> to vector<8x128xf32>
    %65 = vector.extract_strided_slice %53 {offsets = [0, 128], sizes = [8, 128], strides = [1, 1]} : vector<8x384xf32> to vector<8x128xf32>
    %66 = arith.addf %64, %65 : vector<8x128xf32>
    %cst_32 = arith.constant 5.000000e-01 : f32
    %67 = vector.broadcast %cst_32 : f32 to vector<8x128xf32>
    %68 = arith.mulf %67, %66 : vector<8x128xf32>
    %69 = math.tanh %68 : vector<8x128xf32>
    %cst_33 = arith.constant 5.000000e-01 : f32
    %70 = vector.broadcast %cst_33 : f32 to vector<8x128xf32>
    %71 = arith.mulf %70, %69 : vector<8x128xf32>
    %cst_34 = arith.constant 5.000000e-01 : f32
    %72 = vector.broadcast %cst_34 : f32 to vector<8x128xf32>
    %73 = arith.addf %71, %72 : vector<8x128xf32>
    %74 = vector.extract_strided_slice %52 {offsets = [0, 256], sizes = [8, 128], strides = [1, 1]} : vector<8x384xf32> to vector<8x128xf32>
    %75 = vector.extract_strided_slice %53 {offsets = [0, 256], sizes = [8, 128], strides = [1, 1]} : vector<8x384xf32> to vector<8x128xf32>
    %76 = arith.mulf %63, %75 : vector<8x128xf32>
    %77 = arith.addf %74, %76 : vector<8x128xf32>
    %78 = math.tanh %77 : vector<8x128xf32>
    %cst_35 = arith.constant 1.000000e+00 : f32
    %79 = vector.broadcast %cst_35 : f32 to vector<8x128xf32>
    %80 = arith.subf %79, %73 : vector<8x128xf32>
    %81 = arith.subf %78, %13 : vector<8x128xf32>
    %82 = arith.mulf %80, %81 : vector<8x128xf32>
    %83 = arith.addf %13, %82 : vector<8x128xf32>
    %c8 = arith.constant 8 : index
    %c0_36 = arith.constant 0 : index
    %84 = vector.load %arg9[%c8, %c0_36] : memref<64x384xf32, #tpu.memory_space<vmem>>, vector<8x384xf32>
    %85 = tpu.concatenate %49, %83 in 1 : vector<8x128xf32>, vector<8x128xf32> -> vector<8x256xf32>
    %86 = arith.truncf %85 : vector<8x256xf32> to vector<8x256xbf16>
    %cst_37 = arith.constant dense<0.000000e+00> : vector<8x768xf32>
    %87 = tpu.matmul %86, %4, %cst_37 {dimension_numbers = #tpu.dot_dimension_numbers<[1], [0], [0], [1], [0, 0, 1, 1], [], []>} : vector<8x256xbf16>, vector<256x768xbf16>, vector<8x768xf32> -> vector<8x768xf32>
    %88 = arith.addf %87, %6 : vector<8x768xf32>
    %89 = vector.extract_strided_slice %88 {offsets = [0, 0], sizes = [8, 384], strides = [1, 1]} : vector<8x768xf32> to vector<8x384xf32>
    %90 = vector.extract_strided_slice %84 {offsets = [0, 0], sizes = [8, 128], strides = [1, 1]} : vector<8x384xf32> to vector<8x128xf32>
    %91 = vector.extract_strided_slice %89 {offsets = [0, 0], sizes = [8, 128], strides = [1, 1]} : vector<8x384xf32> to vector<8x128xf32>
    %92 = arith.addf %90, %91 : vector<8x128xf32>
    %cst_38 = arith.constant 5.000000e-01 : f32
    %93 = vector.broadcast %cst_38 : f32 to vector<8x128xf32>
    %94 = arith.mulf %93, %92 : vector<8x128xf32>
    %95 = math.tanh %94 : vector<8x128xf32>
    %cst_39 = arith.constant 5.000000e-01 : f32
    %96 = vector.broadcast %cst_39 : f32 to vector<8x128xf32>
    %97 = arith.mulf %96, %95 : vector<8x128xf32>
    %cst_40 = arith.constant 5.000000e-01 : f32
    %98 = vector.broadcast %cst_40 : f32 to vector<8x128xf32>
    %99 = arith.addf %97, %98 : vector<8x128xf32>
    %100 = vector.extract_strided_slice %84 {offsets = [0, 128], sizes = [8, 128], strides = [1, 1]} : vector<8x384xf32> to vector<8x128xf32>
    %101 = vector.extract_strided_slice %89 {offsets = [0, 128], sizes = [8, 128], strides = [1, 1]} : vector<8x384xf32> to vector<8x128xf32>
    %102 = arith.addf %100, %101 : vector<8x128xf32>
    %cst_41 = arith.constant 5.000000e-01 : f32
    %103 = vector.broadcast %cst_41 : f32 to vector<8x128xf32>
    %104 = arith.mulf %103, %102 : vector<8x128xf32>
    %105 = math.tanh %104 : vector<8x128xf32>
    %cst_42 = arith.constant 5.000000e-01 : f32
    %106 = vector.broadcast %cst_42 : f32 to vector<8x128xf32>
    %107 = arith.mulf %106, %105 : vector<8x128xf32>
    %cst_43 = arith.constant 5.000000e-01 : f32
    %108 = vector.broadcast %cst_43 : f32 to vector<8x128xf32>
    %109 = arith.addf %107, %108 : vector<8x128xf32>
    %110 = vector.extract_strided_slice %84 {offsets = [0, 256], sizes = [8, 128], strides = [1, 1]} : vector<8x384xf32> to vector<8x128xf32>
    %111 = vector.extract_strided_slice %89 {offsets = [0, 256], sizes = [8, 128], strides = [1, 1]} : vector<8x384xf32> to vector<8x128xf32>
    %112 = arith.mulf %99, %111 : vector<8x128xf32>
    %113 = arith.addf %110, %112 : vector<8x128xf32>
    %114 = math.tanh %113 : vector<8x128xf32>
    %cst_44 = arith.constant 1.000000e+00 : f32
    %115 = vector.broadcast %cst_44 : f32 to vector<8x128xf32>
    %116 = arith.subf %115, %109 : vector<8x128xf32>
    %117 = arith.subf %114, %49 : vector<8x128xf32>
    %118 = arith.mulf %116, %117 : vector<8x128xf32>
    %119 = arith.addf %49, %118 : vector<8x128xf32>
    %120 = arith.truncf %119 : vector<8x128xf32> to vector<8x128xbf16>
    %cst_45 = arith.constant dense<0.000000e+00> : vector<8x384xf32>
    %121 = tpu.matmul %120, %5, %cst_45 {dimension_numbers = #tpu.dot_dimension_numbers<[1], [0], [0], [1], [0, 0, 1, 1], [], []>} : vector<8x128xbf16>, vector<128x384xbf16>, vector<8x384xf32> -> vector<8x384xf32>
    %122 = arith.addf %121, %7 : vector<8x384xf32>
    %123 = vector.extract_strided_slice %88 {offsets = [0, 384], sizes = [8, 384], strides = [1, 1]} : vector<8x768xf32> to vector<8x384xf32>
    %124 = vector.extract_strided_slice %122 {offsets = [0, 0], sizes = [8, 128], strides = [1, 1]} : vector<8x384xf32> to vector<8x128xf32>
    %125 = vector.extract_strided_slice %123 {offsets = [0, 0], sizes = [8, 128], strides = [1, 1]} : vector<8x384xf32> to vector<8x128xf32>
    %126 = arith.addf %124, %125 : vector<8x128xf32>
    %cst_46 = arith.constant 5.000000e-01 : f32
    %127 = vector.broadcast %cst_46 : f32 to vector<8x128xf32>
    %128 = arith.mulf %127, %126 : vector<8x128xf32>
    %129 = math.tanh %128 : vector<8x128xf32>
    %cst_47 = arith.constant 5.000000e-01 : f32
    %130 = vector.broadcast %cst_47 : f32 to vector<8x128xf32>
    %131 = arith.mulf %130, %129 : vector<8x128xf32>
    %cst_48 = arith.constant 5.000000e-01 : f32
    %132 = vector.broadcast %cst_48 : f32 to vector<8x128xf32>
    %133 = arith.addf %131, %132 : vector<8x128xf32>
    %134 = vector.extract_strided_slice %122 {offsets = [0, 128], sizes = [8, 128], strides = [1, 1]} : vector<8x384xf32> to vector<8x128xf32>
    %135 = vector.extract_strided_slice %123 {offsets = [0, 128], sizes = [8, 128], strides = [1, 1]} : vector<8x384xf32> to vector<8x128xf32>
    %136 = arith.addf %134, %135 : vector<8x128xf32>
    %cst_49 = arith.constant 5.000000e-01 : f32
    %137 = vector.broadcast %cst_49 : f32 to vector<8x128xf32>
    %138 = arith.mulf %137, %136 : vector<8x128xf32>
    %139 = math.tanh %138 : vector<8x128xf32>
    %cst_50 = arith.constant 5.000000e-01 : f32
    %140 = vector.broadcast %cst_50 : f32 to vector<8x128xf32>
    %141 = arith.mulf %140, %139 : vector<8x128xf32>
    %cst_51 = arith.constant 5.000000e-01 : f32
    %142 = vector.broadcast %cst_51 : f32 to vector<8x128xf32>
    %143 = arith.addf %141, %142 : vector<8x128xf32>
    %144 = vector.extract_strided_slice %122 {offsets = [0, 256], sizes = [8, 128], strides = [1, 1]} : vector<8x384xf32> to vector<8x128xf32>
    %145 = vector.extract_strided_slice %123 {offsets = [0, 256], sizes = [8, 128], strides = [1, 1]} : vector<8x384xf32> to vector<8x128xf32>
    %146 = arith.mulf %133, %145 : vector<8x128xf32>
    %147 = arith.addf %144, %146 : vector<8x128xf32>
    %148 = math.tanh %147 : vector<8x128xf32>
    %cst_52 = arith.constant 1.000000e+00 : f32
    %149 = vector.broadcast %cst_52 : f32 to vector<8x128xf32>
    %150 = arith.subf %149, %143 : vector<8x128xf32>
    %151 = arith.subf %148, %83 : vector<8x128xf32>
    %152 = arith.mulf %150, %151 : vector<8x128xf32>
    %153 = arith.addf %83, %152 : vector<8x128xf32>
    %c16 = arith.constant 16 : index
    %c0_53 = arith.constant 0 : index
    %154 = vector.load %arg9[%c16, %c0_53] : memref<64x384xf32, #tpu.memory_space<vmem>>, vector<8x384xf32>
    %155 = tpu.concatenate %119, %153 in 1 : vector<8x128xf32>, vector<8x128xf32> -> vector<8x256xf32>
    %156 = arith.truncf %155 : vector<8x256xf32> to vector<8x256xbf16>
    %cst_54 = arith.constant dense<0.000000e+00> : vector<8x768xf32>
    %157 = tpu.matmul %156, %4, %cst_54 {dimension_numbers = #tpu.dot_dimension_numbers<[1], [0], [0], [1], [0, 0, 1, 1], [], []>} : vector<8x256xbf16>, vector<256x768xbf16>, vector<8x768xf32> -> vector<8x768xf32>
    %158 = arith.addf %157, %6 : vector<8x768xf32>
    %159 = vector.extract_strided_slice %158 {offsets = [0, 0], sizes = [8, 384], strides = [1, 1]} : vector<8x768xf32> to vector<8x384xf32>
    %160 = vector.extract_strided_slice %154 {offsets = [0, 0], sizes = [8, 128], strides = [1, 1]} : vector<8x384xf32> to vector<8x128xf32>
    %161 = vector.extract_strided_slice %159 {offsets = [0, 0], sizes = [8, 128], strides = [1, 1]} : vector<8x384xf32> to vector<8x128xf32>
    %162 = arith.addf %160, %161 : vector<8x128xf32>
    %cst_55 = arith.constant 5.000000e-01 : f32
    %163 = vector.broadcast %cst_55 : f32 to vector<8x128xf32>
    %164 = arith.mulf %163, %162 : vector<8x128xf32>
    %165 = math.tanh %164 : vector<8x128xf32>
    %cst_56 = arith.constant 5.000000e-01 : f32
    %166 = vector.broadcast %cst_56 : f32 to vector<8x128xf32>
    %167 = arith.mulf %166, %165 : vector<8x128xf32>
    %cst_57 = arith.constant 5.000000e-01 : f32
    %168 = vector.broadcast %cst_57 : f32 to vector<8x128xf32>
    %169 = arith.addf %167, %168 : vector<8x128xf32>
    %170 = vector.extract_strided_slice %154 {offsets = [0, 128], sizes = [8, 128], strides = [1, 1]} : vector<8x384xf32> to vector<8x128xf32>
    %171 = vector.extract_strided_slice %159 {offsets = [0, 128], sizes = [8, 128], strides = [1, 1]} : vector<8x384xf32> to vector<8x128xf32>
    %172 = arith.addf %170, %171 : vector<8x128xf32>
    %cst_58 = arith.constant 5.000000e-01 : f32
    %173 = vector.broadcast %cst_58 : f32 to vector<8x128xf32>
    %174 = arith.mulf %173, %172 : vector<8x128xf32>
    %175 = math.tanh %174 : vector<8x128xf32>
    %cst_59 = arith.constant 5.000000e-01 : f32
    %176 = vector.broadcast %cst_59 : f32 to vector<8x128xf32>
    %177 = arith.mulf %176, %175 : vector<8x128xf32>
    %cst_60 = arith.constant 5.000000e-01 : f32
    %178 = vector.broadcast %cst_60 : f32 to vector<8x128xf32>
    %179 = arith.addf %177, %178 : vector<8x128xf32>
    %180 = vector.extract_strided_slice %154 {offsets = [0, 256], sizes = [8, 128], strides = [1, 1]} : vector<8x384xf32> to vector<8x128xf32>
    %181 = vector.extract_strided_slice %159 {offsets = [0, 256], sizes = [8, 128], strides = [1, 1]} : vector<8x384xf32> to vector<8x128xf32>
    %182 = arith.mulf %169, %181 : vector<8x128xf32>
    %183 = arith.addf %180, %182 : vector<8x128xf32>
    %184 = math.tanh %183 : vector<8x128xf32>
    %cst_61 = arith.constant 1.000000e+00 : f32
    %185 = vector.broadcast %cst_61 : f32 to vector<8x128xf32>
    %186 = arith.subf %185, %179 : vector<8x128xf32>
    %187 = arith.subf %184, %119 : vector<8x128xf32>
    %188 = arith.mulf %186, %187 : vector<8x128xf32>
    %189 = arith.addf %119, %188 : vector<8x128xf32>
    %190 = arith.truncf %189 : vector<8x128xf32> to vector<8x128xbf16>
    %cst_62 = arith.constant dense<0.000000e+00> : vector<8x384xf32>
    %191 = tpu.matmul %190, %5, %cst_62 {dimension_numbers = #tpu.dot_dimension_numbers<[1], [0], [0], [1], [0, 0, 1, 1], [], []>} : vector<8x128xbf16>, vector<128x384xbf16>, vector<8x384xf32> -> vector<8x384xf32>
    %192 = arith.addf %191, %7 : vector<8x384xf32>
    %193 = vector.extract_strided_slice %158 {offsets = [0, 384], sizes = [8, 384], strides = [1, 1]} : vector<8x768xf32> to vector<8x384xf32>
    %194 = vector.extract_strided_slice %192 {offsets = [0, 0], sizes = [8, 128], strides = [1, 1]} : vector<8x384xf32> to vector<8x128xf32>
    %195 = vector.extract_strided_slice %193 {offsets = [0, 0], sizes = [8, 128], strides = [1, 1]} : vector<8x384xf32> to vector<8x128xf32>
    %196 = arith.addf %194, %195 : vector<8x128xf32>
    %cst_63 = arith.constant 5.000000e-01 : f32
    %197 = vector.broadcast %cst_63 : f32 to vector<8x128xf32>
    %198 = arith.mulf %197, %196 : vector<8x128xf32>
    %199 = math.tanh %198 : vector<8x128xf32>
    %cst_64 = arith.constant 5.000000e-01 : f32
    %200 = vector.broadcast %cst_64 : f32 to vector<8x128xf32>
    %201 = arith.mulf %200, %199 : vector<8x128xf32>
    %cst_65 = arith.constant 5.000000e-01 : f32
    %202 = vector.broadcast %cst_65 : f32 to vector<8x128xf32>
    %203 = arith.addf %201, %202 : vector<8x128xf32>
    %204 = vector.extract_strided_slice %192 {offsets = [0, 128], sizes = [8, 128], strides = [1, 1]} : vector<8x384xf32> to vector<8x128xf32>
    %205 = vector.extract_strided_slice %193 {offsets = [0, 128], sizes = [8, 128], strides = [1, 1]} : vector<8x384xf32> to vector<8x128xf32>
    %206 = arith.addf %204, %205 : vector<8x128xf32>
    %cst_66 = arith.constant 5.000000e-01 : f32
    %207 = vector.broadcast %cst_66 : f32 to vector<8x128xf32>
    %208 = arith.mulf %207, %206 : vector<8x128xf32>
    %209 = math.tanh %208 : vector<8x128xf32>
    %cst_67 = arith.constant 5.000000e-01 : f32
    %210 = vector.broadcast %cst_67 : f32 to vector<8x128xf32>
    %211 = arith.mulf %210, %209 : vector<8x128xf32>
    %cst_68 = arith.constant 5.000000e-01 : f32
    %212 = vector.broadcast %cst_68 : f32 to vector<8x128xf32>
    %213 = arith.addf %211, %212 : vector<8x128xf32>
    %214 = vector.extract_strided_slice %192 {offsets = [0, 256], sizes = [8, 128], strides = [1, 1]} : vector<8x384xf32> to vector<8x128xf32>
    %215 = vector.extract_strided_slice %193 {offsets = [0, 256], sizes = [8, 128], strides = [1, 1]} : vector<8x384xf32> to vector<8x128xf32>
    %216 = arith.mulf %203, %215 : vector<8x128xf32>
    %217 = arith.addf %214, %216 : vector<8x128xf32>
    %218 = math.tanh %217 : vector<8x128xf32>
    %cst_69 = arith.constant 1.000000e+00 : f32
    %219 = vector.broadcast %cst_69 : f32 to vector<8x128xf32>
    %220 = arith.subf %219, %213 : vector<8x128xf32>
    %221 = arith.subf %218, %153 : vector<8x128xf32>
    %222 = arith.mulf %220, %221 : vector<8x128xf32>
    %223 = arith.addf %153, %222 : vector<8x128xf32>
    %c24 = arith.constant 24 : index
    %c0_70 = arith.constant 0 : index
    %224 = vector.load %arg9[%c24, %c0_70] : memref<64x384xf32, #tpu.memory_space<vmem>>, vector<8x384xf32>
    %225 = tpu.concatenate %189, %223 in 1 : vector<8x128xf32>, vector<8x128xf32> -> vector<8x256xf32>
    %226 = arith.truncf %225 : vector<8x256xf32> to vector<8x256xbf16>
    %cst_71 = arith.constant dense<0.000000e+00> : vector<8x768xf32>
    %227 = tpu.matmul %226, %4, %cst_71 {dimension_numbers = #tpu.dot_dimension_numbers<[1], [0], [0], [1], [0, 0, 1, 1], [], []>} : vector<8x256xbf16>, vector<256x768xbf16>, vector<8x768xf32> -> vector<8x768xf32>
    %228 = arith.addf %227, %6 : vector<8x768xf32>
    %229 = vector.extract_strided_slice %228 {offsets = [0, 0], sizes = [8, 384], strides = [1, 1]} : vector<8x768xf32> to vector<8x384xf32>
    %230 = vector.extract_strided_slice %224 {offsets = [0, 0], sizes = [8, 128], strides = [1, 1]} : vector<8x384xf32> to vector<8x128xf32>
    %231 = vector.extract_strided_slice %229 {offsets = [0, 0], sizes = [8, 128], strides = [1, 1]} : vector<8x384xf32> to vector<8x128xf32>
    %232 = arith.addf %230, %231 : vector<8x128xf32>
    %cst_72 = arith.constant 5.000000e-01 : f32
    %233 = vector.broadcast %cst_72 : f32 to vector<8x128xf32>
    %234 = arith.mulf %233, %232 : vector<8x128xf32>
    %235 = math.tanh %234 : vector<8x128xf32>
    %cst_73 = arith.constant 5.000000e-01 : f32
    %236 = vector.broadcast %cst_73 : f32 to vector<8x128xf32>
    %237 = arith.mulf %236, %235 : vector<8x128xf32>
    %cst_74 = arith.constant 5.000000e-01 : f32
    %238 = vector.broadcast %cst_74 : f32 to vector<8x128xf32>
    %239 = arith.addf %237, %238 : vector<8x128xf32>
    %240 = vector.extract_strided_slice %224 {offsets = [0, 128], sizes = [8, 128], strides = [1, 1]} : vector<8x384xf32> to vector<8x128xf32>
    %241 = vector.extract_strided_slice %229 {offsets = [0, 128], sizes = [8, 128], strides = [1, 1]} : vector<8x384xf32> to vector<8x128xf32>
    %242 = arith.addf %240, %241 : vector<8x128xf32>
    %cst_75 = arith.constant 5.000000e-01 : f32
    %243 = vector.broadcast %cst_75 : f32 to vector<8x128xf32>
    %244 = arith.mulf %243, %242 : vector<8x128xf32>
    %245 = math.tanh %244 : vector<8x128xf32>
    %cst_76 = arith.constant 5.000000e-01 : f32
    %246 = vector.broadcast %cst_76 : f32 to vector<8x128xf32>
    %247 = arith.mulf %246, %245 : vector<8x128xf32>
    %cst_77 = arith.constant 5.000000e-01 : f32
    %248 = vector.broadcast %cst_77 : f32 to vector<8x128xf32>
    %249 = arith.addf %247, %248 : vector<8x128xf32>
    %250 = vector.extract_strided_slice %224 {offsets = [0, 256], sizes = [8, 128], strides = [1, 1]} : vector<8x384xf32> to vector<8x128xf32>
    %251 = vector.extract_strided_slice %229 {offsets = [0, 256], sizes = [8, 128], strides = [1, 1]} : vector<8x384xf32> to vector<8x128xf32>
    %252 = arith.mulf %239, %251 : vector<8x128xf32>
    %253 = arith.addf %250, %252 : vector<8x128xf32>
    %254 = math.tanh %253 : vector<8x128xf32>
    %cst_78 = arith.constant 1.000000e+00 : f32
    %255 = vector.broadcast %cst_78 : f32 to vector<8x128xf32>
    %256 = arith.subf %255, %249 : vector<8x128xf32>
    %257 = arith.subf %254, %189 : vector<8x128xf32>
    %258 = arith.mulf %256, %257 : vector<8x128xf32>
    %259 = arith.addf %189, %258 : vector<8x128xf32>
    %260 = arith.truncf %259 : vector<8x128xf32> to vector<8x128xbf16>
    %cst_79 = arith.constant dense<0.000000e+00> : vector<8x384xf32>
    %261 = tpu.matmul %260, %5, %cst_79 {dimension_numbers = #tpu.dot_dimension_numbers<[1], [0], [0], [1], [0, 0, 1, 1], [], []>} : vector<8x128xbf16>, vector<128x384xbf16>, vector<8x384xf32> -> vector<8x384xf32>
    %262 = arith.addf %261, %7 : vector<8x384xf32>
    %263 = vector.extract_strided_slice %228 {offsets = [0, 384], sizes = [8, 384], strides = [1, 1]} : vector<8x768xf32> to vector<8x384xf32>
    %264 = vector.extract_strided_slice %262 {offsets = [0, 0], sizes = [8, 128], strides = [1, 1]} : vector<8x384xf32> to vector<8x128xf32>
    %265 = vector.extract_strided_slice %263 {offsets = [0, 0], sizes = [8, 128], strides = [1, 1]} : vector<8x384xf32> to vector<8x128xf32>
    %266 = arith.addf %264, %265 : vector<8x128xf32>
    %cst_80 = arith.constant 5.000000e-01 : f32
    %267 = vector.broadcast %cst_80 : f32 to vector<8x128xf32>
    %268 = arith.mulf %267, %266 : vector<8x128xf32>
    %269 = math.tanh %268 : vector<8x128xf32>
    %cst_81 = arith.constant 5.000000e-01 : f32
    %270 = vector.broadcast %cst_81 : f32 to vector<8x128xf32>
    %271 = arith.mulf %270, %269 : vector<8x128xf32>
    %cst_82 = arith.constant 5.000000e-01 : f32
    %272 = vector.broadcast %cst_82 : f32 to vector<8x128xf32>
    %273 = arith.addf %271, %272 : vector<8x128xf32>
    %274 = vector.extract_strided_slice %262 {offsets = [0, 128], sizes = [8, 128], strides = [1, 1]} : vector<8x384xf32> to vector<8x128xf32>
    %275 = vector.extract_strided_slice %263 {offsets = [0, 128], sizes = [8, 128], strides = [1, 1]} : vector<8x384xf32> to vector<8x128xf32>
    %276 = arith.addf %274, %275 : vector<8x128xf32>
    %cst_83 = arith.constant 5.000000e-01 : f32
    %277 = vector.broadcast %cst_83 : f32 to vector<8x128xf32>
    %278 = arith.mulf %277, %276 : vector<8x128xf32>
    %279 = math.tanh %278 : vector<8x128xf32>
    %cst_84 = arith.constant 5.000000e-01 : f32
    %280 = vector.broadcast %cst_84 : f32 to vector<8x128xf32>
    %281 = arith.mulf %280, %279 : vector<8x128xf32>
    %cst_85 = arith.constant 5.000000e-01 : f32
    %282 = vector.broadcast %cst_85 : f32 to vector<8x128xf32>
    %283 = arith.addf %281, %282 : vector<8x128xf32>
    %284 = vector.extract_strided_slice %262 {offsets = [0, 256], sizes = [8, 128], strides = [1, 1]} : vector<8x384xf32> to vector<8x128xf32>
    %285 = vector.extract_strided_slice %263 {offsets = [0, 256], sizes = [8, 128], strides = [1, 1]} : vector<8x384xf32> to vector<8x128xf32>
    %286 = arith.mulf %273, %285 : vector<8x128xf32>
    %287 = arith.addf %284, %286 : vector<8x128xf32>
    %288 = math.tanh %287 : vector<8x128xf32>
    %cst_86 = arith.constant 1.000000e+00 : f32
    %289 = vector.broadcast %cst_86 : f32 to vector<8x128xf32>
    %290 = arith.subf %289, %283 : vector<8x128xf32>
    %291 = arith.subf %288, %223 : vector<8x128xf32>
    %292 = arith.mulf %290, %291 : vector<8x128xf32>
    %293 = arith.addf %223, %292 : vector<8x128xf32>
    %c32 = arith.constant 32 : index
    %c0_87 = arith.constant 0 : index
    %294 = vector.load %arg9[%c32, %c0_87] : memref<64x384xf32, #tpu.memory_space<vmem>>, vector<8x384xf32>
    %295 = tpu.concatenate %259, %293 in 1 : vector<8x128xf32>, vector<8x128xf32> -> vector<8x256xf32>
    %296 = arith.truncf %295 : vector<8x256xf32> to vector<8x256xbf16>
    %cst_88 = arith.constant dense<0.000000e+00> : vector<8x768xf32>
    %297 = tpu.matmul %296, %4, %cst_88 {dimension_numbers = #tpu.dot_dimension_numbers<[1], [0], [0], [1], [0, 0, 1, 1], [], []>} : vector<8x256xbf16>, vector<256x768xbf16>, vector<8x768xf32> -> vector<8x768xf32>
    %298 = arith.addf %297, %6 : vector<8x768xf32>
    %299 = vector.extract_strided_slice %298 {offsets = [0, 0], sizes = [8, 384], strides = [1, 1]} : vector<8x768xf32> to vector<8x384xf32>
    %300 = vector.extract_strided_slice %294 {offsets = [0, 0], sizes = [8, 128], strides = [1, 1]} : vector<8x384xf32> to vector<8x128xf32>
    %301 = vector.extract_strided_slice %299 {offsets = [0, 0], sizes = [8, 128], strides = [1, 1]} : vector<8x384xf32> to vector<8x128xf32>
    %302 = arith.addf %300, %301 : vector<8x128xf32>
    %cst_89 = arith.constant 5.000000e-01 : f32
    %303 = vector.broadcast %cst_89 : f32 to vector<8x128xf32>
    %304 = arith.mulf %303, %302 : vector<8x128xf32>
    %305 = math.tanh %304 : vector<8x128xf32>
    %cst_90 = arith.constant 5.000000e-01 : f32
    %306 = vector.broadcast %cst_90 : f32 to vector<8x128xf32>
    %307 = arith.mulf %306, %305 : vector<8x128xf32>
    %cst_91 = arith.constant 5.000000e-01 : f32
    %308 = vector.broadcast %cst_91 : f32 to vector<8x128xf32>
    %309 = arith.addf %307, %308 : vector<8x128xf32>
    %310 = vector.extract_strided_slice %294 {offsets = [0, 128], sizes = [8, 128], strides = [1, 1]} : vector<8x384xf32> to vector<8x128xf32>
    %311 = vector.extract_strided_slice %299 {offsets = [0, 128], sizes = [8, 128], strides = [1, 1]} : vector<8x384xf32> to vector<8x128xf32>
    %312 = arith.addf %310, %311 : vector<8x128xf32>
    %cst_92 = arith.constant 5.000000e-01 : f32
    %313 = vector.broadcast %cst_92 : f32 to vector<8x128xf32>
    %314 = arith.mulf %313, %312 : vector<8x128xf32>
    %315 = math.tanh %314 : vector<8x128xf32>
    %cst_93 = arith.constant 5.000000e-01 : f32
    %316 = vector.broadcast %cst_93 : f32 to vector<8x128xf32>
    %317 = arith.mulf %316, %315 : vector<8x128xf32>
    %cst_94 = arith.constant 5.000000e-01 : f32
    %318 = vector.broadcast %cst_94 : f32 to vector<8x128xf32>
    %319 = arith.addf %317, %318 : vector<8x128xf32>
    %320 = vector.extract_strided_slice %294 {offsets = [0, 256], sizes = [8, 128], strides = [1, 1]} : vector<8x384xf32> to vector<8x128xf32>
    %321 = vector.extract_strided_slice %299 {offsets = [0, 256], sizes = [8, 128], strides = [1, 1]} : vector<8x384xf32> to vector<8x128xf32>
    %322 = arith.mulf %309, %321 : vector<8x128xf32>
    %323 = arith.addf %320, %322 : vector<8x128xf32>
    %324 = math.tanh %323 : vector<8x128xf32>
    %cst_95 = arith.constant 1.000000e+00 : f32
    %325 = vector.broadcast %cst_95 : f32 to vector<8x128xf32>
    %326 = arith.subf %325, %319 : vector<8x128xf32>
    %327 = arith.subf %324, %259 : vector<8x128xf32>
    %328 = arith.mulf %326, %327 : vector<8x128xf32>
    %329 = arith.addf %259, %328 : vector<8x128xf32>
    %330 = arith.truncf %329 : vector<8x128xf32> to vector<8x128xbf16>
    %cst_96 = arith.constant dense<0.000000e+00> : vector<8x384xf32>
    %331 = tpu.matmul %330, %5, %cst_96 {dimension_numbers = #tpu.dot_dimension_numbers<[1], [0], [0], [1], [0, 0, 1, 1], [], []>} : vector<8x128xbf16>, vector<128x384xbf16>, vector<8x384xf32> -> vector<8x384xf32>
    %332 = arith.addf %331, %7 : vector<8x384xf32>
    %333 = vector.extract_strided_slice %298 {offsets = [0, 384], sizes = [8, 384], strides = [1, 1]} : vector<8x768xf32> to vector<8x384xf32>
    %334 = vector.extract_strided_slice %332 {offsets = [0, 0], sizes = [8, 128], strides = [1, 1]} : vector<8x384xf32> to vector<8x128xf32>
    %335 = vector.extract_strided_slice %333 {offsets = [0, 0], sizes = [8, 128], strides = [1, 1]} : vector<8x384xf32> to vector<8x128xf32>
    %336 = arith.addf %334, %335 : vector<8x128xf32>
    %cst_97 = arith.constant 5.000000e-01 : f32
    %337 = vector.broadcast %cst_97 : f32 to vector<8x128xf32>
    %338 = arith.mulf %337, %336 : vector<8x128xf32>
    %339 = math.tanh %338 : vector<8x128xf32>
    %cst_98 = arith.constant 5.000000e-01 : f32
    %340 = vector.broadcast %cst_98 : f32 to vector<8x128xf32>
    %341 = arith.mulf %340, %339 : vector<8x128xf32>
    %cst_99 = arith.constant 5.000000e-01 : f32
    %342 = vector.broadcast %cst_99 : f32 to vector<8x128xf32>
    %343 = arith.addf %341, %342 : vector<8x128xf32>
    %344 = vector.extract_strided_slice %332 {offsets = [0, 128], sizes = [8, 128], strides = [1, 1]} : vector<8x384xf32> to vector<8x128xf32>
    %345 = vector.extract_strided_slice %333 {offsets = [0, 128], sizes = [8, 128], strides = [1, 1]} : vector<8x384xf32> to vector<8x128xf32>
    %346 = arith.addf %344, %345 : vector<8x128xf32>
    %cst_100 = arith.constant 5.000000e-01 : f32
    %347 = vector.broadcast %cst_100 : f32 to vector<8x128xf32>
    %348 = arith.mulf %347, %346 : vector<8x128xf32>
    %349 = math.tanh %348 : vector<8x128xf32>
    %cst_101 = arith.constant 5.000000e-01 : f32
    %350 = vector.broadcast %cst_101 : f32 to vector<8x128xf32>
    %351 = arith.mulf %350, %349 : vector<8x128xf32>
    %cst_102 = arith.constant 5.000000e-01 : f32
    %352 = vector.broadcast %cst_102 : f32 to vector<8x128xf32>
    %353 = arith.addf %351, %352 : vector<8x128xf32>
    %354 = vector.extract_strided_slice %332 {offsets = [0, 256], sizes = [8, 128], strides = [1, 1]} : vector<8x384xf32> to vector<8x128xf32>
    %355 = vector.extract_strided_slice %333 {offsets = [0, 256], sizes = [8, 128], strides = [1, 1]} : vector<8x384xf32> to vector<8x128xf32>
    %356 = arith.mulf %343, %355 : vector<8x128xf32>
    %357 = arith.addf %354, %356 : vector<8x128xf32>
    %358 = math.tanh %357 : vector<8x128xf32>
    %cst_103 = arith.constant 1.000000e+00 : f32
    %359 = vector.broadcast %cst_103 : f32 to vector<8x128xf32>
    %360 = arith.subf %359, %353 : vector<8x128xf32>
    %361 = arith.subf %358, %293 : vector<8x128xf32>
    %362 = arith.mulf %360, %361 : vector<8x128xf32>
    %363 = arith.addf %293, %362 : vector<8x128xf32>
    %c40 = arith.constant 40 : index
    %c0_104 = arith.constant 0 : index
    %364 = vector.load %arg9[%c40, %c0_104] : memref<64x384xf32, #tpu.memory_space<vmem>>, vector<8x384xf32>
    %365 = tpu.concatenate %329, %363 in 1 : vector<8x128xf32>, vector<8x128xf32> -> vector<8x256xf32>
    %366 = arith.truncf %365 : vector<8x256xf32> to vector<8x256xbf16>
    %cst_105 = arith.constant dense<0.000000e+00> : vector<8x768xf32>
    %367 = tpu.matmul %366, %4, %cst_105 {dimension_numbers = #tpu.dot_dimension_numbers<[1], [0], [0], [1], [0, 0, 1, 1], [], []>} : vector<8x256xbf16>, vector<256x768xbf16>, vector<8x768xf32> -> vector<8x768xf32>
    %368 = arith.addf %367, %6 : vector<8x768xf32>
    %369 = vector.extract_strided_slice %368 {offsets = [0, 0], sizes = [8, 384], strides = [1, 1]} : vector<8x768xf32> to vector<8x384xf32>
    %370 = vector.extract_strided_slice %364 {offsets = [0, 0], sizes = [8, 128], strides = [1, 1]} : vector<8x384xf32> to vector<8x128xf32>
    %371 = vector.extract_strided_slice %369 {offsets = [0, 0], sizes = [8, 128], strides = [1, 1]} : vector<8x384xf32> to vector<8x128xf32>
    %372 = arith.addf %370, %371 : vector<8x128xf32>
    %cst_106 = arith.constant 5.000000e-01 : f32
    %373 = vector.broadcast %cst_106 : f32 to vector<8x128xf32>
    %374 = arith.mulf %373, %372 : vector<8x128xf32>
    %375 = math.tanh %374 : vector<8x128xf32>
    %cst_107 = arith.constant 5.000000e-01 : f32
    %376 = vector.broadcast %cst_107 : f32 to vector<8x128xf32>
    %377 = arith.mulf %376, %375 : vector<8x128xf32>
    %cst_108 = arith.constant 5.000000e-01 : f32
    %378 = vector.broadcast %cst_108 : f32 to vector<8x128xf32>
    %379 = arith.addf %377, %378 : vector<8x128xf32>
    %380 = vector.extract_strided_slice %364 {offsets = [0, 128], sizes = [8, 128], strides = [1, 1]} : vector<8x384xf32> to vector<8x128xf32>
    %381 = vector.extract_strided_slice %369 {offsets = [0, 128], sizes = [8, 128], strides = [1, 1]} : vector<8x384xf32> to vector<8x128xf32>
    %382 = arith.addf %380, %381 : vector<8x128xf32>
    %cst_109 = arith.constant 5.000000e-01 : f32
    %383 = vector.broadcast %cst_109 : f32 to vector<8x128xf32>
    %384 = arith.mulf %383, %382 : vector<8x128xf32>
    %385 = math.tanh %384 : vector<8x128xf32>
    %cst_110 = arith.constant 5.000000e-01 : f32
    %386 = vector.broadcast %cst_110 : f32 to vector<8x128xf32>
    %387 = arith.mulf %386, %385 : vector<8x128xf32>
    %cst_111 = arith.constant 5.000000e-01 : f32
    %388 = vector.broadcast %cst_111 : f32 to vector<8x128xf32>
    %389 = arith.addf %387, %388 : vector<8x128xf32>
    %390 = vector.extract_strided_slice %364 {offsets = [0, 256], sizes = [8, 128], strides = [1, 1]} : vector<8x384xf32> to vector<8x128xf32>
    %391 = vector.extract_strided_slice %369 {offsets = [0, 256], sizes = [8, 128], strides = [1, 1]} : vector<8x384xf32> to vector<8x128xf32>
    %392 = arith.mulf %379, %391 : vector<8x128xf32>
    %393 = arith.addf %390, %392 : vector<8x128xf32>
    %394 = math.tanh %393 : vector<8x128xf32>
    %cst_112 = arith.constant 1.000000e+00 : f32
    %395 = vector.broadcast %cst_112 : f32 to vector<8x128xf32>
    %396 = arith.subf %395, %389 : vector<8x128xf32>
    %397 = arith.subf %394, %329 : vector<8x128xf32>
    %398 = arith.mulf %396, %397 : vector<8x128xf32>
    %399 = arith.addf %329, %398 : vector<8x128xf32>
    %400 = arith.truncf %399 : vector<8x128xf32> to vector<8x128xbf16>
    %cst_113 = arith.constant dense<0.000000e+00> : vector<8x384xf32>
    %401 = tpu.matmul %400, %5, %cst_113 {dimension_numbers = #tpu.dot_dimension_numbers<[1], [0], [0], [1], [0, 0, 1, 1], [], []>} : vector<8x128xbf16>, vector<128x384xbf16>, vector<8x384xf32> -> vector<8x384xf32>
    %402 = arith.addf %401, %7 : vector<8x384xf32>
    %403 = vector.extract_strided_slice %368 {offsets = [0, 384], sizes = [8, 384], strides = [1, 1]} : vector<8x768xf32> to vector<8x384xf32>
    %404 = vector.extract_strided_slice %402 {offsets = [0, 0], sizes = [8, 128], strides = [1, 1]} : vector<8x384xf32> to vector<8x128xf32>
    %405 = vector.extract_strided_slice %403 {offsets = [0, 0], sizes = [8, 128], strides = [1, 1]} : vector<8x384xf32> to vector<8x128xf32>
    %406 = arith.addf %404, %405 : vector<8x128xf32>
    %cst_114 = arith.constant 5.000000e-01 : f32
    %407 = vector.broadcast %cst_114 : f32 to vector<8x128xf32>
    %408 = arith.mulf %407, %406 : vector<8x128xf32>
    %409 = math.tanh %408 : vector<8x128xf32>
    %cst_115 = arith.constant 5.000000e-01 : f32
    %410 = vector.broadcast %cst_115 : f32 to vector<8x128xf32>
    %411 = arith.mulf %410, %409 : vector<8x128xf32>
    %cst_116 = arith.constant 5.000000e-01 : f32
    %412 = vector.broadcast %cst_116 : f32 to vector<8x128xf32>
    %413 = arith.addf %411, %412 : vector<8x128xf32>
    %414 = vector.extract_strided_slice %402 {offsets = [0, 128], sizes = [8, 128], strides = [1, 1]} : vector<8x384xf32> to vector<8x128xf32>
    %415 = vector.extract_strided_slice %403 {offsets = [0, 128], sizes = [8, 128], strides = [1, 1]} : vector<8x384xf32> to vector<8x128xf32>
    %416 = arith.addf %414, %415 : vector<8x128xf32>
    %cst_117 = arith.constant 5.000000e-01 : f32
    %417 = vector.broadcast %cst_117 : f32 to vector<8x128xf32>
    %418 = arith.mulf %417, %416 : vector<8x128xf32>
    %419 = math.tanh %418 : vector<8x128xf32>
    %cst_118 = arith.constant 5.000000e-01 : f32
    %420 = vector.broadcast %cst_118 : f32 to vector<8x128xf32>
    %421 = arith.mulf %420, %419 : vector<8x128xf32>
    %cst_119 = arith.constant 5.000000e-01 : f32
    %422 = vector.broadcast %cst_119 : f32 to vector<8x128xf32>
    %423 = arith.addf %421, %422 : vector<8x128xf32>
    %424 = vector.extract_strided_slice %402 {offsets = [0, 256], sizes = [8, 128], strides = [1, 1]} : vector<8x384xf32> to vector<8x128xf32>
    %425 = vector.extract_strided_slice %403 {offsets = [0, 256], sizes = [8, 128], strides = [1, 1]} : vector<8x384xf32> to vector<8x128xf32>
    %426 = arith.mulf %413, %425 : vector<8x128xf32>
    %427 = arith.addf %424, %426 : vector<8x128xf32>
    %428 = math.tanh %427 : vector<8x128xf32>
    %cst_120 = arith.constant 1.000000e+00 : f32
    %429 = vector.broadcast %cst_120 : f32 to vector<8x128xf32>
    %430 = arith.subf %429, %423 : vector<8x128xf32>
    %431 = arith.subf %428, %363 : vector<8x128xf32>
    %432 = arith.mulf %430, %431 : vector<8x128xf32>
    %433 = arith.addf %363, %432 : vector<8x128xf32>
    %c48 = arith.constant 48 : index
    %c0_121 = arith.constant 0 : index
    %434 = vector.load %arg9[%c48, %c0_121] : memref<64x384xf32, #tpu.memory_space<vmem>>, vector<8x384xf32>
    %435 = tpu.concatenate %399, %433 in 1 : vector<8x128xf32>, vector<8x128xf32> -> vector<8x256xf32>
    %436 = arith.truncf %435 : vector<8x256xf32> to vector<8x256xbf16>
    %cst_122 = arith.constant dense<0.000000e+00> : vector<8x768xf32>
    %437 = tpu.matmul %436, %4, %cst_122 {dimension_numbers = #tpu.dot_dimension_numbers<[1], [0], [0], [1], [0, 0, 1, 1], [], []>} : vector<8x256xbf16>, vector<256x768xbf16>, vector<8x768xf32> -> vector<8x768xf32>
    %438 = arith.addf %437, %6 : vector<8x768xf32>
    %439 = vector.extract_strided_slice %438 {offsets = [0, 0], sizes = [8, 384], strides = [1, 1]} : vector<8x768xf32> to vector<8x384xf32>
    %440 = vector.extract_strided_slice %434 {offsets = [0, 0], sizes = [8, 128], strides = [1, 1]} : vector<8x384xf32> to vector<8x128xf32>
    %441 = vector.extract_strided_slice %439 {offsets = [0, 0], sizes = [8, 128], strides = [1, 1]} : vector<8x384xf32> to vector<8x128xf32>
    %442 = arith.addf %440, %441 : vector<8x128xf32>
    %cst_123 = arith.constant 5.000000e-01 : f32
    %443 = vector.broadcast %cst_123 : f32 to vector<8x128xf32>
    %444 = arith.mulf %443, %442 : vector<8x128xf32>
    %445 = math.tanh %444 : vector<8x128xf32>
    %cst_124 = arith.constant 5.000000e-01 : f32
    %446 = vector.broadcast %cst_124 : f32 to vector<8x128xf32>
    %447 = arith.mulf %446, %445 : vector<8x128xf32>
    %cst_125 = arith.constant 5.000000e-01 : f32
    %448 = vector.broadcast %cst_125 : f32 to vector<8x128xf32>
    %449 = arith.addf %447, %448 : vector<8x128xf32>
    %450 = vector.extract_strided_slice %434 {offsets = [0, 128], sizes = [8, 128], strides = [1, 1]} : vector<8x384xf32> to vector<8x128xf32>
    %451 = vector.extract_strided_slice %439 {offsets = [0, 128], sizes = [8, 128], strides = [1, 1]} : vector<8x384xf32> to vector<8x128xf32>
    %452 = arith.addf %450, %451 : vector<8x128xf32>
    %cst_126 = arith.constant 5.000000e-01 : f32
    %453 = vector.broadcast %cst_126 : f32 to vector<8x128xf32>
    %454 = arith.mulf %453, %452 : vector<8x128xf32>
    %455 = math.tanh %454 : vector<8x128xf32>
    %cst_127 = arith.constant 5.000000e-01 : f32
    %456 = vector.broadcast %cst_127 : f32 to vector<8x128xf32>
    %457 = arith.mulf %456, %455 : vector<8x128xf32>
    %cst_128 = arith.constant 5.000000e-01 : f32
    %458 = vector.broadcast %cst_128 : f32 to vector<8x128xf32>
    %459 = arith.addf %457, %458 : vector<8x128xf32>
    %460 = vector.extract_strided_slice %434 {offsets = [0, 256], sizes = [8, 128], strides = [1, 1]} : vector<8x384xf32> to vector<8x128xf32>
    %461 = vector.extract_strided_slice %439 {offsets = [0, 256], sizes = [8, 128], strides = [1, 1]} : vector<8x384xf32> to vector<8x128xf32>
    %462 = arith.mulf %449, %461 : vector<8x128xf32>
    %463 = arith.addf %460, %462 : vector<8x128xf32>
    %464 = math.tanh %463 : vector<8x128xf32>
    %cst_129 = arith.constant 1.000000e+00 : f32
    %465 = vector.broadcast %cst_129 : f32 to vector<8x128xf32>
    %466 = arith.subf %465, %459 : vector<8x128xf32>
    %467 = arith.subf %464, %399 : vector<8x128xf32>
    %468 = arith.mulf %466, %467 : vector<8x128xf32>
    %469 = arith.addf %399, %468 : vector<8x128xf32>
    %470 = arith.truncf %469 : vector<8x128xf32> to vector<8x128xbf16>
    %cst_130 = arith.constant dense<0.000000e+00> : vector<8x384xf32>
    %471 = tpu.matmul %470, %5, %cst_130 {dimension_numbers = #tpu.dot_dimension_numbers<[1], [0], [0], [1], [0, 0, 1, 1], [], []>} : vector<8x128xbf16>, vector<128x384xbf16>, vector<8x384xf32> -> vector<8x384xf32>
    %472 = arith.addf %471, %7 : vector<8x384xf32>
    %473 = vector.extract_strided_slice %438 {offsets = [0, 384], sizes = [8, 384], strides = [1, 1]} : vector<8x768xf32> to vector<8x384xf32>
    %474 = vector.extract_strided_slice %472 {offsets = [0, 0], sizes = [8, 128], strides = [1, 1]} : vector<8x384xf32> to vector<8x128xf32>
    %475 = vector.extract_strided_slice %473 {offsets = [0, 0], sizes = [8, 128], strides = [1, 1]} : vector<8x384xf32> to vector<8x128xf32>
    %476 = arith.addf %474, %475 : vector<8x128xf32>
    %cst_131 = arith.constant 5.000000e-01 : f32
    %477 = vector.broadcast %cst_131 : f32 to vector<8x128xf32>
    %478 = arith.mulf %477, %476 : vector<8x128xf32>
    %479 = math.tanh %478 : vector<8x128xf32>
    %cst_132 = arith.constant 5.000000e-01 : f32
    %480 = vector.broadcast %cst_132 : f32 to vector<8x128xf32>
    %481 = arith.mulf %480, %479 : vector<8x128xf32>
    %cst_133 = arith.constant 5.000000e-01 : f32
    %482 = vector.broadcast %cst_133 : f32 to vector<8x128xf32>
    %483 = arith.addf %481, %482 : vector<8x128xf32>
    %484 = vector.extract_strided_slice %472 {offsets = [0, 128], sizes = [8, 128], strides = [1, 1]} : vector<8x384xf32> to vector<8x128xf32>
    %485 = vector.extract_strided_slice %473 {offsets = [0, 128], sizes = [8, 128], strides = [1, 1]} : vector<8x384xf32> to vector<8x128xf32>
    %486 = arith.addf %484, %485 : vector<8x128xf32>
    %cst_134 = arith.constant 5.000000e-01 : f32
    %487 = vector.broadcast %cst_134 : f32 to vector<8x128xf32>
    %488 = arith.mulf %487, %486 : vector<8x128xf32>
    %489 = math.tanh %488 : vector<8x128xf32>
    %cst_135 = arith.constant 5.000000e-01 : f32
    %490 = vector.broadcast %cst_135 : f32 to vector<8x128xf32>
    %491 = arith.mulf %490, %489 : vector<8x128xf32>
    %cst_136 = arith.constant 5.000000e-01 : f32
    %492 = vector.broadcast %cst_136 : f32 to vector<8x128xf32>
    %493 = arith.addf %491, %492 : vector<8x128xf32>
    %494 = vector.extract_strided_slice %472 {offsets = [0, 256], sizes = [8, 128], strides = [1, 1]} : vector<8x384xf32> to vector<8x128xf32>
    %495 = vector.extract_strided_slice %473 {offsets = [0, 256], sizes = [8, 128], strides = [1, 1]} : vector<8x384xf32> to vector<8x128xf32>
    %496 = arith.mulf %483, %495 : vector<8x128xf32>
    %497 = arith.addf %494, %496 : vector<8x128xf32>
    %498 = math.tanh %497 : vector<8x128xf32>
    %cst_137 = arith.constant 1.000000e+00 : f32
    %499 = vector.broadcast %cst_137 : f32 to vector<8x128xf32>
    %500 = arith.subf %499, %493 : vector<8x128xf32>
    %501 = arith.subf %498, %433 : vector<8x128xf32>
    %502 = arith.mulf %500, %501 : vector<8x128xf32>
    %503 = arith.addf %433, %502 : vector<8x128xf32>
    %c56 = arith.constant 56 : index
    %c0_138 = arith.constant 0 : index
    %504 = vector.load %arg9[%c56, %c0_138] : memref<64x384xf32, #tpu.memory_space<vmem>>, vector<8x384xf32>
    %505 = tpu.concatenate %469, %503 in 1 : vector<8x128xf32>, vector<8x128xf32> -> vector<8x256xf32>
    %506 = arith.truncf %505 : vector<8x256xf32> to vector<8x256xbf16>
    %cst_139 = arith.constant dense<0.000000e+00> : vector<8x768xf32>
    %507 = tpu.matmul %506, %4, %cst_139 {dimension_numbers = #tpu.dot_dimension_numbers<[1], [0], [0], [1], [0, 0, 1, 1], [], []>} : vector<8x256xbf16>, vector<256x768xbf16>, vector<8x768xf32> -> vector<8x768xf32>
    %508 = arith.addf %507, %6 : vector<8x768xf32>
    %509 = vector.extract_strided_slice %508 {offsets = [0, 0], sizes = [8, 384], strides = [1, 1]} : vector<8x768xf32> to vector<8x384xf32>
    %510 = vector.extract_strided_slice %504 {offsets = [0, 0], sizes = [8, 128], strides = [1, 1]} : vector<8x384xf32> to vector<8x128xf32>
    %511 = vector.extract_strided_slice %509 {offsets = [0, 0], sizes = [8, 128], strides = [1, 1]} : vector<8x384xf32> to vector<8x128xf32>
    %512 = arith.addf %510, %511 : vector<8x128xf32>
    %cst_140 = arith.constant 5.000000e-01 : f32
    %513 = vector.broadcast %cst_140 : f32 to vector<8x128xf32>
    %514 = arith.mulf %513, %512 : vector<8x128xf32>
    %515 = math.tanh %514 : vector<8x128xf32>
    %cst_141 = arith.constant 5.000000e-01 : f32
    %516 = vector.broadcast %cst_141 : f32 to vector<8x128xf32>
    %517 = arith.mulf %516, %515 : vector<8x128xf32>
    %cst_142 = arith.constant 5.000000e-01 : f32
    %518 = vector.broadcast %cst_142 : f32 to vector<8x128xf32>
    %519 = arith.addf %517, %518 : vector<8x128xf32>
    %520 = vector.extract_strided_slice %504 {offsets = [0, 128], sizes = [8, 128], strides = [1, 1]} : vector<8x384xf32> to vector<8x128xf32>
    %521 = vector.extract_strided_slice %509 {offsets = [0, 128], sizes = [8, 128], strides = [1, 1]} : vector<8x384xf32> to vector<8x128xf32>
    %522 = arith.addf %520, %521 : vector<8x128xf32>
    %cst_143 = arith.constant 5.000000e-01 : f32
    %523 = vector.broadcast %cst_143 : f32 to vector<8x128xf32>
    %524 = arith.mulf %523, %522 : vector<8x128xf32>
    %525 = math.tanh %524 : vector<8x128xf32>
    %cst_144 = arith.constant 5.000000e-01 : f32
    %526 = vector.broadcast %cst_144 : f32 to vector<8x128xf32>
    %527 = arith.mulf %526, %525 : vector<8x128xf32>
    %cst_145 = arith.constant 5.000000e-01 : f32
    %528 = vector.broadcast %cst_145 : f32 to vector<8x128xf32>
    %529 = arith.addf %527, %528 : vector<8x128xf32>
    %530 = vector.extract_strided_slice %504 {offsets = [0, 256], sizes = [8, 128], strides = [1, 1]} : vector<8x384xf32> to vector<8x128xf32>
    %531 = vector.extract_strided_slice %509 {offsets = [0, 256], sizes = [8, 128], strides = [1, 1]} : vector<8x384xf32> to vector<8x128xf32>
    %532 = arith.mulf %519, %531 : vector<8x128xf32>
    %533 = arith.addf %530, %532 : vector<8x128xf32>
    %534 = math.tanh %533 : vector<8x128xf32>
    %cst_146 = arith.constant 1.000000e+00 : f32
    %535 = vector.broadcast %cst_146 : f32 to vector<8x128xf32>
    %536 = arith.subf %535, %529 : vector<8x128xf32>
    %537 = arith.subf %534, %469 : vector<8x128xf32>
    %538 = arith.mulf %536, %537 : vector<8x128xf32>
    %539 = arith.addf %469, %538 : vector<8x128xf32>
    %540 = arith.truncf %539 : vector<8x128xf32> to vector<8x128xbf16>
    %cst_147 = arith.constant dense<0.000000e+00> : vector<8x384xf32>
    %541 = tpu.matmul %540, %5, %cst_147 {dimension_numbers = #tpu.dot_dimension_numbers<[1], [0], [0], [1], [0, 0, 1, 1], [], []>} : vector<8x128xbf16>, vector<128x384xbf16>, vector<8x384xf32> -> vector<8x384xf32>
    %542 = arith.addf %541, %7 : vector<8x384xf32>
    %543 = vector.extract_strided_slice %508 {offsets = [0, 384], sizes = [8, 384], strides = [1, 1]} : vector<8x768xf32> to vector<8x384xf32>
    %544 = vector.extract_strided_slice %542 {offsets = [0, 0], sizes = [8, 128], strides = [1, 1]} : vector<8x384xf32> to vector<8x128xf32>
    %545 = vector.extract_strided_slice %543 {offsets = [0, 0], sizes = [8, 128], strides = [1, 1]} : vector<8x384xf32> to vector<8x128xf32>
    %546 = arith.addf %544, %545 : vector<8x128xf32>
    %cst_148 = arith.constant 5.000000e-01 : f32
    %547 = vector.broadcast %cst_148 : f32 to vector<8x128xf32>
    %548 = arith.mulf %547, %546 : vector<8x128xf32>
    %549 = math.tanh %548 : vector<8x128xf32>
    %cst_149 = arith.constant 5.000000e-01 : f32
    %550 = vector.broadcast %cst_149 : f32 to vector<8x128xf32>
    %551 = arith.mulf %550, %549 : vector<8x128xf32>
    %cst_150 = arith.constant 5.000000e-01 : f32
    %552 = vector.broadcast %cst_150 : f32 to vector<8x128xf32>
    %553 = arith.addf %551, %552 : vector<8x128xf32>
    %554 = vector.extract_strided_slice %542 {offsets = [0, 128], sizes = [8, 128], strides = [1, 1]} : vector<8x384xf32> to vector<8x128xf32>
    %555 = vector.extract_strided_slice %543 {offsets = [0, 128], sizes = [8, 128], strides = [1, 1]} : vector<8x384xf32> to vector<8x128xf32>
    %556 = arith.addf %554, %555 : vector<8x128xf32>
    %cst_151 = arith.constant 5.000000e-01 : f32
    %557 = vector.broadcast %cst_151 : f32 to vector<8x128xf32>
    %558 = arith.mulf %557, %556 : vector<8x128xf32>
    %559 = math.tanh %558 : vector<8x128xf32>
    %cst_152 = arith.constant 5.000000e-01 : f32
    %560 = vector.broadcast %cst_152 : f32 to vector<8x128xf32>
    %561 = arith.mulf %560, %559 : vector<8x128xf32>
    %cst_153 = arith.constant 5.000000e-01 : f32
    %562 = vector.broadcast %cst_153 : f32 to vector<8x128xf32>
    %563 = arith.addf %561, %562 : vector<8x128xf32>
    %564 = vector.extract_strided_slice %542 {offsets = [0, 256], sizes = [8, 128], strides = [1, 1]} : vector<8x384xf32> to vector<8x128xf32>
    %565 = vector.extract_strided_slice %543 {offsets = [0, 256], sizes = [8, 128], strides = [1, 1]} : vector<8x384xf32> to vector<8x128xf32>
    %566 = arith.mulf %553, %565 : vector<8x128xf32>
    %567 = arith.addf %564, %566 : vector<8x128xf32>
    %568 = math.tanh %567 : vector<8x128xf32>
    %cst_154 = arith.constant 1.000000e+00 : f32
    %569 = vector.broadcast %cst_154 : f32 to vector<8x128xf32>
    %570 = arith.subf %569, %563 : vector<8x128xf32>
    %571 = arith.subf %568, %503 : vector<8x128xf32>
    %572 = arith.mulf %570, %571 : vector<8x128xf32>
    %573 = arith.addf %503, %572 : vector<8x128xf32>
    %c0_155 = arith.constant 0 : index
    %c0_156 = arith.constant 0 : index
    %574 = vector.load %arg1[%c0_155, %c0_156] : memref<8x16xbf16, #tpu.memory_space<vmem>>, vector<8x16xbf16>
    %c0_157 = arith.constant 0 : index
    %c0_158 = arith.constant 0 : index
    %c0_159 = arith.constant 0 : index
    %575 = vector.load %arg5[%c0_157, %c0_158, %c0_159] : memref<3x16x16xbf16, #tpu.memory_space<vmem>>, vector<1x16x16xbf16>
    %576 = vector.shape_cast %575 : vector<1x16x16xbf16> to vector<16x16xbf16>
    %cst_160 = arith.constant dense<0.000000e+00> : vector<8x16xf32>
    %577 = tpu.matmul %574, %576, %cst_160 {dimension_numbers = #tpu.dot_dimension_numbers<[1], [0], [0], [1], [0, 0, 1, 1], [], []>} : vector<8x16xbf16>, vector<16x16xbf16>, vector<8x16xf32> -> vector<8x16xf32>
    %578 = arith.addf %577, %9 : vector<8x16xf32>
    %cst_161 = arith.constant 0.00999999977 : f32
    %579 = vector.broadcast %cst_161 : f32 to vector<8x16xf32>
    %580 = arith.mulf %579, %578 : vector<8x16xf32>
    %581 = arith.maximumf %578, %580 : vector<8x16xf32>
    %582 = arith.truncf %581 : vector<8x16xf32> to vector<8x16xbf16>
    %c1 = arith.constant 1 : index
    %c0_162 = arith.constant 0 : index
    %c0_163 = arith.constant 0 : index
    %583 = vector.load %arg5[%c1, %c0_162, %c0_163] : memref<3x16x16xbf16, #tpu.memory_space<vmem>>, vector<1x16x16xbf16>
    %584 = vector.shape_cast %583 : vector<1x16x16xbf16> to vector<16x16xbf16>
    %cst_164 = arith.constant dense<0.000000e+00> : vector<8x16xf32>
    %585 = tpu.matmul %582, %584, %cst_164 {dimension_numbers = #tpu.dot_dimension_numbers<[1], [0], [0], [1], [0, 0, 1, 1], [], []>} : vector<8x16xbf16>, vector<16x16xbf16>, vector<8x16xf32> -> vector<8x16xf32>
    %586 = arith.addf %585, %581 : vector<8x16xf32>
    %587 = arith.addf %586, %10 : vector<8x16xf32>
    %cst_165 = arith.constant 0.00999999977 : f32
    %588 = vector.broadcast %cst_165 : f32 to vector<8x16xf32>
    %589 = arith.mulf %588, %587 : vector<8x16xf32>
    %590 = arith.maximumf %587, %589 : vector<8x16xf32>
    %591 = arith.truncf %590 : vector<8x16xf32> to vector<8x16xbf16>
    %c2 = arith.constant 2 : index
    %c0_166 = arith.constant 0 : index
    %c0_167 = arith.constant 0 : index
    %592 = vector.load %arg5[%c2, %c0_166, %c0_167] : memref<3x16x16xbf16, #tpu.memory_space<vmem>>, vector<1x16x16xbf16>
    %593 = vector.shape_cast %592 : vector<1x16x16xbf16> to vector<16x16xbf16>
    %cst_168 = arith.constant dense<0.000000e+00> : vector<8x16xf32>
    %594 = tpu.matmul %591, %593, %cst_168 {dimension_numbers = #tpu.dot_dimension_numbers<[1], [0], [0], [1], [0, 0, 1, 1], [], []>} : vector<8x16xbf16>, vector<16x16xbf16>, vector<8x16xf32> -> vector<8x16xf32>
    %595 = arith.addf %594, %590 : vector<8x16xf32>
    %596 = arith.addf %595, %11 : vector<8x16xf32>
    %cst_169 = arith.constant 0.00999999977 : f32
    %597 = vector.broadcast %cst_169 : f32 to vector<8x16xf32>
    %598 = arith.mulf %597, %596 : vector<8x16xf32>
    %599 = arith.maximumf %596, %598 : vector<8x16xf32>
    %600 = arith.truncf %573 : vector<8x128xf32> to vector<8x128xbf16>
    %c0_170 = arith.constant 0 : index
    %c0_171 = arith.constant 0 : index
    %601 = vector.load %arg6[%c0_170, %c0_171] : memref<144x128xbf16, #tpu.memory_space<vmem>>, vector<128x128xbf16>
    %cst_172 = arith.constant dense<0.000000e+00> : vector<8x128xf32>
    %602 = tpu.matmul %600, %601, %cst_172 {dimension_numbers = #tpu.dot_dimension_numbers<[1], [0], [0], [1], [0, 0, 1, 1], [], []>} : vector<8x128xbf16>, vector<128x128xbf16>, vector<8x128xf32> -> vector<8x128xf32>
    %603 = arith.truncf %599 : vector<8x16xf32> to vector<8x16xbf16>
    %c128 = arith.constant 128 : index
    %c0_173 = arith.constant 0 : index
    %604 = vector.load %arg6[%c128, %c0_173] : memref<144x128xbf16, #tpu.memory_space<vmem>>, vector<16x128xbf16>
    %cst_174 = arith.constant dense<0.000000e+00> : vector<8x128xf32>
    %605 = tpu.matmul %603, %604, %cst_174 {dimension_numbers = #tpu.dot_dimension_numbers<[1], [0], [0], [1], [0, 0, 1, 1], [], []>} : vector<8x16xbf16>, vector<16x128xbf16>, vector<8x128xf32> -> vector<8x128xf32>
    %606 = arith.addf %602, %605 : vector<8x128xf32>
    %607 = arith.addf %606, %8 : vector<8x128xf32>
    %c0_175 = arith.constant 0 : index
    %c0_176 = arith.constant 0 : index
    %608 = vector.load %arg8[%c0_175, %c0_176] : memref<8x128xf32, #tpu.memory_space<vmem>>, vector<8x128xf32>
    tpu.vector_store %arg8[%c0_175, %c0_176], %607 {strides = array<i32>} : memref<8x128xf32, #tpu.memory_space<vmem>>, vector<8x128xf32>,
    return
  }
}

</mosaic_0001>

<llo_original>
// kernel: gru_dnn_forward.1
$region0: #{gru_dnn_forward.1}
  #allocation0 [shape = 'u32[]', space=smem, size = 0x4, offset = 0x4, fixed_abs, tag = 'smem constant byte address 0x4 - core index']
  #allocation1 [shape = 'u32[72,128]{1,0:T(1,128)}', space=vmem, size = 0x9000, scoped, tag = 'internal scratch']
  #allocation2 [shape = 'f32[64,384]{1,0:T(8,128)}', space=vmem, size = 0x18000, scoped, tag = 'scratch operand']
  %s0 = inlined_call_operand.vmem [shape: bf16[64,16], index: 0, kind: input, shape index: {}]
  %s1 = inlined_call_operand.vmem [shape: bf16[8,16], index: 1, kind: input, shape index: {}]
  %s2 = inlined_call_operand.vmem [shape: bf16[16,384], index: 2, kind: input, shape index: {}]
  %s3 = inlined_call_operand.vmem [shape: bf16[256,768], index: 3, kind: input, shape index: {}]
  %s4 = inlined_call_operand.vmem [shape: bf16[128,384], index: 4, kind: input, shape index: {}]
  %s5 = inlined_call_operand.vmem [shape: bf16[3,16,16], index: 5, kind: input, shape index: {}]
  %s6 = inlined_call_operand.vmem [shape: bf16[144,128], index: 6, kind: input, shape index: {}]
  %s7 = inlined_call_operand.vmem [shape: f32[8,1328], index: 7, kind: input, shape index: {}]
  %s8 = inlined_call_operand.vmem [shape: f32[8,128], index: 8, kind: output, shape index: {}]
  %s9 = sld [smem:[#allocation0]]
  $region42: #{gru_dnn_forward.1} parent=0
    _
  %s11 = ssub.s32 1, %s9
  %s12 = scalar_select 0, %s11, %s9
  // Predicated region
  $region2: #{gru_dnn_forward.1} parent=0 // pred_check
    _
  $region3: #{gru_dnn_forward.1} parent=0 // pred_check_branch
    %14 = sbr.rel (0) target = $region5
  $region4: #{gru_dnn_forward.1} parent=0 // pred_region
    _
  $region5: #{gru_dnn_forward.1} parent=0 // pred_fallthru
    _
  // Predicated region
  $region6: #{gru_dnn_forward.1} parent=0 // pred_check
    _
  $region7: #{gru_dnn_forward.1} parent=0 // pred_check_branch
    %16 = sbr.rel (0) target = $region9
  $region8: #{gru_dnn_forward.1} parent=0 // pred_region
    _
  $region9: #{gru_dnn_forward.1} parent=0 // pred_fallthru
    _
  // Predicated region
  $region10: #{gru_dnn_forward.1} parent=0 // pred_check
    _
  $region11: #{gru_dnn_forward.1} parent=0 // pred_check_branch
    %18 = sbr.rel (0) target = $region13
  $region12: #{gru_dnn_forward.1} parent=0 // pred_region
    _
  $region13: #{gru_dnn_forward.1} parent=0 // pred_fallthru
    _
  // Predicated region
  $region14: #{gru_dnn_forward.1} parent=0 // pred_check
    _
  $region15: #{gru_dnn_forward.1} parent=0 // pred_check_branch
    %20 = sbr.rel (0) target = $region17
  $region16: #{gru_dnn_forward.1} parent=0 // pred_region
    _
  $region17: #{gru_dnn_forward.1} parent=0 // pred_fallthru
    _
  // Predicated region
  $region18: #{gru_dnn_forward.1} parent=0 // pred_check
    _
  $region19: #{gru_dnn_forward.1} parent=0 // pred_check_branch
    %22 = sbr.rel (0) target = $region21
  $region20: #{gru_dnn_forward.1} parent=0 // pred_region
    _
  $region21: #{gru_dnn_forward.1} parent=0 // pred_fallthru
    _
  // Predicated region
  $region22: #{gru_dnn_forward.1} parent=0 // pred_check
    _
  $region23: #{gru_dnn_forward.1} parent=0 // pred_check_branch
    %24 = sbr.rel (0) target = $region25
  $region24: #{gru_dnn_forward.1} parent=0 // pred_region
    _
  $region25: #{gru_dnn_forward.1} parent=0 // pred_fallthru
    _
  // Predicated region
  $region26: #{gru_dnn_forward.1} parent=0 // pred_check
    _
  $region27: #{gru_dnn_forward.1} parent=0 // pred_check_branch
    %26 = sbr.rel (0) target = $region29
  $region28: #{gru_dnn_forward.1} parent=0 // pred_region
    _
  $region29: #{gru_dnn_forward.1} parent=0 // pred_fallthru
    _
  // Predicated region
  $region30: #{gru_dnn_forward.1} parent=0 // pred_check
    _
  $region31: #{gru_dnn_forward.1} parent=0 // pred_check_branch
    %28 = sbr.rel (0) target = $region33
  $region32: #{gru_dnn_forward.1} parent=0 // pred_region
    _
  $region33: #{gru_dnn_forward.1} parent=0 // pred_fallthru
    _
  %v30 = vld [vmem:[%s0] sm:$0xf]
  %v31 = vld [vmem:[%s0 + $0x4] sm:$0xf]
  %v32 = vld [vmem:[%s0 + $0x8] sm:$0xf]
  %v33 = vld [vmem:[%s0 + $0xc] sm:$0xf]
  %v34 = vld [vmem:[%s0 + $0x10] sm:$0xf]
  %v35 = vld [vmem:[%s0 + $0x14] sm:$0xf]
  %v36 = vld [vmem:[%s0 + $0x18] sm:$0xf]
  %v37 = vld [vmem:[%s0 + $0x1c] sm:$0xf]
  %v38 = vld [vmem:[%s2] sm:$0xff]
  %v39 = vld [vmem:[%s2 + $0x8] sm:$0xf]
  %v40 = vld [vmem:[%s2 + $0xc] sm:$0xff]
  %v41 = vld [vmem:[%s2 + $0x14] sm:$0xf]
  %v50 = vunpack.c.l.b16 %v30
  %v51 = vunpack.c.l.b16 %v31
  %v52 = vunpack.c.l.b16 %v32
  %v53 = vunpack.c.l.b16 %v33
  %v54 = vunpack.c.l.b16 %v34
  %v55 = vunpack.c.l.b16 %v35
  %v56 = vunpack.c.l.b16 %v36
  %v57 = vunpack.c.l.b16 %v37
  %v58 = vpack.c.b16 %v51, %v50
  %v59 = vpack.c.b16 %v53, %v52
  %v60 = vpack.c.b16 %v55, %v54
  %v61 = vpack.c.b16 %v57, %v56
  %v66 = vunpack.c.l.b16 %v38
  %v67 = vunpack.c.h.b16 %v38
  %v68 = vunpack.c.l.b16 %v39
  %v69 = vunpack.c.l.b16 %v40
  %v70 = vunpack.c.h.b16 %v40
  %v71 = vunpack.c.l.b16 %v41
  %v72 = vpack.c.b16 %v69, %v66
  %v73 = vpack.c.b16 %v70, %v67
  %v74 = vpack.c.b16 %v71, %v68
  %vm78 = vcmask 130048
  %v80 = vsel %vm78, %v58, 0
  %v83 = vsel %vm78, %v59, 0
  %v86 = vsel %vm78, %v60, 0
  %v89 = vsel %vm78, %v61, 0
  %91 = vmatpush.bf16.msra.mxu0 0
  %92 = vmatpush.bf16.msra.mxu0 0
  %93 = vmatpush.bf16.msra.mxu0 0
  %94 = vmatpush.bf16.msra.mxu0 0
  %95 = vmatpush.bf16.msra.mxu0 0
  %96 = vmatpush.bf16.msra.mxu0 0
  %97 = vmatpush.bf16.msra.mxu0 0
  %98 = vmatpush.bf16.msra.mxu0 %v72
  %99 = vmatmul.bf16.gmra.mxu0 %v80
  %v100 = vpop.f32.mrf.mxu0
  %v101 = vadd.f32 0.0, %v100
  %v102 = vpop.f32.mrf.mxu0
  %v103 = vadd.f32 0.0, %v102
  %104 = vmatmul.bf16.gmra.mxu0 %v83
  %v105 = vpop.f32.mrf.mxu0
  %v106 = vadd.f32 0.0, %v105
  %v107 = vpop.f32.mrf.mxu0
  %v108 = vadd.f32 0.0, %v107
  %109 = vmatmul.bf16.gmra.mxu0 %v86
  %v110 = vpop.f32.mrf.mxu0
  %v111 = vadd.f32 0.0, %v110
  %v112 = vpop.f32.mrf.mxu0
  %v113 = vadd.f32 0.0, %v112
  %114 = vmatmul.bf16.gmra.mxu0 %v89
  %v115 = vpop.f32.mrf.mxu0
  %v116 = vadd.f32 0.0, %v115
  %v117 = vpop.f32.mrf.mxu0
  %v118 = vadd.f32 0.0, %v117
  %119 = vdwg.mxu0
  %120 = vmatpush.bf16.msra.mxu0 0
  %121 = vmatpush.bf16.msra.mxu0 0
  %122 = vmatpush.bf16.msra.mxu0 0
  %123 = vmatpush.bf16.msra.mxu0 0
  %124 = vmatpush.bf16.msra.mxu0 0
  %125 = vmatpush.bf16.msra.mxu0 0
  %126 = vmatpush.bf16.msra.mxu0 0
  %127 = vmatpush.bf16.msra.mxu0 %v73
  %128 = vmatmul.bf16.gmra.mxu0 %v80
  %v129 = vpop.f32.mrf.mxu0
  %v130 = vadd.f32 0.0, %v129
  %v131 = vpop.f32.mrf.mxu0
  %v132 = vadd.f32 0.0, %v131
  %133 = vmatmul.bf16.gmra.mxu0 %v83
  %v134 = vpop.f32.mrf.mxu0
  %v135 = vadd.f32 0.0, %v134
  %v136 = vpop.f32.mrf.mxu0
  %v137 = vadd.f32 0.0, %v136
  %138 = vmatmul.bf16.gmra.mxu0 %v86
  %v139 = vpop.f32.mrf.mxu0
  %v140 = vadd.f32 0.0, %v139
  %v141 = vpop.f32.mrf.mxu0
  %v142 = vadd.f32 0.0, %v141
  %143 = vmatmul.bf16.gmra.mxu0 %v89
  %v144 = vpop.f32.mrf.mxu0
  %v145 = vadd.f32 0.0, %v144
  %v146 = vpop.f32.mrf.mxu0
  %v147 = vadd.f32 0.0, %v146
  %148 = vdwg.mxu0
  %149 = vmatpush.bf16.msra.mxu0 0
  %150 = vmatpush.bf16.msra.mxu0 0
  %151 = vmatpush.bf16.msra.mxu0 0
  %152 = vmatpush.bf16.msra.mxu0 0
  %153 = vmatpush.bf16.msra.mxu0 0
  %154 = vmatpush.bf16.msra.mxu0 0
  %155 = vmatpush.bf16.msra.mxu0 0
  %156 = vmatpush.bf16.msra.mxu0 %v74
  %157 = vmatmul.bf16.gmra.mxu0 %v80
  %v158 = vpop.f32.mrf.mxu0
  %v159 = vadd.f32 0.0, %v158
  %v160 = vpop.f32.mrf.mxu0
  %v161 = vadd.f32 0.0, %v160
  %162 = vmatmul.bf16.gmra.mxu0 %v83
  %v163 = vpop.f32.mrf.mxu0
  %v164 = vadd.f32 0.0, %v163
  %v165 = vpop.f32.mrf.mxu0
  %v166 = vadd.f32 0.0, %v165
  %167 = vmatmul.bf16.gmra.mxu0 %v86
  %v168 = vpop.f32.mrf.mxu0
  %v169 = vadd.f32 0.0, %v168
  %v170 = vpop.f32.mrf.mxu0
  %v171 = vadd.f32 0.0, %v170
  %172 = vmatmul.bf16.gmra.mxu0 %v89
  %v173 = vpop.f32.mrf.mxu0
  %v174 = vadd.f32 0.0, %v173
  %v175 = vpop.f32.mrf.mxu0
  %v176 = vadd.f32 0.0, %v175
  %177 = vdwg.mxu0
  %178 = vst [vmem:[#allocation2] sm:$0xff] %v101
  %179 = vst [vmem:[#allocation2 + $0x8] sm:$0xff] %v130
  %180 = vst [vmem:[#allocation2 + $0x10] sm:$0xff] %v159
  %181 = vst [vmem:[#allocation2 + $0x18] sm:$0xff] %v103
  %182 = vst [vmem:[#allocation2 + $0x20] sm:$0xff] %v132
  %183 = vst [vmem:[#allocation2 + $0x28] sm:$0xff] %v161
  %184 = vst [vmem:[#allocation2 + $0x30] sm:$0xff] %v106
  %185 = vst [vmem:[#allocation2 + $0x38] sm:$0xff] %v135
  %186 = vst [vmem:[#allocation2 + $0x40] sm:$0xff] %v164
  %187 = vst [vmem:[#allocation2 + $0x48] sm:$0xff] %v108
  %188 = vst [vmem:[#allocation2 + $0x50] sm:$0xff] %v137
  %189 = vst [vmem:[#allocation2 + $0x58] sm:$0xff] %v166
  %190 = vst [vmem:[#allocation2 + $0x60] sm:$0xff] %v111
  %191 = vst [vmem:[#allocation2 + $0x68] sm:$0xff] %v140
  %192 = vst [vmem:[#allocation2 + $0x70] sm:$0xff] %v169
  %193 = vst [vmem:[#allocation2 + $0x78] sm:$0xff] %v113
  %194 = vst [vmem:[#allocation2 + $0x80] sm:$0xff] %v142
  %195 = vst [vmem:[#allocation2 + $0x88] sm:$0xff] %v171
  %196 = vst [vmem:[#allocation2 + $0x90] sm:$0xff] %v116
  %197 = vst [vmem:[#allocation2 + $0x98] sm:$0xff] %v145
  %198 = vst [vmem:[#allocation2 + $0xa0] sm:$0xff] %v174
  %199 = vst [vmem:[#allocation2 + $0xa8] sm:$0xff] %v118
  %200 = vst [vmem:[#allocation2 + $0xb0] sm:$0xff] %v147
  %201 = vst [vmem:[#allocation2 + $0xb8] sm:$0xff] %v176
  %v202 = vld [vmem:[%s3] sm:$0xff]
  %v203 = vld [vmem:[%s3 + $0x8] sm:$0xff]
  %v204 = vld [vmem:[%s3 + $0x10] sm:$0xff]
  %v205 = vld [vmem:[%s3 + $0x18] sm:$0xff]
  %v206 = vld [vmem:[%s3 + $0x20] sm:$0xff]
  %v207 = vld [vmem:[%s3 + $0x28] sm:$0xff]
  %v208 = vld [vmem:[%s3 + $0x30] sm:$0xff]
  %v209 = vld [vmem:[%s3 + $0x38] sm:$0xff]
  %v210 = vld [vmem:[%s3 + $0x40] sm:$0xff]
  %v211 = vld [vmem:[%s3 + $0x48] sm:$0xff]
  %v212 = vld [vmem:[%s3 + $0x50] sm:$0xff]
  %v213 = vld [vmem:[%s3 + $0x58] sm:$0xff]
  %v214 = vld [vmem:[%s3 + $0x60] sm:$0xff]
  %v215 = vld [vmem:[%s3 + $0x68] sm:$0xff]
  %v216 = vld [vmem:[%s3 + $0x70] sm:$0xff]
  %v217 = vld [vmem:[%s3 + $0x78] sm:$0xff]
  %v218 = vld [vmem:[%s3 + $0x80] sm:$0xff]
  %v219 = vld [vmem:[%s3 + $0x88] sm:$0xff]
  %v220 = vld [vmem:[%s3 + $0x90] sm:$0xff]
  %v221 = vld [vmem:[%s3 + $0x98] sm:$0xff]
  %v222 = vld [vmem:[%s3 + $0xa0] sm:$0xff]
  %v223 = vld [vmem:[%s3 + $0xa8] sm:$0xff]
  %v224 = vld [vmem:[%s3 + $0xb0] sm:$0xff]
  %v225 = vld [vmem:[%s3 + $0xb8] sm:$0xff]
  %v226 = vld [vmem:[%s3 + $0xc0] sm:$0xff]
  %v227 = vld [vmem:[%s3 + $0xc8] sm:$0xff]
  %v228 = vld [vmem:[%s3 + $0xd0] sm:$0xff]
  %v229 = vld [vmem:[%s3 + $0xd8] sm:$0xff]
  %v230 = vld [vmem:[%s3 + $0xe0] sm:$0xff]
  %v231 = vld [vmem:[%s3 + $0xe8] sm:$0xff]
  %v232 = vld [vmem:[%s3 + $0xf0] sm:$0xff]
  %v233 = vld [vmem:[%s3 + $0xf8] sm:$0xff]
  %v234 = vld [vmem:[%s3 + $0x100] sm:$0xff]
  %v235 = vld [vmem:[%s3 + $0x108] sm:$0xff]
  %v236 = vld [vmem:[%s3 + $0x110] sm:$0xff]
  %v237 = vld [vmem:[%s3 + $0x118] sm:$0xff]
  %v238 = vld [vmem:[%s3 + $0x120] sm:$0xff]
  %v239 = vld [vmem:[%s3 + $0x128] sm:$0xff]
  %v240 = vld [vmem:[%s3 + $0x130] sm:$0xff]
  %v241 = vld [vmem:[%s3 + $0x138] sm:$0xff]
  %v242 = vld [vmem:[%s3 + $0x140] sm:$0xff]
  %v243 = vld [vmem:[%s3 + $0x148] sm:$0xff]
  %v244 = vld [vmem:[%s3 + $0x150] sm:$0xff]
  %v245 = vld [vmem:[%s3 + $0x158] sm:$0xff]
  %v246 = vld [vmem:[%s3 + $0x160] sm:$0xff]
  %v247 = vld [vmem:[%s3 + $0x168] sm:$0xff]
  %v248 = vld [vmem:[%s3 + $0x170] sm:$0xff]
  %v249 = vld [vmem:[%s3 + $0x178] sm:$0xff]
  %v250 = vld [vmem:[%s3 + $0x180] sm:$0xff]
  %v251 = vld [vmem:[%s3 + $0x188] sm:$0xff]
  %v252 = vld [vmem:[%s3 + $0x190] sm:$0xff]
  %v253 = vld [vmem:[%s3 + $0x198] sm:$0xff]
  %v254 = vld [vmem:[%s3 + $0x1a0] sm:$0xff]
  %v255 = vld [vmem:[%s3 + $0x1a8] sm:$0xff]
  %v256 = vld [vmem:[%s3 + $0x1b0] sm:$0xff]
  %v257 = vld [vmem:[%s3 + $0x1b8] sm:$0xff]
  %v258 = vld [vmem:[%s3 + $0x1c0] sm:$0xff]
  %v259 = vld [vmem:[%s3 + $0x1c8] sm:$0xff]
  %v260 = vld [vmem:[%s3 + $0x1d0] sm:$0xff]
  %v261 = vld [vmem:[%s3 + $0x1d8] sm:$0xff]
  %v262 = vld [vmem:[%s3 + $0x1e0] sm:$0xff]
  %v263 = vld [vmem:[%s3 + $0x1e8] sm:$0xff]
  %v264 = vld [vmem:[%s3 + $0x1f0] sm:$0xff]
  %v265 = vld [vmem:[%s3 + $0x1f8] sm:$0xff]
  %v266 = vld [vmem:[%s3 + $0x200] sm:$0xff]
  %v267 = vld [vmem:[%s3 + $0x208] sm:$0xff]
  %v268 = vld [vmem:[%s3 + $0x210] sm:$0xff]
  %v269 = vld [vmem:[%s3 + $0x218] sm:$0xff]
  %v270 = vld [vmem:[%s3 + $0x220] sm:$0xff]
  %v271 = vld [vmem:[%s3 + $0x228] sm:$0xff]
  %v272 = vld [vmem:[%s3 + $0x230] sm:$0xff]
  %v273 = vld [vmem:[%s3 + $0x238] sm:$0xff]
  %v274 = vld [vmem:[%s3 + $0x240] sm:$0xff]
  %v275 = vld [vmem:[%s3 + $0x248] sm:$0xff]
  %v276 = vld [vmem:[%s3 + $0x250] sm:$0xff]
  %v277 = vld [vmem:[%s3 + $0x258] sm:$0xff]
  %v278 = vld [vmem:[%s3 + $0x260] sm:$0xff]
  %v279 = vld [vmem:[%s3 + $0x268] sm:$0xff]
  %v280 = vld [vmem:[%s3 + $0x270] sm:$0xff]
  %v281 = vld [vmem:[%s3 + $0x278] sm:$0xff]
  %v282 = vld [vmem:[%s3 + $0x280] sm:$0xff]
  %v283 = vld [vmem:[%s3 + $0x288] sm:$0xff]
  %v284 = vld [vmem:[%s3 + $0x290] sm:$0xff]
  %v285 = vld [vmem:[%s3 + $0x298] sm:$0xff]
  %v286 = vld [vmem:[%s3 + $0x2a0] sm:$0xff]
  %v287 = vld [vmem:[%s3 + $0x2a8] sm:$0xff]
  %v288 = vld [vmem:[%s3 + $0x2b0] sm:$0xff]
  %v289 = vld [vmem:[%s3 + $0x2b8] sm:$0xff]
  %v290 = vld [vmem:[%s3 + $0x2c0] sm:$0xff]
  %v291 = vld [vmem:[%s3 + $0x2c8] sm:$0xff]
  %v292 = vld [vmem:[%s3 + $0x2d0] sm:$0xff]
  %v293 = vld [vmem:[%s3 + $0x2d8] sm:$0xff]
  %v294 = vld [vmem:[%s3 + $0x2e0] sm:$0xff]
  %v295 = vld [vmem:[%s3 + $0x2e8] sm:$0xff]
  %v296 = vld [vmem:[%s3 + $0x2f0] sm:$0xff]
  %v297 = vld [vmem:[%s3 + $0x2f8] sm:$0xff]
  %v298 = vld [vmem:[%s4] sm:$0xff]
  %v299 = vld [vmem:[%s4 + $0x8] sm:$0xf]
  %v300 = vld [vmem:[%s4 + $0xc] sm:$0xff]
  %v301 = vld [vmem:[%s4 + $0x14] sm:$0xf]
  %v302 = vld [vmem:[%s4 + $0x18] sm:$0xff]
  %v303 = vld [vmem:[%s4 + $0x20] sm:$0xf]
  %v304 = vld [vmem:[%s4 + $0x24] sm:$0xff]
  %v305 = vld [vmem:[%s4 + $0x2c] sm:$0xf]
  %v306 = vld [vmem:[%s4 + $0x30] sm:$0xff]
  %v307 = vld [vmem:[%s4 + $0x38] sm:$0xf]
  %v308 = vld [vmem:[%s4 + $0x3c] sm:$0xff]
  %v309 = vld [vmem:[%s4 + $0x44] sm:$0xf]
  %v310 = vld [vmem:[%s4 + $0x48] sm:$0xff]
  %v311 = vld [vmem:[%s4 + $0x50] sm:$0xf]
  %v312 = vld [vmem:[%s4 + $0x54] sm:$0xff]
  %v313 = vld [vmem:[%s4 + $0x5c] sm:$0xf]
  %v314 = vld [vmem:[%s4 + $0x60] sm:$0xff]
  %v315 = vld [vmem:[%s4 + $0x68] sm:$0xf]
  %v316 = vld [vmem:[%s4 + $0x6c] sm:$0xff]
  %v317 = vld [vmem:[%s4 + $0x74] sm:$0xf]
  %v318 = vld [vmem:[%s4 + $0x78] sm:$0xff]
  %v319 = vld [vmem:[%s4 + $0x80] sm:$0xf]
  %v320 = vld [vmem:[%s4 + $0x84] sm:$0xff]
  %v321 = vld [vmem:[%s4 + $0x8c] sm:$0xf]
  %v322 = vld [vmem:[%s4 + $0x90] sm:$0xff]
  %v323 = vld [vmem:[%s4 + $0x98] sm:$0xf]
  %v324 = vld [vmem:[%s4 + $0x9c] sm:$0xff]
  %v325 = vld [vmem:[%s4 + $0xa4] sm:$0xf]
  %v326 = vld [vmem:[%s4 + $0xa8] sm:$0xff]
  %v327 = vld [vmem:[%s4 + $0xb0] sm:$0xf]
  %v328 = vld [vmem:[%s4 + $0xb4] sm:$0xff]
  %v329 = vld [vmem:[%s4 + $0xbc] sm:$0xf]
  %v330 = vld [vmem:[%s7] sm:$0xff]
  %v331 = vld [vmem:[%s7 + $0x8] sm:$0xff]
  %v332 = vld [vmem:[%s7 + $0x10] sm:$0xff]
  %v333 = vld [vmem:[%s7 + $0x18] sm:$0xff]
  %v334 = vld [vmem:[%s7 + $0x20] sm:$0xff]
  %v335 = vld [vmem:[%s7 + $0x28] sm:$0xff]
  %v336 = vld [vmem:[%s7 + $0x30] sm:$0xff]
  %v337 = vld [vmem:[%s7 + $0x38] sm:$0xff]
  %v338 = vld [vmem:[%s7 + $0x40] sm:$0xff]
  %v339 = vld [vmem:[%s7 + $0x48] sm:$0xff]
  %v340 = vld [vmem:[%s7 + $0x50] sm:$0xff]
  %v341 = vld [vmem:[#allocation2] sm:$0xff]
  %v342 = vld [vmem:[#allocation2 + $0x8] sm:$0xff]
  %v343 = vld [vmem:[#allocation2 + $0x10] sm:$0xff]
  %v344 = vpack.c.bf16 0.0, 0.0
  %v441 = vunpack.c.l.b16 %v202
  %v442 = vunpack.c.h.b16 %v202
  %v443 = vunpack.c.l.b16 %v203
  %v444 = vunpack.c.h.b16 %v203
  %v445 = vunpack.c.l.b16 %v204
  %v446 = vunpack.c.h.b16 %v204
  %v447 = vunpack.c.l.b16 %v205
  %v448 = vunpack.c.h.b16 %v205
  %v449 = vunpack.c.l.b16 %v206
  %v450 = vunpack.c.h.b16 %v206
  %v451 = vunpack.c.l.b16 %v207
  %v452 = vunpack.c.h.b16 %v207
  %v453 = vunpack.c.l.b16 %v208
  %v454 = vunpack.c.h.b16 %v208
  %v455 = vunpack.c.l.b16 %v209
  %v456 = vunpack.c.h.b16 %v209
  %v457 = vunpack.c.l.b16 %v210
  %v458 = vunpack.c.h.b16 %v210
  %v459 = vunpack.c.l.b16 %v211
  %v460 = vunpack.c.h.b16 %v211
  %v461 = vunpack.c.l.b16 %v212
  %v462 = vunpack.c.h.b16 %v212
  %v463 = vunpack.c.l.b16 %v213
  %v464 = vunpack.c.h.b16 %v213
  %v465 = vunpack.c.l.b16 %v214
  %v466 = vunpack.c.h.b16 %v214
  %v467 = vunpack.c.l.b16 %v215
  %v468 = vunpack.c.h.b16 %v215
  %v469 = vunpack.c.l.b16 %v216
  %v470 = vunpack.c.h.b16 %v216
  %v471 = vunpack.c.l.b16 %v217
  %v472 = vunpack.c.h.b16 %v217
  %v473 = vunpack.c.l.b16 %v218
  %v474 = vunpack.c.h.b16 %v218
  %v475 = vunpack.c.l.b16 %v219
  %v476 = vunpack.c.h.b16 %v219
  %v477 = vunpack.c.l.b16 %v220
  %v478 = vunpack.c.h.b16 %v220
  %v479 = vunpack.c.l.b16 %v221
  %v480 = vunpack.c.h.b16 %v221
  %v481 = vunpack.c.l.b16 %v222
  %v482 = vunpack.c.h.b16 %v222
  %v483 = vunpack.c.l.b16 %v223
  %v484 = vunpack.c.h.b16 %v223
  %v485 = vunpack.c.l.b16 %v224
  %v486 = vunpack.c.h.b16 %v224
  %v487 = vunpack.c.l.b16 %v225
  %v488 = vunpack.c.h.b16 %v225
  %v489 = vunpack.c.l.b16 %v226
  %v490 = vunpack.c.h.b16 %v226
  %v491 = vunpack.c.l.b16 %v227
  %v492 = vunpack.c.h.b16 %v227
  %v493 = vunpack.c.l.b16 %v228
  %v494 = vunpack.c.h.b16 %v228
  %v495 = vunpack.c.l.b16 %v229
  %v496 = vunpack.c.h.b16 %v229
  %v497 = vunpack.c.l.b16 %v230
  %v498 = vunpack.c.h.b16 %v230
  %v499 = vunpack.c.l.b16 %v231
  %v500 = vunpack.c.h.b16 %v231
  %v501 = vunpack.c.l.b16 %v232
  %v502 = vunpack.c.h.b16 %v232
  %v503 = vunpack.c.l.b16 %v233
  %v504 = vunpack.c.h.b16 %v233
  %v505 = vunpack.c.l.b16 %v234
  %v506 = vunpack.c.h.b16 %v234
  %v507 = vunpack.c.l.b16 %v235
  %v508 = vunpack.c.h.b16 %v235
  %v509 = vunpack.c.l.b16 %v236
  %v510 = vunpack.c.h.b16 %v236
  %v511 = vunpack.c.l.b16 %v237
  %v512 = vunpack.c.h.b16 %v237
  %v513 = vunpack.c.l.b16 %v238
  %v514 = vunpack.c.h.b16 %v238
  %v515 = vunpack.c.l.b16 %v239
  %v516 = vunpack.c.h.b16 %v239
  %v517 = vunpack.c.l.b16 %v240
  %v518 = vunpack.c.h.b16 %v240
  %v519 = vunpack.c.l.b16 %v241
  %v520 = vunpack.c.h.b16 %v241
  %v521 = vunpack.c.l.b16 %v242
  %v522 = vunpack.c.h.b16 %v242
  %v523 = vunpack.c.l.b16 %v243
  %v524 = vunpack.c.h.b16 %v243
  %v525 = vunpack.c.l.b16 %v244
  %v526 = vunpack.c.h.b16 %v244
  %v527 = vunpack.c.l.b16 %v245
  %v528 = vunpack.c.h.b16 %v245
  %v529 = vunpack.c.l.b16 %v246
  %v530 = vunpack.c.h.b16 %v246
  %v531 = vunpack.c.l.b16 %v247
  %v532 = vunpack.c.h.b16 %v247
  %v533 = vunpack.c.l.b16 %v248
  %v534 = vunpack.c.h.b16 %v248
  %v535 = vunpack.c.l.b16 %v249
  %v536 = vunpack.c.h.b16 %v249
  %v537 = vunpack.c.l.b16 %v250
  %v538 = vunpack.c.h.b16 %v250
  %v539 = vunpack.c.l.b16 %v251
  %v540 = vunpack.c.h.b16 %v251
  %v541 = vunpack.c.l.b16 %v252
  %v542 = vunpack.c.h.b16 %v252
  %v543 = vunpack.c.l.b16 %v253
  %v544 = vunpack.c.h.b16 %v253
  %v545 = vunpack.c.l.b16 %v254
  %v546 = vunpack.c.h.b16 %v254
  %v547 = vunpack.c.l.b16 %v255
  %v548 = vunpack.c.h.b16 %v255
  %v549 = vunpack.c.l.b16 %v256
  %v550 = vunpack.c.h.b16 %v256
  %v551 = vunpack.c.l.b16 %v257
  %v552 = vunpack.c.h.b16 %v257
  %v553 = vunpack.c.l.b16 %v258
  %v554 = vunpack.c.h.b16 %v258
  %v555 = vunpack.c.l.b16 %v259
  %v556 = vunpack.c.h.b16 %v259
  %v557 = vunpack.c.l.b16 %v260
  %v558 = vunpack.c.h.b16 %v260
  %v559 = vunpack.c.l.b16 %v261
  %v560 = vunpack.c.h.b16 %v261
  %v561 = vunpack.c.l.b16 %v262
  %v562 = vunpack.c.h.b16 %v262
  %v563 = vunpack.c.l.b16 %v263
  %v564 = vunpack.c.h.b16 %v263
  %v565 = vunpack.c.l.b16 %v264
  %v566 = vunpack.c.h.b16 %v264
  %v567 = vunpack.c.l.b16 %v265
  %v568 = vunpack.c.h.b16 %v265
  %v569 = vunpack.c.l.b16 %v266
  %v570 = vunpack.c.h.b16 %v266
  %v571 = vunpack.c.l.b16 %v267
  %v572 = vunpack.c.h.b16 %v267
  %v573 = vunpack.c.l.b16 %v268
  %v574 = vunpack.c.h.b16 %v268
  %v575 = vunpack.c.l.b16 %v269
  %v576 = vunpack.c.h.b16 %v269
  %v577 = vunpack.c.l.b16 %v270
  %v578 = vunpack.c.h.b16 %v270
  %v579 = vunpack.c.l.b16 %v271
  %v580 = vunpack.c.h.b16 %v271
  %v581 = vunpack.c.l.b16 %v272
  %v582 = vunpack.c.h.b16 %v272
  %v583 = vunpack.c.l.b16 %v273
  %v584 = vunpack.c.h.b16 %v273
  %v585 = vunpack.c.l.b16 %v274
  %v586 = vunpack.c.h.b16 %v274
  %v587 = vunpack.c.l.b16 %v275
  %v588 = vunpack.c.h.b16 %v275
  %v589 = vunpack.c.l.b16 %v276
  %v590 = vunpack.c.h.b16 %v276
  %v591 = vunpack.c.l.b16 %v277
  %v592 = vunpack.c.h.b16 %v277
  %v593 = vunpack.c.l.b16 %v278
  %v594 = vunpack.c.h.b16 %v278
  %v595 = vunpack.c.l.b16 %v279
  %v596 = vunpack.c.h.b16 %v279
  %v597 = vunpack.c.l.b16 %v280
  %v598 = vunpack.c.h.b16 %v280
  %v599 = vunpack.c.l.b16 %v281
  %v600 = vunpack.c.h.b16 %v281
  %v601 = vunpack.c.l.b16 %v282
  %v602 = vunpack.c.h.b16 %v282
  %v603 = vunpack.c.l.b16 %v283
  %v604 = vunpack.c.h.b16 %v283
  %v605 = vunpack.c.l.b16 %v284
  %v606 = vunpack.c.h.b16 %v284
  %v607 = vunpack.c.l.b16 %v285
  %v608 = vunpack.c.h.b16 %v285
  %v609 = vunpack.c.l.b16 %v286
  %v610 = vunpack.c.h.b16 %v286
  %v611 = vunpack.c.l.b16 %v287
  %v612 = vunpack.c.h.b16 %v287
  %v613 = vunpack.c.l.b16 %v288
  %v614 = vunpack.c.h.b16 %v288
  %v615 = vunpack.c.l.b16 %v289
  %v616 = vunpack.c.h.b16 %v289
  %v617 = vunpack.c.l.b16 %v290
  %v618 = vunpack.c.h.b16 %v290
  %v619 = vunpack.c.l.b16 %v291
  %v620 = vunpack.c.h.b16 %v291
  %v621 = vunpack.c.l.b16 %v292
  %v622 = vunpack.c.h.b16 %v292
  %v623 = vunpack.c.l.b16 %v293
  %v624 = vunpack.c.h.b16 %v293
  %v625 = vunpack.c.l.b16 %v294
  %v626 = vunpack.c.h.b16 %v294
  %v627 = vunpack.c.l.b16 %v295
  %v628 = vunpack.c.h.b16 %v295
  %v629 = vunpack.c.l.b16 %v296
  %v630 = vunpack.c.h.b16 %v296
  %v631 = vunpack.c.l.b16 %v297
  %v632 = vunpack.c.h.b16 %v297
  %v633 = vpack.c.b16 %v447, %v441
  %v634 = vpack.c.b16 %v448, %v442
  %v635 = vpack.c.b16 %v449, %v443
  %v636 = vpack.c.b16 %v450, %v444
  %v637 = vpack.c.b16 %v451, %v445
  %v638 = vpack.c.b16 %v452, %v446
  %v639 = vpack.c.b16 %v459, %v453
  %v640 = vpack.c.b16 %v460, %v454
  %v641 = vpack.c.b16 %v461, %v455
  %v642 = vpack.c.b16 %v462, %v456
  %v643 = vpack.c.b16 %v463, %v457
  %v644 = vpack.c.b16 %v464, %v458
  %v645 = vpack.c.b16 %v471, %v465
  %v646 = vpack.c.b16 %v472, %v466
  %v647 = vpack.c.b16 %v473, %v467
  %v648 = vpack.c.b16 %v474, %v468
  %v649 = vpack.c.b16 %v475, %v469
  %v650 = vpack.c.b16 %v476, %v470
  %v651 = vpack.c.b16 %v483, %v477
  %v652 = vpack.c.b16 %v484, %v478
  %v653 = vpack.c.b16 %v485, %v479
  %v654 = vpack.c.b16 %v486, %v480
  %v655 = vpack.c.b16 %v487, %v481
  %v656 = vpack.c.b16 %v488, %v482
  %v657 = vpack.c.b16 %v495, %v489
  %v658 = vpack.c.b16 %v496, %v490
  %v659 = vpack.c.b16 %v497, %v491
  %v660 = vpack.c.b16 %v498, %v492
  %v661 = vpack.c.b16 %v499, %v493
  %v662 = vpack.c.b16 %v500, %v494
  %v663 = vpack.c.b16 %v507, %v501
  %v664 = vpack.c.b16 %v508, %v502
  %v665 = vpack.c.b16 %v509, %v503
  %v666 = vpack.c.b16 %v510, %v504
  %v667 = vpack.c.b16 %v511, %v505
  %v668 = vpack.c.b16 %v512, %v506
  %v669 = vpack.c.b16 %v519, %v513
  %v670 = vpack.c.b16 %v520, %v514
  %v671 = vpack.c.b16 %v521, %v515
  %v672 = vpack.c.b16 %v522, %v516
  %v673 = vpack.c.b16 %v523, %v517
  %v674 = vpack.c.b16 %v524, %v518
  %v675 = vpack.c.b16 %v531, %v525
  %v676 = vpack.c.b16 %v532, %v526
  %v677 = vpack.c.b16 %v533, %v527
  %v678 = vpack.c.b16 %v534, %v528
  %v679 = vpack.c.b16 %v535, %v529
  %v680 = vpack.c.b16 %v536, %v530
  %v681 = vpack.c.b16 %v543, %v537
  %v682 = vpack.c.b16 %v544, %v538
  %v683 = vpack.c.b16 %v545, %v539
  %v684 = vpack.c.b16 %v546, %v540
  %v685 = vpack.c.b16 %v547, %v541
  %v686 = vpack.c.b16 %v548, %v542
  %v687 = vpack.c.b16 %v555, %v549
  %v688 = vpack.c.b16 %v556, %v550
  %v689 = vpack.c.b16 %v557, %v551
  %v690 = vpack.c.b16 %v558, %v552
  %v691 = vpack.c.b16 %v559, %v553
  %v692 = vpack.c.b16 %v560, %v554
  %v693 = vpack.c.b16 %v567, %v561
  %v694 = vpack.c.b16 %v568, %v562
  %v695 = vpack.c.b16 %v569, %v563
  %v696 = vpack.c.b16 %v570, %v564
  %v697 = vpack.c.b16 %v571, %v565
  %v698 = vpack.c.b16 %v572, %v566
  %v699 = vpack.c.b16 %v579, %v573
  %v700 = vpack.c.b16 %v580, %v574
  %v701 = vpack.c.b16 %v581, %v575
  %v702 = vpack.c.b16 %v582, %v576
  %v703 = vpack.c.b16 %v583, %v577
  %v704 = vpack.c.b16 %v584, %v578
  %v705 = vpack.c.b16 %v591, %v585
  %v706 = vpack.c.b16 %v592, %v586
  %v707 = vpack.c.b16 %v593, %v587
  %v708 = vpack.c.b16 %v594, %v588
  %v709 = vpack.c.b16 %v595, %v589
  %v710 = vpack.c.b16 %v596, %v590
  %v711 = vpack.c.b16 %v603, %v597
  %v712 = vpack.c.b16 %v604, %v598
  %v713 = vpack.c.b16 %v605, %v599
  %v714 = vpack.c.b16 %v606, %v600
  %v715 = vpack.c.b16 %v607, %v601
  %v716 = vpack.c.b16 %v608, %v602
  %v717 = vpack.c.b16 %v615, %v609
  %v718 = vpack.c.b16 %v616, %v610
  %v719 = vpack.c.b16 %v617, %v611
  %v720 = vpack.c.b16 %v618, %v612
  %v721 = vpack.c.b16 %v619, %v613
  %v722 = vpack.c.b16 %v620, %v614
  %v723 = vpack.c.b16 %v627, %v621
  %v724 = vpack.c.b16 %v628, %v622
  %v725 = vpack.c.b16 %v629, %v623
  %v726 = vpack.c.b16 %v630, %v624
  %v727 = vpack.c.b16 %v631, %v625
  %v728 = vpack.c.b16 %v632, %v626
  %825 = vmatpush.bf16.msra.mxu0 %v675
  %826 = vmatpush.bf16.msra.mxu0 %v669
  %827 = vmatpush.bf16.msra.mxu0 %v663
  %828 = vmatpush.bf16.msra.mxu0 %v657
  %829 = vmatpush.bf16.msra.mxu0 %v651
  %830 = vmatpush.bf16.msra.mxu0 %v645
  %831 = vmatpush.bf16.msra.mxu0 %v639
  %832 = vmatpush.bf16.msra.mxu0 %v633
  %833 = vmatmul.bf16.gmra.mxu0 %v344
  %v834 = vpop.f32.mrf.mxu0
  %v835 = vadd.f32 %v330, %v834
  %v836 = vpop.f32.mrf.mxu0
  %837 = vdwg.mxu0
  %838 = vmatpush.bf16.msra.mxu0 %v723
  %839 = vmatpush.bf16.msra.mxu0 %v717
  %840 = vmatpush.bf16.msra.mxu0 %v711
  %841 = vmatpush.bf16.msra.mxu0 %v705
  %842 = vmatpush.bf16.msra.mxu0 %v699
  %843 = vmatpush.bf16.msra.mxu0 %v693
  %844 = vmatpush.bf16.msra.mxu0 %v687
  %845 = vmatpush.bf16.msra.mxu0 %v681
  %846 = vmatmul.bf16.gmra.mxu0 %v344
  %v847 = vpop.f32.mrf.mxu0
  %v848 = vadd.f32 %v835, %v847
  %v849 = vpop.f32.mrf.mxu0
  %850 = vdwg.mxu0
  %851 = vmatpush.bf16.msra.mxu0 %v676
  %852 = vmatpush.bf16.msra.mxu0 %v670
  %853 = vmatpush.bf16.msra.mxu0 %v664
  %854 = vmatpush.bf16.msra.mxu0 %v658
  %855 = vmatpush.bf16.msra.mxu0 %v652
  %856 = vmatpush.bf16.msra.mxu0 %v646
  %857 = vmatpush.bf16.msra.mxu0 %v640
  %858 = vmatpush.bf16.msra.mxu0 %v634
  %859 = vmatmul.bf16.gmra.mxu0 %v344
  %v860 = vpop.f32.mrf.mxu0
  %v861 = vadd.f32 %v331, %v860
  %v862 = vpop.f32.mrf.mxu0
  %863 = vdwg.mxu0
  %864 = vmatpush.bf16.msra.mxu0 %v724
  %865 = vmatpush.bf16.msra.mxu0 %v718
  %866 = vmatpush.bf16.msra.mxu0 %v712
  %867 = vmatpush.bf16.msra.mxu0 %v706
  %868 = vmatpush.bf16.msra.mxu0 %v700
  %869 = vmatpush.bf16.msra.mxu0 %v694
  %870 = vmatpush.bf16.msra.mxu0 %v688
  %871 = vmatpush.bf16.msra.mxu0 %v682
  %872 = vmatmul.bf16.gmra.mxu0 %v344
  %v873 = vpop.f32.mrf.mxu0
  %v874 = vadd.f32 %v861, %v873
  %v875 = vpop.f32.mrf.mxu0
  %876 = vdwg.mxu0
  %877 = vmatpush.bf16.msra.mxu0 %v677
  %878 = vmatpush.bf16.msra.mxu0 %v671
  %879 = vmatpush.bf16.msra.mxu0 %v665
  %880 = vmatpush.bf16.msra.mxu0 %v659
  %881 = vmatpush.bf16.msra.mxu0 %v653
  %882 = vmatpush.bf16.msra.mxu0 %v647
  %883 = vmatpush.bf16.msra.mxu0 %v641
  %884 = vmatpush.bf16.msra.mxu0 %v635
  %885 = vmatmul.bf16.gmra.mxu0 %v344
  %v886 = vpop.f32.mrf.mxu0
  %v887 = vadd.f32 %v332, %v886
  %v888 = vpop.f32.mrf.mxu0
  %889 = vdwg.mxu0
  %890 = vmatpush.bf16.msra.mxu0 %v725
  %891 = vmatpush.bf16.msra.mxu0 %v719
  %892 = vmatpush.bf16.msra.mxu0 %v713
  %893 = vmatpush.bf16.msra.mxu0 %v707
  %894 = vmatpush.bf16.msra.mxu0 %v701
  %895 = vmatpush.bf16.msra.mxu0 %v695
  %896 = vmatpush.bf16.msra.mxu0 %v689
  %897 = vmatpush.bf16.msra.mxu0 %v683
  %898 = vmatmul.bf16.gmra.mxu0 %v344
  %v899 = vpop.f32.mrf.mxu0
  %v900 = vadd.f32 %v887, %v899
  %v901 = vpop.f32.mrf.mxu0
  %902 = vdwg.mxu0
  %903 = vmatpush.bf16.msra.mxu0 %v678
  %904 = vmatpush.bf16.msra.mxu0 %v672
  %905 = vmatpush.bf16.msra.mxu0 %v666
  %906 = vmatpush.bf16.msra.mxu0 %v660
  %907 = vmatpush.bf16.msra.mxu0 %v654
  %908 = vmatpush.bf16.msra.mxu0 %v648
  %909 = vmatpush.bf16.msra.mxu0 %v642
  %910 = vmatpush.bf16.msra.mxu0 %v636
  %911 = vmatmul.bf16.gmra.mxu0 %v344
  %v912 = vpop.f32.mrf.mxu0
  %v913 = vadd.f32 %v333, %v912
  %v914 = vpop.f32.mrf.mxu0
  %915 = vdwg.mxu0
  %916 = vmatpush.bf16.msra.mxu0 %v726
  %917 = vmatpush.bf16.msra.mxu0 %v720
  %918 = vmatpush.bf16.msra.mxu0 %v714
  %919 = vmatpush.bf16.msra.mxu0 %v708
  %920 = vmatpush.bf16.msra.mxu0 %v702
  %921 = vmatpush.bf16.msra.mxu0 %v696
  %922 = vmatpush.bf16.msra.mxu0 %v690
  %923 = vmatpush.bf16.msra.mxu0 %v684
  %924 = vmatmul.bf16.gmra.mxu0 %v344
  %v925 = vpop.f32.mrf.mxu0
  %v926 = vadd.f32 %v913, %v925
  %v927 = vpop.f32.mrf.mxu0
  %928 = vdwg.mxu0
  %929 = vmatpush.bf16.msra.mxu0 %v679
  %930 = vmatpush.bf16.msra.mxu0 %v673
  %931 = vmatpush.bf16.msra.mxu0 %v667
  %932 = vmatpush.bf16.msra.mxu0 %v661
  %933 = vmatpush.bf16.msra.mxu0 %v655
  %934 = vmatpush.bf16.msra.mxu0 %v649
  %935 = vmatpush.bf16.msra.mxu0 %v643
  %936 = vmatpush.bf16.msra.mxu0 %v637
  %937 = vmatmul.bf16.gmra.mxu0 %v344
  %v938 = vpop.f32.mrf.mxu0
  %v939 = vadd.f32 %v334, %v938
  %v940 = vpop.f32.mrf.mxu0
  %941 = vdwg.mxu0
  %942 = vmatpush.bf16.msra.mxu0 %v727
  %943 = vmatpush.bf16.msra.mxu0 %v721
  %944 = vmatpush.bf16.msra.mxu0 %v715
  %945 = vmatpush.bf16.msra.mxu0 %v709
  %946 = vmatpush.bf16.msra.mxu0 %v703
  %947 = vmatpush.bf16.msra.mxu0 %v697
  %948 = vmatpush.bf16.msra.mxu0 %v691
  %949 = vmatpush.bf16.msra.mxu0 %v685
  %950 = vmatmul.bf16.gmra.mxu0 %v344
  %v951 = vpop.f32.mrf.mxu0
  %v952 = vadd.f32 %v939, %v951
  %v953 = vpop.f32.mrf.mxu0
  %954 = vdwg.mxu0
  %955 = vmatpush.bf16.msra.mxu0 %v680
  %956 = vmatpush.bf16.msra.mxu0 %v674
  %957 = vmatpush.bf16.msra.mxu0 %v668
  %958 = vmatpush.bf16.msra.mxu0 %v662
  %959 = vmatpush.bf16.msra.mxu0 %v656
  %960 = vmatpush.bf16.msra.mxu0 %v650
  %961 = vmatpush.bf16.msra.mxu0 %v644
  %962 = vmatpush.bf16.msra.mxu0 %v638
  %963 = vmatmul.bf16.gmra.mxu0 %v344
  %v964 = vpop.f32.mrf.mxu0
  %v965 = vadd.f32 %v335, %v964
  %v966 = vpop.f32.mrf.mxu0
  %967 = vdwg.mxu0
  %968 = vmatpush.bf16.msra.mxu0 %v728
  %969 = vmatpush.bf16.msra.mxu0 %v722
  %970 = vmatpush.bf16.msra.mxu0 %v716
  %971 = vmatpush.bf16.msra.mxu0 %v710
  %972 = vmatpush.bf16.msra.mxu0 %v704
  %973 = vmatpush.bf16.msra.mxu0 %v698
  %974 = vmatpush.bf16.msra.mxu0 %v692
  %975 = vmatpush.bf16.msra.mxu0 %v686
  %976 = vmatmul.bf16.gmra.mxu0 %v344
  %v977 = vpop.f32.mrf.mxu0
  %v978 = vadd.f32 %v965, %v977
  %v979 = vpop.f32.mrf.mxu0
  %980 = vdwg.mxu0
  %v981 = vadd.f32 %v341, %v848
  %v982 = vmul.f32 %v981, 0.5
  %v983 = vtanh.pop %v982
  %v984 = vmul.f32 %v983, 0.5
  %v985 = vadd.f32 %v984, 0.5
  %v986 = vadd.f32 %v342, %v874
  %v987 = vmul.f32 %v986, 0.5
  %v988 = vtanh.pop %v987
  %v989 = vmul.f32 %v988, 0.5
  %v990 = vadd.f32 %v989, 0.5
  %v991 = vmul.f32 %v985, %v900
  %v992 = vadd.f32 %v343, %v991
  %v993 = vtanh.pop %v992
  %v994 = vsub.f32 1.0, %v990
  %v995 = vmul.f32 %v994, %v993
  %v996 = vadd.f32 %v995, 0.0
  %v997 = vpack.c.bf16 %v996, %v996
  %v1030 = vunpack.c.l.b16 %v298
  %v1031 = vunpack.c.h.b16 %v298
  %v1032 = vunpack.c.l.b16 %v299
  %v1033 = vunpack.c.l.b16 %v300
  %v1034 = vunpack.c.h.b16 %v300
  %v1035 = vunpack.c.l.b16 %v301
  %v1036 = vunpack.c.l.b16 %v302
  %v1037 = vunpack.c.h.b16 %v302
  %v1038 = vunpack.c.l.b16 %v303
  %v1039 = vunpack.c.l.b16 %v304
  %v1040 = vunpack.c.h.b16 %v304
  %v1041 = vunpack.c.l.b16 %v305
  %v1042 = vunpack.c.l.b16 %v306
  %v1043 = vunpack.c.h.b16 %v306
  %v1044 = vunpack.c.l.b16 %v307
  %v1045 = vunpack.c.l.b16 %v308
  %v1046 = vunpack.c.h.b16 %v308
  %v1047 = vunpack.c.l.b16 %v309
  %v1048 = vunpack.c.l.b16 %v310
  %v1049 = vunpack.c.h.b16 %v310
  %v1050 = vunpack.c.l.b16 %v311
  %v1051 = vunpack.c.l.b16 %v312
  %v1052 = vunpack.c.h.b16 %v312
  %v1053 = vunpack.c.l.b16 %v313
  %v1054 = vunpack.c.l.b16 %v314
  %v1055 = vunpack.c.h.b16 %v314
  %v1056 = vunpack.c.l.b16 %v315
  %v1057 = vunpack.c.l.b16 %v316
  %v1058 = vunpack.c.h.b16 %v316
  %v1059 = vunpack.c.l.b16 %v317
  %v1060 = vunpack.c.l.b16 %v318
  %v1061 = vunpack.c.h.b16 %v318
  %v1062 = vunpack.c.l.b16 %v319
  %v1063 = vunpack.c.l.b16 %v320
  %v1064 = vunpack.c.h.b16 %v320
  %v1065 = vunpack.c.l.b16 %v321
  %v1066 = vunpack.c.l.b16 %v322
  %v1067 = vunpack.c.h.b16 %v322
  %v1068 = vunpack.c.l.b16 %v323
  %v1069 = vunpack.c.l.b16 %v324
  %v1070 = vunpack.c.h.b16 %v324
  %v1071 = vunpack.c.l.b16 %v325
  %v1072 = vunpack.c.l.b16 %v326
  %v1073 = vunpack.c.h.b16 %v326
  %v1074 = vunpack.c.l.b16 %v327
  %v1075 = vunpack.c.l.b16 %v328
  %v1076 = vunpack.c.h.b16 %v328
  %v1077 = vunpack.c.l.b16 %v329
  %v1078 = vpack.c.b16 %v1033, %v1030
  %v1079 = vpack.c.b16 %v1034, %v1031
  %v1080 = vpack.c.b16 %v1035, %v1032
  %v1081 = vpack.c.b16 %v1039, %v1036
  %v1082 = vpack.c.b16 %v1040, %v1037
  %v1083 = vpack.c.b16 %v1041, %v1038
  %v1084 = vpack.c.b16 %v1045, %v1042
  %v1085 = vpack.c.b16 %v1046, %v1043
  %v1086 = vpack.c.b16 %v1047, %v1044
  %v1087 = vpack.c.b16 %v1051, %v1048
  %v1088 = vpack.c.b16 %v1052, %v1049
  %v1089 = vpack.c.b16 %v1053, %v1050
  %v1090 = vpack.c.b16 %v1057, %v1054
  %v1091 = vpack.c.b16 %v1058, %v1055
  %v1092 = vpack.c.b16 %v1059, %v1056
  %v1093 = vpack.c.b16 %v1063, %v1060
  %v1094 = vpack.c.b16 %v1064, %v1061
  %v1095 = vpack.c.b16 %v1065, %v1062
  %v1096 = vpack.c.b16 %v1069, %v1066
  %v1097 = vpack.c.b16 %v1070, %v1067
  %v1098 = vpack.c.b16 %v1071, %v1068
  %v1099 = vpack.c.b16 %v1075, %v1072
  %v1100 = vpack.c.b16 %v1076, %v1073
  %v1101 = vpack.c.b16 %v1077, %v1074
  %1126 = vmatpush.bf16.msra.mxu0 %v1099
  %1127 = vmatpush.bf16.msra.mxu0 %v1096
  %1128 = vmatpush.bf16.msra.mxu0 %v1093
  %1129 = vmatpush.bf16.msra.mxu0 %v1090
  %1130 = vmatpush.bf16.msra.mxu0 %v1087
  %1131 = vmatpush.bf16.msra.mxu0 %v1084
  %1132 = vmatpush.bf16.msra.mxu0 %v1081
  %1133 = vmatpush.bf16.msra.mxu0 %v1078
  %1134 = vmatmul.bf16.gmra.mxu0 %v997
  %v1135 = vpop.f32.mrf.mxu0
  %v1136 = vadd.f32 %v336, %v1135
  %v1137 = vpop.f32.mrf.mxu0
  %1138 = vdwg.mxu0
  %1139 = vmatpush.bf16.msra.mxu0 %v1100
  %1140 = vmatpush.bf16.msra.mxu0 %v1097
  %1141 = vmatpush.bf16.msra.mxu0 %v1094
  %1142 = vmatpush.bf16.msra.mxu0 %v1091
  %1143 = vmatpush.bf16.msra.mxu0 %v1088
  %1144 = vmatpush.bf16.msra.mxu0 %v1085
  %1145 = vmatpush.bf16.msra.mxu0 %v1082
  %1146 = vmatpush.bf16.msra.mxu0 %v1079
  %1147 = vmatmul.bf16.gmra.mxu0 %v997
  %v1148 = vpop.f32.mrf.mxu0
  %v1149 = vadd.f32 %v337, %v1148
  %v1150 = vpop.f32.mrf.mxu0
  %1151 = vdwg.mxu0
  %1152 = vmatpush.bf16.msra.mxu0 %v1101
  %1153 = vmatpush.bf16.msra.mxu0 %v1098
  %1154 = vmatpush.bf16.msra.mxu0 %v1095
  %1155 = vmatpush.bf16.msra.mxu0 %v1092
  %1156 = vmatpush.bf16.msra.mxu0 %v1089
  %1157 = vmatpush.bf16.msra.mxu0 %v1086
  %1158 = vmatpush.bf16.msra.mxu0 %v1083
  %1159 = vmatpush.bf16.msra.mxu0 %v1080
  %1160 = vmatmul.bf16.gmra.mxu0 %v997
  %v1161 = vpop.f32.mrf.mxu0
  %v1162 = vadd.f32 %v338, %v1161
  %v1163 = vpop.f32.mrf.mxu0
  %1164 = vdwg.mxu0
  %v1165 = vadd.f32 %v1136, %v926
  %v1166 = vmul.f32 %v1165, 0.5
  %v1167 = vtanh.pop %v1166
  %v1168 = vmul.f32 %v1167, 0.5
  %v1169 = vadd.f32 %v1168, 0.5
  %v1170 = vadd.f32 %v1149, %v952
  %v1171 = vmul.f32 %v1170, 0.5
  %v1172 = vtanh.pop %v1171
  %v1173 = vmul.f32 %v1172, 0.5
  %v1174 = vadd.f32 %v1173, 0.5
  %v1175 = vmul.f32 %v1169, %v978
  %v1176 = vadd.f32 %v1162, %v1175
  %v1177 = vtanh.pop %v1176
  %v1178 = vsub.f32 1.0, %v1174
  %v1179 = vmul.f32 %v1178, %v1177
  %v1180 = vadd.f32 %v1179, 0.0
  %v1181 = vld [vmem:[#allocation2 + $0x18] sm:$0xff]
  %v1182 = vld [vmem:[#allocation2 + $0x20] sm:$0xff]
  %v1183 = vld [vmem:[#allocation2 + $0x28] sm:$0xff]
  %v1184 = vpack.c.bf16 %v1180, %v1180
  %1185 = vmatpush.bf16.msra.mxu0 %v675
  %1186 = vmatpush.bf16.msra.mxu0 %v669
  %1187 = vmatpush.bf16.msra.mxu0 %v663
  %1188 = vmatpush.bf16.msra.mxu0 %v657
  %1189 = vmatpush.bf16.msra.mxu0 %v651
  %1190 = vmatpush.bf16.msra.mxu0 %v645
  %1191 = vmatpush.bf16.msra.mxu0 %v639
  %1192 = vmatpush.bf16.msra.mxu0 %v633
  %1193 = vmatmul.bf16.gmra.mxu0 %v997
  %v1194 = vpop.f32.mrf.mxu0
  %v1195 = vadd.f32 %v330, %v1194
  %v1196 = vpop.f32.mrf.mxu0
  %1197 = vdwg.mxu0
  %1198 = vmatpush.bf16.msra.mxu0 %v723
  %1199 = vmatpush.bf16.msra.mxu0 %v717
  %1200 = vmatpush.bf16.msra.mxu0 %v711
  %1201 = vmatpush.bf16.msra.mxu0 %v705
  %1202 = vmatpush.bf16.msra.mxu0 %v699
  %1203 = vmatpush.bf16.msra.mxu0 %v693
  %1204 = vmatpush.bf16.msra.mxu0 %v687
  %1205 = vmatpush.bf16.msra.mxu0 %v681
  %1206 = vmatmul.bf16.gmra.mxu0 %v1184
  %v1207 = vpop.f32.mrf.mxu0
  %v1208 = vadd.f32 %v1195, %v1207
  %v1209 = vpop.f32.mrf.mxu0
  %1210 = vdwg.mxu0
  %1211 = vmatpush.bf16.msra.mxu0 %v676
  %1212 = vmatpush.bf16.msra.mxu0 %v670
  %1213 = vmatpush.bf16.msra.mxu0 %v664
  %1214 = vmatpush.bf16.msra.mxu0 %v658
  %1215 = vmatpush.bf16.msra.mxu0 %v652
  %1216 = vmatpush.bf16.msra.mxu0 %v646
  %1217 = vmatpush.bf16.msra.mxu0 %v640
  %1218 = vmatpush.bf16.msra.mxu0 %v634
  %1219 = vmatmul.bf16.gmra.mxu0 %v997
  %v1220 = vpop.f32.mrf.mxu0
  %v1221 = vadd.f32 %v331, %v1220
  %v1222 = vpop.f32.mrf.mxu0
  %1223 = vdwg.mxu0
  %1224 = vmatpush.bf16.msra.mxu0 %v724
  %1225 = vmatpush.bf16.msra.mxu0 %v718
  %1226 = vmatpush.bf16.msra.mxu0 %v712
  %1227 = vmatpush.bf16.msra.mxu0 %v706
  %1228 = vmatpush.bf16.msra.mxu0 %v700
  %1229 = vmatpush.bf16.msra.mxu0 %v694
  %1230 = vmatpush.bf16.msra.mxu0 %v688
  %1231 = vmatpush.bf16.msra.mxu0 %v682
  %1232 = vmatmul.bf16.gmra.mxu0 %v1184
  %v1233 = vpop.f32.mrf.mxu0
  %v1234 = vadd.f32 %v1221, %v1233
  %v1235 = vpop.f32.mrf.mxu0
  %1236 = vdwg.mxu0
  %1237 = vmatpush.bf16.msra.mxu0 %v677
  %1238 = vmatpush.bf16.msra.mxu0 %v671
  %1239 = vmatpush.bf16.msra.mxu0 %v665
  %1240 = vmatpush.bf16.msra.mxu0 %v659
  %1241 = vmatpush.bf16.msra.mxu0 %v653
  %1242 = vmatpush.bf16.msra.mxu0 %v647
  %1243 = vmatpush.bf16.msra.mxu0 %v641
  %1244 = vmatpush.bf16.msra.mxu0 %v635
  %1245 = vmatmul.bf16.gmra.mxu0 %v997
  %v1246 = vpop.f32.mrf.mxu0
  %v1247 = vadd.f32 %v332, %v1246
  %v1248 = vpop.f32.mrf.mxu0
  %1249 = vdwg.mxu0
  %1250 = vmatpush.bf16.msra.mxu0 %v725
  %1251 = vmatpush.bf16.msra.mxu0 %v719
  %1252 = vmatpush.bf16.msra.mxu0 %v713
  %1253 = vmatpush.bf16.msra.mxu0 %v707
  %1254 = vmatpush.bf16.msra.mxu0 %v701
  %1255 = vmatpush.bf16.msra.mxu0 %v695
  %1256 = vmatpush.bf16.msra.mxu0 %v689
  %1257 = vmatpush.bf16.msra.mxu0 %v683
  %1258 = vmatmul.bf16.gmra.mxu0 %v1184
  %v1259 = vpop.f32.mrf.mxu0
  %v1260 = vadd.f32 %v1247, %v1259
  %v1261 = vpop.f32.mrf.mxu0
  %1262 = vdwg.mxu0
  %1263 = vmatpush.bf16.msra.mxu0 %v678
  %1264 = vmatpush.bf16.msra.mxu0 %v672
  %1265 = vmatpush.bf16.msra.mxu0 %v666
  %1266 = vmatpush.bf16.msra.mxu0 %v660
  %1267 = vmatpush.bf16.msra.mxu0 %v654
  %1268 = vmatpush.bf16.msra.mxu0 %v648
  %1269 = vmatpush.bf16.msra.mxu0 %v642
  %1270 = vmatpush.bf16.msra.mxu0 %v636
  %1271 = vmatmul.bf16.gmra.mxu0 %v997
  %v1272 = vpop.f32.mrf.mxu0
  %v1273 = vadd.f32 %v333, %v1272
  %v1274 = vpop.f32.mrf.mxu0
  %1275 = vdwg.mxu0
  %1276 = vmatpush.bf16.msra.mxu0 %v726
  %1277 = vmatpush.bf16.msra.mxu0 %v720
  %1278 = vmatpush.bf16.msra.mxu0 %v714
  %1279 = vmatpush.bf16.msra.mxu0 %v708
  %1280 = vmatpush.bf16.msra.mxu0 %v702
  %1281 = vmatpush.bf16.msra.mxu0 %v696
  %1282 = vmatpush.bf16.msra.mxu0 %v690
  %1283 = vmatpush.bf16.msra.mxu0 %v684
  %1284 = vmatmul.bf16.gmra.mxu0 %v1184
  %v1285 = vpop.f32.mrf.mxu0
  %v1286 = vadd.f32 %v1273, %v1285
  %v1287 = vpop.f32.mrf.mxu0
  %1288 = vdwg.mxu0
  %1289 = vmatpush.bf16.msra.mxu0 %v679
  %1290 = vmatpush.bf16.msra.mxu0 %v673
  %1291 = vmatpush.bf16.msra.mxu0 %v667
  %1292 = vmatpush.bf16.msra.mxu0 %v661
  %1293 = vmatpush.bf16.msra.mxu0 %v655
  %1294 = vmatpush.bf16.msra.mxu0 %v649
  %1295 = vmatpush.bf16.msra.mxu0 %v643
  %1296 = vmatpush.bf16.msra.mxu0 %v637
  %1297 = vmatmul.bf16.gmra.mxu0 %v997
  %v1298 = vpop.f32.mrf.mxu0
  %v1299 = vadd.f32 %v334, %v1298
  %v1300 = vpop.f32.mrf.mxu0
  %1301 = vdwg.mxu0
  %1302 = vmatpush.bf16.msra.mxu0 %v727
  %1303 = vmatpush.bf16.msra.mxu0 %v721
  %1304 = vmatpush.bf16.msra.mxu0 %v715
  %1305 = vmatpush.bf16.msra.mxu0 %v709
  %1306 = vmatpush.bf16.msra.mxu0 %v703
  %1307 = vmatpush.bf16.msra.mxu0 %v697
  %1308 = vmatpush.bf16.msra.mxu0 %v691
  %1309 = vmatpush.bf16.msra.mxu0 %v685
  %1310 = vmatmul.bf16.gmra.mxu0 %v1184
  %v1311 = vpop.f32.mrf.mxu0
  %v1312 = vadd.f32 %v1299, %v1311
  %v1313 = vpop.f32.mrf.mxu0
  %1314 = vdwg.mxu0
  %1315 = vmatpush.bf16.msra.mxu0 %v680
  %1316 = vmatpush.bf16.msra.mxu0 %v674
  %1317 = vmatpush.bf16.msra.mxu0 %v668
  %1318 = vmatpush.bf16.msra.mxu0 %v662
  %1319 = vmatpush.bf16.msra.mxu0 %v656
  %1320 = vmatpush.bf16.msra.mxu0 %v650
  %1321 = vmatpush.bf16.msra.mxu0 %v644
  %1322 = vmatpush.bf16.msra.mxu0 %v638
  %1323 = vmatmul.bf16.gmra.mxu0 %v997
  %v1324 = vpop.f32.mrf.mxu0
  %v1325 = vadd.f32 %v335, %v1324
  %v1326 = vpop.f32.mrf.mxu0
  %1327 = vdwg.mxu0
  %1328 = vmatpush.bf16.msra.mxu0 %v728
  %1329 = vmatpush.bf16.msra.mxu0 %v722
  %1330 = vmatpush.bf16.msra.mxu0 %v716
  %1331 = vmatpush.bf16.msra.mxu0 %v710
  %1332 = vmatpush.bf16.msra.mxu0 %v704
  %1333 = vmatpush.bf16.msra.mxu0 %v698
  %1334 = vmatpush.bf16.msra.mxu0 %v692
  %1335 = vmatpush.bf16.msra.mxu0 %v686
  %1336 = vmatmul.bf16.gmra.mxu0 %v1184
  %v1337 = vpop.f32.mrf.mxu0
  %v1338 = vadd.f32 %v1325, %v1337
  %v1339 = vpop.f32.mrf.mxu0
  %1340 = vdwg.mxu0
  %v1341 = vadd.f32 %v1181, %v1208
  %v1342 = vmul.f32 %v1341, 0.5
  %v1343 = vtanh.pop %v1342
  %v1344 = vmul.f32 %v1343, 0.5
  %v1345 = vadd.f32 %v1344, 0.5
  %v1346 = vadd.f32 %v1182, %v1234
  %v1347 = vmul.f32 %v1346, 0.5
  %v1348 = vtanh.pop %v1347
  %v1349 = vmul.f32 %v1348, 0.5
  %v1350 = vadd.f32 %v1349, 0.5
  %v1351 = vmul.f32 %v1345, %v1260
  %v1352 = vadd.f32 %v1183, %v1351
  %v1353 = vtanh.pop %v1352
  %v1354 = vsub.f32 1.0, %v1350
  %v1355 = vsub.f32 %v1353, %v996
  %v1356 = vmul.f32 %v1354, %v1355
  %v1357 = vadd.f32 %v996, %v1356
  %v1358 = vpack.c.bf16 %v1357, %v1357
  %1359 = vmatpush.bf16.msra.mxu0 %v1099
  %1360 = vmatpush.bf16.msra.mxu0 %v1096
  %1361 = vmatpush.bf16.msra.mxu0 %v1093
  %1362 = vmatpush.bf16.msra.mxu0 %v1090
  %1363 = vmatpush.bf16.msra.mxu0 %v1087
  %1364 = vmatpush.bf16.msra.mxu0 %v1084
  %1365 = vmatpush.bf16.msra.mxu0 %v1081
  %1366 = vmatpush.bf16.msra.mxu0 %v1078
  %1367 = vmatmul.bf16.gmra.mxu0 %v1358
  %v1368 = vpop.f32.mrf.mxu0
  %v1369 = vadd.f32 %v336, %v1368
  %v1370 = vpop.f32.mrf.mxu0
  %1371 = vdwg.mxu0
  %1372 = vmatpush.bf16.msra.mxu0 %v1100
  %1373 = vmatpush.bf16.msra.mxu0 %v1097
  %1374 = vmatpush.bf16.msra.mxu0 %v1094
  %1375 = vmatpush.bf16.msra.mxu0 %v1091
  %1376 = vmatpush.bf16.msra.mxu0 %v1088
  %1377 = vmatpush.bf16.msra.mxu0 %v1085
  %1378 = vmatpush.bf16.msra.mxu0 %v1082
  %1379 = vmatpush.bf16.msra.mxu0 %v1079
  %1380 = vmatmul.bf16.gmra.mxu0 %v1358
  %v1381 = vpop.f32.mrf.mxu0
  %v1382 = vadd.f32 %v337, %v1381
  %v1383 = vpop.f32.mrf.mxu0
  %1384 = vdwg.mxu0
  %1385 = vmatpush.bf16.msra.mxu0 %v1101
  %1386 = vmatpush.bf16.msra.mxu0 %v1098
  %1387 = vmatpush.bf16.msra.mxu0 %v1095
  %1388 = vmatpush.bf16.msra.mxu0 %v1092
  %1389 = vmatpush.bf16.msra.mxu0 %v1089
  %1390 = vmatpush.bf16.msra.mxu0 %v1086
  %1391 = vmatpush.bf16.msra.mxu0 %v1083
  %1392 = vmatpush.bf16.msra.mxu0 %v1080
  %1393 = vmatmul.bf16.gmra.mxu0 %v1358
  %v1394 = vpop.f32.mrf.mxu0
  %v1395 = vadd.f32 %v338, %v1394
  %v1396 = vpop.f32.mrf.mxu0
  %1397 = vdwg.mxu0
  %v1398 = vadd.f32 %v1369, %v1286
  %v1399 = vmul.f32 %v1398, 0.5
  %v1400 = vtanh.pop %v1399
  %v1401 = vmul.f32 %v1400, 0.5
  %v1402 = vadd.f32 %v1401, 0.5
  %v1403 = vadd.f32 %v1382, %v1312
  %v1404 = vmul.f32 %v1403, 0.5
  %v1405 = vtanh.pop %v1404
  %v1406 = vmul.f32 %v1405, 0.5
  %v1407 = vadd.f32 %v1406, 0.5
  %v1408 = vmul.f32 %v1402, %v1338
  %v1409 = vadd.f32 %v1395, %v1408
  %v1410 = vtanh.pop %v1409
  %v1411 = vsub.f32 1.0, %v1407
  %v1412 = vsub.f32 %v1410, %v1180
  %v1413 = vmul.f32 %v1411, %v1412
  %v1414 = vadd.f32 %v1180, %v1413
  %v1415 = vld [vmem:[#allocation2 + $0x30] sm:$0xff]
  %v1416 = vld [vmem:[#allocation2 + $0x38] sm:$0xff]
  %v1417 = vld [vmem:[#allocation2 + $0x40] sm:$0xff]
  %v1418 = vpack.c.bf16 %v1414, %v1414
  %1419 = vmatpush.bf16.msra.mxu0 %v675
  %1420 = vmatpush.bf16.msra.mxu0 %v669
  %1421 = vmatpush.bf16.msra.mxu0 %v663
  %1422 = vmatpush.bf16.msra.mxu0 %v657
  %1423 = vmatpush.bf16.msra.mxu0 %v651
  %1424 = vmatpush.bf16.msra.mxu0 %v645
  %1425 = vmatpush.bf16.msra.mxu0 %v639
  %1426 = vmatpush.bf16.msra.mxu0 %v633
  %1427 = vmatmul.bf16.gmra.mxu0 %v1358
  %v1428 = vpop.f32.mrf.mxu0
  %v1429 = vadd.f32 %v330, %v1428
  %v1430 = vpop.f32.mrf.mxu0
  %1431 = vdwg.mxu0
  %1432 = vmatpush.bf16.msra.mxu0 %v723
  %1433 = vmatpush.bf16.msra.mxu0 %v717
  %1434 = vmatpush.bf16.msra.mxu0 %v711
  %1435 = vmatpush.bf16.msra.mxu0 %v705
  %1436 = vmatpush.bf16.msra.mxu0 %v699
  %1437 = vmatpush.bf16.msra.mxu0 %v693
  %1438 = vmatpush.bf16.msra.mxu0 %v687
  %1439 = vmatpush.bf16.msra.mxu0 %v681
  %1440 = vmatmul.bf16.gmra.mxu0 %v1418
  %v1441 = vpop.f32.mrf.mxu0
  %v1442 = vadd.f32 %v1429, %v1441
  %v1443 = vpop.f32.mrf.mxu0
  %1444 = vdwg.mxu0
  %1445 = vmatpush.bf16.msra.mxu0 %v676
  %1446 = vmatpush.bf16.msra.mxu0 %v670
  %1447 = vmatpush.bf16.msra.mxu0 %v664
  %1448 = vmatpush.bf16.msra.mxu0 %v658
  %1449 = vmatpush.bf16.msra.mxu0 %v652
  %1450 = vmatpush.bf16.msra.mxu0 %v646
  %1451 = vmatpush.bf16.msra.mxu0 %v640
  %1452 = vmatpush.bf16.msra.mxu0 %v634
  %1453 = vmatmul.bf16.gmra.mxu0 %v1358
  %v1454 = vpop.f32.mrf.mxu0
  %v1455 = vadd.f32 %v331, %v1454
  %v1456 = vpop.f32.mrf.mxu0
  %1457 = vdwg.mxu0
  %1458 = vmatpush.bf16.msra.mxu0 %v724
  %1459 = vmatpush.bf16.msra.mxu0 %v718
  %1460 = vmatpush.bf16.msra.mxu0 %v712
  %1461 = vmatpush.bf16.msra.mxu0 %v706
  %1462 = vmatpush.bf16.msra.mxu0 %v700
  %1463 = vmatpush.bf16.msra.mxu0 %v694
  %1464 = vmatpush.bf16.msra.mxu0 %v688
  %1465 = vmatpush.bf16.msra.mxu0 %v682
  %1466 = vmatmul.bf16.gmra.mxu0 %v1418
  %v1467 = vpop.f32.mrf.mxu0
  %v1468 = vadd.f32 %v1455, %v1467
  %v1469 = vpop.f32.mrf.mxu0
  %1470 = vdwg.mxu0
  %1471 = vmatpush.bf16.msra.mxu0 %v677
  %1472 = vmatpush.bf16.msra.mxu0 %v671
  %1473 = vmatpush.bf16.msra.mxu0 %v665
  %1474 = vmatpush.bf16.msra.mxu0 %v659
  %1475 = vmatpush.bf16.msra.mxu0 %v653
  %1476 = vmatpush.bf16.msra.mxu0 %v647
  %1477 = vmatpush.bf16.msra.mxu0 %v641
  %1478 = vmatpush.bf16.msra.mxu0 %v635
  %1479 = vmatmul.bf16.gmra.mxu0 %v1358
  %v1480 = vpop.f32.mrf.mxu0
  %v1481 = vadd.f32 %v332, %v1480
  %v1482 = vpop.f32.mrf.mxu0
  %1483 = vdwg.mxu0
  %1484 = vmatpush.bf16.msra.mxu0 %v725
  %1485 = vmatpush.bf16.msra.mxu0 %v719
  %1486 = vmatpush.bf16.msra.mxu0 %v713
  %1487 = vmatpush.bf16.msra.mxu0 %v707
  %1488 = vmatpush.bf16.msra.mxu0 %v701
  %1489 = vmatpush.bf16.msra.mxu0 %v695
  %1490 = vmatpush.bf16.msra.mxu0 %v689
  %1491 = vmatpush.bf16.msra.mxu0 %v683
  %1492 = vmatmul.bf16.gmra.mxu0 %v1418
  %v1493 = vpop.f32.mrf.mxu0
  %v1494 = vadd.f32 %v1481, %v1493
  %v1495 = vpop.f32.mrf.mxu0
  %1496 = vdwg.mxu0
  %1497 = vmatpush.bf16.msra.mxu0 %v678
  %1498 = vmatpush.bf16.msra.mxu0 %v672
  %1499 = vmatpush.bf16.msra.mxu0 %v666
  %1500 = vmatpush.bf16.msra.mxu0 %v660
  %1501 = vmatpush.bf16.msra.mxu0 %v654
  %1502 = vmatpush.bf16.msra.mxu0 %v648
  %1503 = vmatpush.bf16.msra.mxu0 %v642
  %1504 = vmatpush.bf16.msra.mxu0 %v636
  %1505 = vmatmul.bf16.gmra.mxu0 %v1358
  %v1506 = vpop.f32.mrf.mxu0
  %v1507 = vadd.f32 %v333, %v1506
  %v1508 = vpop.f32.mrf.mxu0
  %1509 = vdwg.mxu0
  %1510 = vmatpush.bf16.msra.mxu0 %v726
  %1511 = vmatpush.bf16.msra.mxu0 %v720
  %1512 = vmatpush.bf16.msra.mxu0 %v714
  %1513 = vmatpush.bf16.msra.mxu0 %v708
  %1514 = vmatpush.bf16.msra.mxu0 %v702
  %1515 = vmatpush.bf16.msra.mxu0 %v696
  %1516 = vmatpush.bf16.msra.mxu0 %v690
  %1517 = vmatpush.bf16.msra.mxu0 %v684
  %1518 = vmatmul.bf16.gmra.mxu0 %v1418
  %v1519 = vpop.f32.mrf.mxu0
  %v1520 = vadd.f32 %v1507, %v1519
  %v1521 = vpop.f32.mrf.mxu0
  %1522 = vdwg.mxu0
  %1523 = vmatpush.bf16.msra.mxu0 %v679
  %1524 = vmatpush.bf16.msra.mxu0 %v673
  %1525 = vmatpush.bf16.msra.mxu0 %v667
  %1526 = vmatpush.bf16.msra.mxu0 %v661
  %1527 = vmatpush.bf16.msra.mxu0 %v655
  %1528 = vmatpush.bf16.msra.mxu0 %v649
  %1529 = vmatpush.bf16.msra.mxu0 %v643
  %1530 = vmatpush.bf16.msra.mxu0 %v637
  %1531 = vmatmul.bf16.gmra.mxu0 %v1358
  %v1532 = vpop.f32.mrf.mxu0
  %v1533 = vadd.f32 %v334, %v1532
  %v1534 = vpop.f32.mrf.mxu0
  %1535 = vdwg.mxu0
  %1536 = vmatpush.bf16.msra.mxu0 %v727
  %1537 = vmatpush.bf16.msra.mxu0 %v721
  %1538 = vmatpush.bf16.msra.mxu0 %v715
  %1539 = vmatpush.bf16.msra.mxu0 %v709
  %1540 = vmatpush.bf16.msra.mxu0 %v703
  %1541 = vmatpush.bf16.msra.mxu0 %v697
  %1542 = vmatpush.bf16.msra.mxu0 %v691
  %1543 = vmatpush.bf16.msra.mxu0 %v685
  %1544 = vmatmul.bf16.gmra.mxu0 %v1418
  %v1545 = vpop.f32.mrf.mxu0
  %v1546 = vadd.f32 %v1533, %v1545
  %v1547 = vpop.f32.mrf.mxu0
  %1548 = vdwg.mxu0
  %1549 = vmatpush.bf16.msra.mxu0 %v680
  %1550 = vmatpush.bf16.msra.mxu0 %v674
  %1551 = vmatpush.bf16.msra.mxu0 %v668
  %1552 = vmatpush.bf16.msra.mxu0 %v662
  %1553 = vmatpush.bf16.msra.mxu0 %v656
  %1554 = vmatpush.bf16.msra.mxu0 %v650
  %1555 = vmatpush.bf16.msra.mxu0 %v644
  %1556 = vmatpush.bf16.msra.mxu0 %v638
  %1557 = vmatmul.bf16.gmra.mxu0 %v1358
  %v1558 = vpop.f32.mrf.mxu0
  %v1559 = vadd.f32 %v335, %v1558
  %v1560 = vpop.f32.mrf.mxu0
  %1561 = vdwg.mxu0
  %1562 = vmatpush.bf16.msra.mxu0 %v728
  %1563 = vmatpush.bf16.msra.mxu0 %v722
  %1564 = vmatpush.bf16.msra.mxu0 %v716
  %1565 = vmatpush.bf16.msra.mxu0 %v710
  %1566 = vmatpush.bf16.msra.mxu0 %v704
  %1567 = vmatpush.bf16.msra.mxu0 %v698
  %1568 = vmatpush.bf16.msra.mxu0 %v692
  %1569 = vmatpush.bf16.msra.mxu0 %v686
  %1570 = vmatmul.bf16.gmra.mxu0 %v1418
  %v1571 = vpop.f32.mrf.mxu0
  %v1572 = vadd.f32 %v1559, %v1571
  %v1573 = vpop.f32.mrf.mxu0
  %1574 = vdwg.mxu0
  %v1575 = vadd.f32 %v1415, %v1442
  %v1576 = vmul.f32 %v1575, 0.5
  %v1577 = vtanh.pop %v1576
  %v1578 = vmul.f32 %v1577, 0.5
  %v1579 = vadd.f32 %v1578, 0.5
  %v1580 = vadd.f32 %v1416, %v1468
  %v1581 = vmul.f32 %v1580, 0.5
  %v1582 = vtanh.pop %v1581
  %v1583 = vmul.f32 %v1582, 0.5
  %v1584 = vadd.f32 %v1583, 0.5
  %v1585 = vmul.f32 %v1579, %v1494
  %v1586 = vadd.f32 %v1417, %v1585
  %v1587 = vtanh.pop %v1586
  %v1588 = vsub.f32 1.0, %v1584
  %v1589 = vsub.f32 %v1587, %v1357
  %v1590 = vmul.f32 %v1588, %v1589
  %v1591 = vadd.f32 %v1357, %v1590
  %v1592 = vpack.c.bf16 %v1591, %v1591
  %1593 = vmatpush.bf16.msra.mxu0 %v1099
  %1594 = vmatpush.bf16.msra.mxu0 %v1096
  %1595 = vmatpush.bf16.msra.mxu0 %v1093
  %1596 = vmatpush.bf16.msra.mxu0 %v1090
  %1597 = vmatpush.bf16.msra.mxu0 %v1087
  %1598 = vmatpush.bf16.msra.mxu0 %v1084
  %1599 = vmatpush.bf16.msra.mxu0 %v1081
  %1600 = vmatpush.bf16.msra.mxu0 %v1078
  %1601 = vmatmul.bf16.gmra.mxu0 %v1592
  %v1602 = vpop.f32.mrf.mxu0
  %v1603 = vadd.f32 %v336, %v1602
  %v1604 = vpop.f32.mrf.mxu0
  %1605 = vdwg.mxu0
  %1606 = vmatpush.bf16.msra.mxu0 %v1100
  %1607 = vmatpush.bf16.msra.mxu0 %v1097
  %1608 = vmatpush.bf16.msra.mxu0 %v1094
  %1609 = vmatpush.bf16.msra.mxu0 %v1091
  %1610 = vmatpush.bf16.msra.mxu0 %v1088
  %1611 = vmatpush.bf16.msra.mxu0 %v1085
  %1612 = vmatpush.bf16.msra.mxu0 %v1082
  %1613 = vmatpush.bf16.msra.mxu0 %v1079
  %1614 = vmatmul.bf16.gmra.mxu0 %v1592
  %v1615 = vpop.f32.mrf.mxu0
  %v1616 = vadd.f32 %v337, %v1615
  %v1617 = vpop.f32.mrf.mxu0
  %1618 = vdwg.mxu0
  %1619 = vmatpush.bf16.msra.mxu0 %v1101
  %1620 = vmatpush.bf16.msra.mxu0 %v1098
  %1621 = vmatpush.bf16.msra.mxu0 %v1095
  %1622 = vmatpush.bf16.msra.mxu0 %v1092
  %1623 = vmatpush.bf16.msra.mxu0 %v1089
  %1624 = vmatpush.bf16.msra.mxu0 %v1086
  %1625 = vmatpush.bf16.msra.mxu0 %v1083
  %1626 = vmatpush.bf16.msra.mxu0 %v1080
  %1627 = vmatmul.bf16.gmra.mxu0 %v1592
  %v1628 = vpop.f32.mrf.mxu0
  %v1629 = vadd.f32 %v338, %v1628
  %v1630 = vpop.f32.mrf.mxu0
  %1631 = vdwg.mxu0
  %v1632 = vadd.f32 %v1603, %v1520
  %v1633 = vmul.f32 %v1632, 0.5
  %v1634 = vtanh.pop %v1633
  %v1635 = vmul.f32 %v1634, 0.5
  %v1636 = vadd.f32 %v1635, 0.5
  %v1637 = vadd.f32 %v1616, %v1546
  %v1638 = vmul.f32 %v1637, 0.5
  %v1639 = vtanh.pop %v1638
  %v1640 = vmul.f32 %v1639, 0.5
  %v1641 = vadd.f32 %v1640, 0.5
  %v1642 = vmul.f32 %v1636, %v1572
  %v1643 = vadd.f32 %v1629, %v1642
  %v1644 = vtanh.pop %v1643
  %v1645 = vsub.f32 1.0, %v1641
  %v1646 = vsub.f32 %v1644, %v1414
  %v1647 = vmul.f32 %v1645, %v1646
  %v1648 = vadd.f32 %v1414, %v1647
  %v1649 = vld [vmem:[#allocation2 + $0x48] sm:$0xff]
  %v1650 = vld [vmem:[#allocation2 + $0x50] sm:$0xff]
  %v1651 = vld [vmem:[#allocation2 + $0x58] sm:$0xff]
  %v1652 = vpack.c.bf16 %v1648, %v1648
  %1653 = vmatpush.bf16.msra.mxu0 %v675
  %1654 = vmatpush.bf16.msra.mxu0 %v669
  %1655 = vmatpush.bf16.msra.mxu0 %v663
  %1656 = vmatpush.bf16.msra.mxu0 %v657
  %1657 = vmatpush.bf16.msra.mxu0 %v651
  %1658 = vmatpush.bf16.msra.mxu0 %v645
  %1659 = vmatpush.bf16.msra.mxu0 %v639
  %1660 = vmatpush.bf16.msra.mxu0 %v633
  %1661 = vmatmul.bf16.gmra.mxu0 %v1592
  %v1662 = vpop.f32.mrf.mxu0
  %v1663 = vadd.f32 %v330, %v1662
  %v1664 = vpop.f32.mrf.mxu0
  %1665 = vdwg.mxu0
  %1666 = vmatpush.bf16.msra.mxu0 %v723
  %1667 = vmatpush.bf16.msra.mxu0 %v717
  %1668 = vmatpush.bf16.msra.mxu0 %v711
  %1669 = vmatpush.bf16.msra.mxu0 %v705
  %1670 = vmatpush.bf16.msra.mxu0 %v699
  %1671 = vmatpush.bf16.msra.mxu0 %v693
  %1672 = vmatpush.bf16.msra.mxu0 %v687
  %1673 = vmatpush.bf16.msra.mxu0 %v681
  %1674 = vmatmul.bf16.gmra.mxu0 %v1652
  %v1675 = vpop.f32.mrf.mxu0
  %v1676 = vadd.f32 %v1663, %v1675
  %v1677 = vpop.f32.mrf.mxu0
  %1678 = vdwg.mxu0
  %1679 = vmatpush.bf16.msra.mxu0 %v676
  %1680 = vmatpush.bf16.msra.mxu0 %v670
  %1681 = vmatpush.bf16.msra.mxu0 %v664
  %1682 = vmatpush.bf16.msra.mxu0 %v658
  %1683 = vmatpush.bf16.msra.mxu0 %v652
  %1684 = vmatpush.bf16.msra.mxu0 %v646
  %1685 = vmatpush.bf16.msra.mxu0 %v640
  %1686 = vmatpush.bf16.msra.mxu0 %v634
  %1687 = vmatmul.bf16.gmra.mxu0 %v1592
  %v1688 = vpop.f32.mrf.mxu0
  %v1689 = vadd.f32 %v331, %v1688
  %v1690 = vpop.f32.mrf.mxu0
  %1691 = vdwg.mxu0
  %1692 = vmatpush.bf16.msra.mxu0 %v724
  %1693 = vmatpush.bf16.msra.mxu0 %v718
  %1694 = vmatpush.bf16.msra.mxu0 %v712
  %1695 = vmatpush.bf16.msra.mxu0 %v706
  %1696 = vmatpush.bf16.msra.mxu0 %v700
  %1697 = vmatpush.bf16.msra.mxu0 %v694
  %1698 = vmatpush.bf16.msra.mxu0 %v688
  %1699 = vmatpush.bf16.msra.mxu0 %v682
  %1700 = vmatmul.bf16.gmra.mxu0 %v1652
  %v1701 = vpop.f32.mrf.mxu0
  %v1702 = vadd.f32 %v1689, %v1701
  %v1703 = vpop.f32.mrf.mxu0
  %1704 = vdwg.mxu0
  %1705 = vmatpush.bf16.msra.mxu0 %v677
  %1706 = vmatpush.bf16.msra.mxu0 %v671
  %1707 = vmatpush.bf16.msra.mxu0 %v665
  %1708 = vmatpush.bf16.msra.mxu0 %v659
  %1709 = vmatpush.bf16.msra.mxu0 %v653
  %1710 = vmatpush.bf16.msra.mxu0 %v647
  %1711 = vmatpush.bf16.msra.mxu0 %v641
  %1712 = vmatpush.bf16.msra.mxu0 %v635
  %1713 = vmatmul.bf16.gmra.mxu0 %v1592
  %v1714 = vpop.f32.mrf.mxu0
  %v1715 = vadd.f32 %v332, %v1714
  %v1716 = vpop.f32.mrf.mxu0
  %1717 = vdwg.mxu0
  %1718 = vmatpush.bf16.msra.mxu0 %v725
  %1719 = vmatpush.bf16.msra.mxu0 %v719
  %1720 = vmatpush.bf16.msra.mxu0 %v713
  %1721 = vmatpush.bf16.msra.mxu0 %v707
  %1722 = vmatpush.bf16.msra.mxu0 %v701
  %1723 = vmatpush.bf16.msra.mxu0 %v695
  %1724 = vmatpush.bf16.msra.mxu0 %v689
  %1725 = vmatpush.bf16.msra.mxu0 %v683
  %1726 = vmatmul.bf16.gmra.mxu0 %v1652
  %v1727 = vpop.f32.mrf.mxu0
  %v1728 = vadd.f32 %v1715, %v1727
  %v1729 = vpop.f32.mrf.mxu0
  %1730 = vdwg.mxu0
  %1731 = vmatpush.bf16.msra.mxu0 %v678
  %1732 = vmatpush.bf16.msra.mxu0 %v672
  %1733 = vmatpush.bf16.msra.mxu0 %v666
  %1734 = vmatpush.bf16.msra.mxu0 %v660
  %1735 = vmatpush.bf16.msra.mxu0 %v654
  %1736 = vmatpush.bf16.msra.mxu0 %v648
  %1737 = vmatpush.bf16.msra.mxu0 %v642
  %1738 = vmatpush.bf16.msra.mxu0 %v636
  %1739 = vmatmul.bf16.gmra.mxu0 %v1592
  %v1740 = vpop.f32.mrf.mxu0
  %v1741 = vadd.f32 %v333, %v1740
  %v1742 = vpop.f32.mrf.mxu0
  %1743 = vdwg.mxu0
  %1744 = vmatpush.bf16.msra.mxu0 %v726
  %1745 = vmatpush.bf16.msra.mxu0 %v720
  %1746 = vmatpush.bf16.msra.mxu0 %v714
  %1747 = vmatpush.bf16.msra.mxu0 %v708
  %1748 = vmatpush.bf16.msra.mxu0 %v702
  %1749 = vmatpush.bf16.msra.mxu0 %v696
  %1750 = vmatpush.bf16.msra.mxu0 %v690
  %1751 = vmatpush.bf16.msra.mxu0 %v684
  %1752 = vmatmul.bf16.gmra.mxu0 %v1652
  %v1753 = vpop.f32.mrf.mxu0
  %v1754 = vadd.f32 %v1741, %v1753
  %v1755 = vpop.f32.mrf.mxu0
  %1756 = vdwg.mxu0
  %1757 = vmatpush.bf16.msra.mxu0 %v679
  %1758 = vmatpush.bf16.msra.mxu0 %v673
  %1759 = vmatpush.bf16.msra.mxu0 %v667
  %1760 = vmatpush.bf16.msra.mxu0 %v661
  %1761 = vmatpush.bf16.msra.mxu0 %v655
  %1762 = vmatpush.bf16.msra.mxu0 %v649
  %1763 = vmatpush.bf16.msra.mxu0 %v643
  %1764 = vmatpush.bf16.msra.mxu0 %v637
  %1765 = vmatmul.bf16.gmra.mxu0 %v1592
  %v1766 = vpop.f32.mrf.mxu0
  %v1767 = vadd.f32 %v334, %v1766
  %v1768 = vpop.f32.mrf.mxu0
  %1769 = vdwg.mxu0
  %1770 = vmatpush.bf16.msra.mxu0 %v727
  %1771 = vmatpush.bf16.msra.mxu0 %v721
  %1772 = vmatpush.bf16.msra.mxu0 %v715
  %1773 = vmatpush.bf16.msra.mxu0 %v709
  %1774 = vmatpush.bf16.msra.mxu0 %v703
  %1775 = vmatpush.bf16.msra.mxu0 %v697
  %1776 = vmatpush.bf16.msra.mxu0 %v691
  %1777 = vmatpush.bf16.msra.mxu0 %v685
  %1778 = vmatmul.bf16.gmra.mxu0 %v1652
  %v1779 = vpop.f32.mrf.mxu0
  %v1780 = vadd.f32 %v1767, %v1779
  %v1781 = vpop.f32.mrf.mxu0
  %1782 = vdwg.mxu0
  %1783 = vmatpush.bf16.msra.mxu0 %v680
  %1784 = vmatpush.bf16.msra.mxu0 %v674
  %1785 = vmatpush.bf16.msra.mxu0 %v668
  %1786 = vmatpush.bf16.msra.mxu0 %v662
  %1787 = vmatpush.bf16.msra.mxu0 %v656
  %1788 = vmatpush.bf16.msra.mxu0 %v650
  %1789 = vmatpush.bf16.msra.mxu0 %v644
  %1790 = vmatpush.bf16.msra.mxu0 %v638
  %1791 = vmatmul.bf16.gmra.mxu0 %v1592
  %v1792 = vpop.f32.mrf.mxu0
  %v1793 = vadd.f32 %v335, %v1792
  %v1794 = vpop.f32.mrf.mxu0
  %1795 = vdwg.mxu0
  %1796 = vmatpush.bf16.msra.mxu0 %v728
  %1797 = vmatpush.bf16.msra.mxu0 %v722
  %1798 = vmatpush.bf16.msra.mxu0 %v716
  %1799 = vmatpush.bf16.msra.mxu0 %v710
  %1800 = vmatpush.bf16.msra.mxu0 %v704
  %1801 = vmatpush.bf16.msra.mxu0 %v698
  %1802 = vmatpush.bf16.msra.mxu0 %v692
  %1803 = vmatpush.bf16.msra.mxu0 %v686
  %1804 = vmatmul.bf16.gmra.mxu0 %v1652
  %v1805 = vpop.f32.mrf.mxu0
  %v1806 = vadd.f32 %v1793, %v1805
  %v1807 = vpop.f32.mrf.mxu0
  %1808 = vdwg.mxu0
  %v1809 = vadd.f32 %v1649, %v1676
  %v1810 = vmul.f32 %v1809, 0.5
  %v1811 = vtanh.pop %v1810
  %v1812 = vmul.f32 %v1811, 0.5
  %v1813 = vadd.f32 %v1812, 0.5
  %v1814 = vadd.f32 %v1650, %v1702
  %v1815 = vmul.f32 %v1814, 0.5
  %v1816 = vtanh.pop %v1815
  %v1817 = vmul.f32 %v1816, 0.5
  %v1818 = vadd.f32 %v1817, 0.5
  %v1819 = vmul.f32 %v1813, %v1728
  %v1820 = vadd.f32 %v1651, %v1819
  %v1821 = vtanh.pop %v1820
  %v1822 = vsub.f32 1.0, %v1818
  %v1823 = vsub.f32 %v1821, %v1591
  %v1824 = vmul.f32 %v1822, %v1823
  %v1825 = vadd.f32 %v1591, %v1824
  %v1826 = vpack.c.bf16 %v1825, %v1825
  %1827 = vmatpush.bf16.msra.mxu0 %v1099
  %1828 = vmatpush.bf16.msra.mxu0 %v1096
  %1829 = vmatpush.bf16.msra.mxu0 %v1093
  %1830 = vmatpush.bf16.msra.mxu0 %v1090
  %1831 = vmatpush.bf16.msra.mxu0 %v1087
  %1832 = vmatpush.bf16.msra.mxu0 %v1084
  %1833 = vmatpush.bf16.msra.mxu0 %v1081
  %1834 = vmatpush.bf16.msra.mxu0 %v1078
  %1835 = vmatmul.bf16.gmra.mxu0 %v1826
  %v1836 = vpop.f32.mrf.mxu0
  %v1837 = vadd.f32 %v336, %v1836
  %v1838 = vpop.f32.mrf.mxu0
  %1839 = vdwg.mxu0
  %1840 = vmatpush.bf16.msra.mxu0 %v1100
  %1841 = vmatpush.bf16.msra.mxu0 %v1097
  %1842 = vmatpush.bf16.msra.mxu0 %v1094
  %1843 = vmatpush.bf16.msra.mxu0 %v1091
  %1844 = vmatpush.bf16.msra.mxu0 %v1088
  %1845 = vmatpush.bf16.msra.mxu0 %v1085
  %1846 = vmatpush.bf16.msra.mxu0 %v1082
  %1847 = vmatpush.bf16.msra.mxu0 %v1079
  %1848 = vmatmul.bf16.gmra.mxu0 %v1826
  %v1849 = vpop.f32.mrf.mxu0
  %v1850 = vadd.f32 %v337, %v1849
  %v1851 = vpop.f32.mrf.mxu0
  %1852 = vdwg.mxu0
  %1853 = vmatpush.bf16.msra.mxu0 %v1101
  %1854 = vmatpush.bf16.msra.mxu0 %v1098
  %1855 = vmatpush.bf16.msra.mxu0 %v1095
  %1856 = vmatpush.bf16.msra.mxu0 %v1092
  %1857 = vmatpush.bf16.msra.mxu0 %v1089
  %1858 = vmatpush.bf16.msra.mxu0 %v1086
  %1859 = vmatpush.bf16.msra.mxu0 %v1083
  %1860 = vmatpush.bf16.msra.mxu0 %v1080
  %1861 = vmatmul.bf16.gmra.mxu0 %v1826
  %v1862 = vpop.f32.mrf.mxu0
  %v1863 = vadd.f32 %v338, %v1862
  %v1864 = vpop.f32.mrf.mxu0
  %1865 = vdwg.mxu0
  %v1866 = vadd.f32 %v1837, %v1754
  %v1867 = vmul.f32 %v1866, 0.5
  %v1868 = vtanh.pop %v1867
  %v1869 = vmul.f32 %v1868, 0.5
  %v1870 = vadd.f32 %v1869, 0.5
  %v1871 = vadd.f32 %v1850, %v1780
  %v1872 = vmul.f32 %v1871, 0.5
  %v1873 = vtanh.pop %v1872
  %v1874 = vmul.f32 %v1873, 0.5
  %v1875 = vadd.f32 %v1874, 0.5
  %v1876 = vmul.f32 %v1870, %v1806
  %v1877 = vadd.f32 %v1863, %v1876
  %v1878 = vtanh.pop %v1877
  %v1879 = vsub.f32 1.0, %v1875
  %v1880 = vsub.f32 %v1878, %v1648
  %v1881 = vmul.f32 %v1879, %v1880
  %v1882 = vadd.f32 %v1648, %v1881
  %v1883 = vld [vmem:[#allocation2 + $0x60] sm:$0xff]
  %v1884 = vld [vmem:[#allocation2 + $0x68] sm:$0xff]
  %v1885 = vld [vmem:[#allocation2 + $0x70] sm:$0xff]
  %v1886 = vpack.c.bf16 %v1882, %v1882
  %1887 = vmatpush.bf16.msra.mxu0 %v675
  %1888 = vmatpush.bf16.msra.mxu0 %v669
  %1889 = vmatpush.bf16.msra.mxu0 %v663
  %1890 = vmatpush.bf16.msra.mxu0 %v657
  %1891 = vmatpush.bf16.msra.mxu0 %v651
  %1892 = vmatpush.bf16.msra.mxu0 %v645
  %1893 = vmatpush.bf16.msra.mxu0 %v639
  %1894 = vmatpush.bf16.msra.mxu0 %v633
  %1895 = vmatmul.bf16.gmra.mxu0 %v1826
  %v1896 = vpop.f32.mrf.mxu0
  %v1897 = vadd.f32 %v330, %v1896
  %v1898 = vpop.f32.mrf.mxu0
  %1899 = vdwg.mxu0
  %1900 = vmatpush.bf16.msra.mxu0 %v723
  %1901 = vmatpush.bf16.msra.mxu0 %v717
  %1902 = vmatpush.bf16.msra.mxu0 %v711
  %1903 = vmatpush.bf16.msra.mxu0 %v705
  %1904 = vmatpush.bf16.msra.mxu0 %v699
  %1905 = vmatpush.bf16.msra.mxu0 %v693
  %1906 = vmatpush.bf16.msra.mxu0 %v687
  %1907 = vmatpush.bf16.msra.mxu0 %v681
  %1908 = vmatmul.bf16.gmra.mxu0 %v1886
  %v1909 = vpop.f32.mrf.mxu0
  %v1910 = vadd.f32 %v1897, %v1909
  %v1911 = vpop.f32.mrf.mxu0
  %1912 = vdwg.mxu0
  %1913 = vmatpush.bf16.msra.mxu0 %v676
  %1914 = vmatpush.bf16.msra.mxu0 %v670
  %1915 = vmatpush.bf16.msra.mxu0 %v664
  %1916 = vmatpush.bf16.msra.mxu0 %v658
  %1917 = vmatpush.bf16.msra.mxu0 %v652
  %1918 = vmatpush.bf16.msra.mxu0 %v646
  %1919 = vmatpush.bf16.msra.mxu0 %v640
  %1920 = vmatpush.bf16.msra.mxu0 %v634
  %1921 = vmatmul.bf16.gmra.mxu0 %v1826
  %v1922 = vpop.f32.mrf.mxu0
  %v1923 = vadd.f32 %v331, %v1922
  %v1924 = vpop.f32.mrf.mxu0
  %1925 = vdwg.mxu0
  %1926 = vmatpush.bf16.msra.mxu0 %v724
  %1927 = vmatpush.bf16.msra.mxu0 %v718
  %1928 = vmatpush.bf16.msra.mxu0 %v712
  %1929 = vmatpush.bf16.msra.mxu0 %v706
  %1930 = vmatpush.bf16.msra.mxu0 %v700
  %1931 = vmatpush.bf16.msra.mxu0 %v694
  %1932 = vmatpush.bf16.msra.mxu0 %v688
  %1933 = vmatpush.bf16.msra.mxu0 %v682
  %1934 = vmatmul.bf16.gmra.mxu0 %v1886
  %v1935 = vpop.f32.mrf.mxu0
  %v1936 = vadd.f32 %v1923, %v1935
  %v1937 = vpop.f32.mrf.mxu0
  %1938 = vdwg.mxu0
  %1939 = vmatpush.bf16.msra.mxu0 %v677
  %1940 = vmatpush.bf16.msra.mxu0 %v671
  %1941 = vmatpush.bf16.msra.mxu0 %v665
  %1942 = vmatpush.bf16.msra.mxu0 %v659
  %1943 = vmatpush.bf16.msra.mxu0 %v653
  %1944 = vmatpush.bf16.msra.mxu0 %v647
  %1945 = vmatpush.bf16.msra.mxu0 %v641
  %1946 = vmatpush.bf16.msra.mxu0 %v635
  %1947 = vmatmul.bf16.gmra.mxu0 %v1826
  %v1948 = vpop.f32.mrf.mxu0
  %v1949 = vadd.f32 %v332, %v1948
  %v1950 = vpop.f32.mrf.mxu0
  %1951 = vdwg.mxu0
  %1952 = vmatpush.bf16.msra.mxu0 %v725
  %1953 = vmatpush.bf16.msra.mxu0 %v719
  %1954 = vmatpush.bf16.msra.mxu0 %v713
  %1955 = vmatpush.bf16.msra.mxu0 %v707
  %1956 = vmatpush.bf16.msra.mxu0 %v701
  %1957 = vmatpush.bf16.msra.mxu0 %v695
  %1958 = vmatpush.bf16.msra.mxu0 %v689
  %1959 = vmatpush.bf16.msra.mxu0 %v683
  %1960 = vmatmul.bf16.gmra.mxu0 %v1886
  %v1961 = vpop.f32.mrf.mxu0
  %v1962 = vadd.f32 %v1949, %v1961
  %v1963 = vpop.f32.mrf.mxu0
  %1964 = vdwg.mxu0
  %1965 = vmatpush.bf16.msra.mxu0 %v678
  %1966 = vmatpush.bf16.msra.mxu0 %v672
  %1967 = vmatpush.bf16.msra.mxu0 %v666
  %1968 = vmatpush.bf16.msra.mxu0 %v660
  %1969 = vmatpush.bf16.msra.mxu0 %v654
  %1970 = vmatpush.bf16.msra.mxu0 %v648
  %1971 = vmatpush.bf16.msra.mxu0 %v642
  %1972 = vmatpush.bf16.msra.mxu0 %v636
  %1973 = vmatmul.bf16.gmra.mxu0 %v1826
  %v1974 = vpop.f32.mrf.mxu0
  %v1975 = vadd.f32 %v333, %v1974
  %v1976 = vpop.f32.mrf.mxu0
  %1977 = vdwg.mxu0
  %1978 = vmatpush.bf16.msra.mxu0 %v726
  %1979 = vmatpush.bf16.msra.mxu0 %v720
  %1980 = vmatpush.bf16.msra.mxu0 %v714
  %1981 = vmatpush.bf16.msra.mxu0 %v708
  %1982 = vmatpush.bf16.msra.mxu0 %v702
  %1983 = vmatpush.bf16.msra.mxu0 %v696
  %1984 = vmatpush.bf16.msra.mxu0 %v690
  %1985 = vmatpush.bf16.msra.mxu0 %v684
  %1986 = vmatmul.bf16.gmra.mxu0 %v1886
  %v1987 = vpop.f32.mrf.mxu0
  %v1988 = vadd.f32 %v1975, %v1987
  %v1989 = vpop.f32.mrf.mxu0
  %1990 = vdwg.mxu0
  %1991 = vmatpush.bf16.msra.mxu0 %v679
  %1992 = vmatpush.bf16.msra.mxu0 %v673
  %1993 = vmatpush.bf16.msra.mxu0 %v667
  %1994 = vmatpush.bf16.msra.mxu0 %v661
  %1995 = vmatpush.bf16.msra.mxu0 %v655
  %1996 = vmatpush.bf16.msra.mxu0 %v649
  %1997 = vmatpush.bf16.msra.mxu0 %v643
  %1998 = vmatpush.bf16.msra.mxu0 %v637
  %1999 = vmatmul.bf16.gmra.mxu0 %v1826
  %v2000 = vpop.f32.mrf.mxu0
  %v2001 = vadd.f32 %v334, %v2000
  %v2002 = vpop.f32.mrf.mxu0
  %2003 = vdwg.mxu0
  %2004 = vmatpush.bf16.msra.mxu0 %v727
  %2005 = vmatpush.bf16.msra.mxu0 %v721
  %2006 = vmatpush.bf16.msra.mxu0 %v715
  %2007 = vmatpush.bf16.msra.mxu0 %v709
  %2008 = vmatpush.bf16.msra.mxu0 %v703
  %2009 = vmatpush.bf16.msra.mxu0 %v697
  %2010 = vmatpush.bf16.msra.mxu0 %v691
  %2011 = vmatpush.bf16.msra.mxu0 %v685
  %2012 = vmatmul.bf16.gmra.mxu0 %v1886
  %v2013 = vpop.f32.mrf.mxu0
  %v2014 = vadd.f32 %v2001, %v2013
  %v2015 = vpop.f32.mrf.mxu0
  %2016 = vdwg.mxu0
  %2017 = vmatpush.bf16.msra.mxu0 %v680
  %2018 = vmatpush.bf16.msra.mxu0 %v674
  %2019 = vmatpush.bf16.msra.mxu0 %v668
  %2020 = vmatpush.bf16.msra.mxu0 %v662
  %2021 = vmatpush.bf16.msra.mxu0 %v656
  %2022 = vmatpush.bf16.msra.mxu0 %v650
  %2023 = vmatpush.bf16.msra.mxu0 %v644
  %2024 = vmatpush.bf16.msra.mxu0 %v638
  %2025 = vmatmul.bf16.gmra.mxu0 %v1826
  %v2026 = vpop.f32.mrf.mxu0
  %v2027 = vadd.f32 %v335, %v2026
  %v2028 = vpop.f32.mrf.mxu0
  %2029 = vdwg.mxu0
  %2030 = vmatpush.bf16.msra.mxu0 %v728
  %2031 = vmatpush.bf16.msra.mxu0 %v722
  %2032 = vmatpush.bf16.msra.mxu0 %v716
  %2033 = vmatpush.bf16.msra.mxu0 %v710
  %2034 = vmatpush.bf16.msra.mxu0 %v704
  %2035 = vmatpush.bf16.msra.mxu0 %v698
  %2036 = vmatpush.bf16.msra.mxu0 %v692
  %2037 = vmatpush.bf16.msra.mxu0 %v686
  %2038 = vmatmul.bf16.gmra.mxu0 %v1886
  %v2039 = vpop.f32.mrf.mxu0
  %v2040 = vadd.f32 %v2027, %v2039
  %v2041 = vpop.f32.mrf.mxu0
  %2042 = vdwg.mxu0
  %v2043 = vadd.f32 %v1883, %v1910
  %v2044 = vmul.f32 %v2043, 0.5
  %v2045 = vtanh.pop %v2044
  %v2046 = vmul.f32 %v2045, 0.5
  %v2047 = vadd.f32 %v2046, 0.5
  %v2048 = vadd.f32 %v1884, %v1936
  %v2049 = vmul.f32 %v2048, 0.5
  %v2050 = vtanh.pop %v2049
  %v2051 = vmul.f32 %v2050, 0.5
  %v2052 = vadd.f32 %v2051, 0.5
  %v2053 = vmul.f32 %v2047, %v1962
  %v2054 = vadd.f32 %v1885, %v2053
  %v2055 = vtanh.pop %v2054
  %v2056 = vsub.f32 1.0, %v2052
  %v2057 = vsub.f32 %v2055, %v1825
  %v2058 = vmul.f32 %v2056, %v2057
  %v2059 = vadd.f32 %v1825, %v2058
  %v2060 = vpack.c.bf16 %v2059, %v2059
  %2061 = vmatpush.bf16.msra.mxu0 %v1099
  %2062 = vmatpush.bf16.msra.mxu0 %v1096
  %2063 = vmatpush.bf16.msra.mxu0 %v1093
  %2064 = vmatpush.bf16.msra.mxu0 %v1090
  %2065 = vmatpush.bf16.msra.mxu0 %v1087
  %2066 = vmatpush.bf16.msra.mxu0 %v1084
  %2067 = vmatpush.bf16.msra.mxu0 %v1081
  %2068 = vmatpush.bf16.msra.mxu0 %v1078
  %2069 = vmatmul.bf16.gmra.mxu0 %v2060
  %v2070 = vpop.f32.mrf.mxu0
  %v2071 = vadd.f32 %v336, %v2070
  %v2072 = vpop.f32.mrf.mxu0
  %2073 = vdwg.mxu0
  %2074 = vmatpush.bf16.msra.mxu0 %v1100
  %2075 = vmatpush.bf16.msra.mxu0 %v1097
  %2076 = vmatpush.bf16.msra.mxu0 %v1094
  %2077 = vmatpush.bf16.msra.mxu0 %v1091
  %2078 = vmatpush.bf16.msra.mxu0 %v1088
  %2079 = vmatpush.bf16.msra.mxu0 %v1085
  %2080 = vmatpush.bf16.msra.mxu0 %v1082
  %2081 = vmatpush.bf16.msra.mxu0 %v1079
  %2082 = vmatmul.bf16.gmra.mxu0 %v2060
  %v2083 = vpop.f32.mrf.mxu0
  %v2084 = vadd.f32 %v337, %v2083
  %v2085 = vpop.f32.mrf.mxu0
  %2086 = vdwg.mxu0
  %2087 = vmatpush.bf16.msra.mxu0 %v1101
  %2088 = vmatpush.bf16.msra.mxu0 %v1098
  %2089 = vmatpush.bf16.msra.mxu0 %v1095
  %2090 = vmatpush.bf16.msra.mxu0 %v1092
  %2091 = vmatpush.bf16.msra.mxu0 %v1089
  %2092 = vmatpush.bf16.msra.mxu0 %v1086
  %2093 = vmatpush.bf16.msra.mxu0 %v1083
  %2094 = vmatpush.bf16.msra.mxu0 %v1080
  %2095 = vmatmul.bf16.gmra.mxu0 %v2060
  %v2096 = vpop.f32.mrf.mxu0
  %v2097 = vadd.f32 %v338, %v2096
  %v2098 = vpop.f32.mrf.mxu0
  %2099 = vdwg.mxu0
  %v2100 = vadd.f32 %v2071, %v1988
  %v2101 = vmul.f32 %v2100, 0.5
  %v2102 = vtanh.pop %v2101
  %v2103 = vmul.f32 %v2102, 0.5
  %v2104 = vadd.f32 %v2103, 0.5
  %v2105 = vadd.f32 %v2084, %v2014
  %v2106 = vmul.f32 %v2105, 0.5
  %v2107 = vtanh.pop %v2106
  %v2108 = vmul.f32 %v2107, 0.5
  %v2109 = vadd.f32 %v2108, 0.5
  %v2110 = vmul.f32 %v2104, %v2040
  %v2111 = vadd.f32 %v2097, %v2110
  %v2112 = vtanh.pop %v2111
  %v2113 = vsub.f32 1.0, %v2109
  %v2114 = vsub.f32 %v2112, %v1882
  %v2115 = vmul.f32 %v2113, %v2114
  %v2116 = vadd.f32 %v1882, %v2115
  %v2117 = vld [vmem:[#allocation2 + $0x78] sm:$0xff]
  %v2118 = vld [vmem:[#allocation2 + $0x80] sm:$0xff]
  %v2119 = vld [vmem:[#allocation2 + $0x88] sm:$0xff]
  %v2120 = vpack.c.bf16 %v2116, %v2116
  %2121 = vmatpush.bf16.msra.mxu0 %v675
  %2122 = vmatpush.bf16.msra.mxu0 %v669
  %2123 = vmatpush.bf16.msra.mxu0 %v663
  %2124 = vmatpush.bf16.msra.mxu0 %v657
  %2125 = vmatpush.bf16.msra.mxu0 %v651
  %2126 = vmatpush.bf16.msra.mxu0 %v645
  %2127 = vmatpush.bf16.msra.mxu0 %v639
  %2128 = vmatpush.bf16.msra.mxu0 %v633
  %2129 = vmatmul.bf16.gmra.mxu0 %v2060
  %v2130 = vpop.f32.mrf.mxu0
  %v2131 = vadd.f32 %v330, %v2130
  %v2132 = vpop.f32.mrf.mxu0
  %2133 = vdwg.mxu0
  %2134 = vmatpush.bf16.msra.mxu0 %v723
  %2135 = vmatpush.bf16.msra.mxu0 %v717
  %2136 = vmatpush.bf16.msra.mxu0 %v711
  %2137 = vmatpush.bf16.msra.mxu0 %v705
  %2138 = vmatpush.bf16.msra.mxu0 %v699
  %2139 = vmatpush.bf16.msra.mxu0 %v693
  %2140 = vmatpush.bf16.msra.mxu0 %v687
  %2141 = vmatpush.bf16.msra.mxu0 %v681
  %2142 = vmatmul.bf16.gmra.mxu0 %v2120
  %v2143 = vpop.f32.mrf.mxu0
  %v2144 = vadd.f32 %v2131, %v2143
  %v2145 = vpop.f32.mrf.mxu0
  %2146 = vdwg.mxu0
  %2147 = vmatpush.bf16.msra.mxu0 %v676
  %2148 = vmatpush.bf16.msra.mxu0 %v670
  %2149 = vmatpush.bf16.msra.mxu0 %v664
  %2150 = vmatpush.bf16.msra.mxu0 %v658
  %2151 = vmatpush.bf16.msra.mxu0 %v652
  %2152 = vmatpush.bf16.msra.mxu0 %v646
  %2153 = vmatpush.bf16.msra.mxu0 %v640
  %2154 = vmatpush.bf16.msra.mxu0 %v634
  %2155 = vmatmul.bf16.gmra.mxu0 %v2060
  %v2156 = vpop.f32.mrf.mxu0
  %v2157 = vadd.f32 %v331, %v2156
  %v2158 = vpop.f32.mrf.mxu0
  %2159 = vdwg.mxu0
  %2160 = vmatpush.bf16.msra.mxu0 %v724
  %2161 = vmatpush.bf16.msra.mxu0 %v718
  %2162 = vmatpush.bf16.msra.mxu0 %v712
  %2163 = vmatpush.bf16.msra.mxu0 %v706
  %2164 = vmatpush.bf16.msra.mxu0 %v700
  %2165 = vmatpush.bf16.msra.mxu0 %v694
  %2166 = vmatpush.bf16.msra.mxu0 %v688
  %2167 = vmatpush.bf16.msra.mxu0 %v682
  %2168 = vmatmul.bf16.gmra.mxu0 %v2120
  %v2169 = vpop.f32.mrf.mxu0
  %v2170 = vadd.f32 %v2157, %v2169
  %v2171 = vpop.f32.mrf.mxu0
  %2172 = vdwg.mxu0
  %2173 = vmatpush.bf16.msra.mxu0 %v677
  %2174 = vmatpush.bf16.msra.mxu0 %v671
  %2175 = vmatpush.bf16.msra.mxu0 %v665
  %2176 = vmatpush.bf16.msra.mxu0 %v659
  %2177 = vmatpush.bf16.msra.mxu0 %v653
  %2178 = vmatpush.bf16.msra.mxu0 %v647
  %2179 = vmatpush.bf16.msra.mxu0 %v641
  %2180 = vmatpush.bf16.msra.mxu0 %v635
  %2181 = vmatmul.bf16.gmra.mxu0 %v2060
  %v2182 = vpop.f32.mrf.mxu0
  %v2183 = vadd.f32 %v332, %v2182
  %v2184 = vpop.f32.mrf.mxu0
  %2185 = vdwg.mxu0
  %2186 = vmatpush.bf16.msra.mxu0 %v725
  %2187 = vmatpush.bf16.msra.mxu0 %v719
  %2188 = vmatpush.bf16.msra.mxu0 %v713
  %2189 = vmatpush.bf16.msra.mxu0 %v707
  %2190 = vmatpush.bf16.msra.mxu0 %v701
  %2191 = vmatpush.bf16.msra.mxu0 %v695
  %2192 = vmatpush.bf16.msra.mxu0 %v689
  %2193 = vmatpush.bf16.msra.mxu0 %v683
  %2194 = vmatmul.bf16.gmra.mxu0 %v2120
  %v2195 = vpop.f32.mrf.mxu0
  %v2196 = vadd.f32 %v2183, %v2195
  %v2197 = vpop.f32.mrf.mxu0
  %2198 = vdwg.mxu0
  %2199 = vmatpush.bf16.msra.mxu0 %v678
  %2200 = vmatpush.bf16.msra.mxu0 %v672
  %2201 = vmatpush.bf16.msra.mxu0 %v666
  %2202 = vmatpush.bf16.msra.mxu0 %v660
  %2203 = vmatpush.bf16.msra.mxu0 %v654
  %2204 = vmatpush.bf16.msra.mxu0 %v648
  %2205 = vmatpush.bf16.msra.mxu0 %v642
  %2206 = vmatpush.bf16.msra.mxu0 %v636
  %2207 = vmatmul.bf16.gmra.mxu0 %v2060
  %v2208 = vpop.f32.mrf.mxu0
  %v2209 = vadd.f32 %v333, %v2208
  %v2210 = vpop.f32.mrf.mxu0
  %2211 = vdwg.mxu0
  %2212 = vmatpush.bf16.msra.mxu0 %v726
  %2213 = vmatpush.bf16.msra.mxu0 %v720
  %2214 = vmatpush.bf16.msra.mxu0 %v714
  %2215 = vmatpush.bf16.msra.mxu0 %v708
  %2216 = vmatpush.bf16.msra.mxu0 %v702
  %2217 = vmatpush.bf16.msra.mxu0 %v696
  %2218 = vmatpush.bf16.msra.mxu0 %v690
  %2219 = vmatpush.bf16.msra.mxu0 %v684
  %2220 = vmatmul.bf16.gmra.mxu0 %v2120
  %v2221 = vpop.f32.mrf.mxu0
  %v2222 = vadd.f32 %v2209, %v2221
  %v2223 = vpop.f32.mrf.mxu0
  %2224 = vdwg.mxu0
  %2225 = vmatpush.bf16.msra.mxu0 %v679
  %2226 = vmatpush.bf16.msra.mxu0 %v673
  %2227 = vmatpush.bf16.msra.mxu0 %v667
  %2228 = vmatpush.bf16.msra.mxu0 %v661
  %2229 = vmatpush.bf16.msra.mxu0 %v655
  %2230 = vmatpush.bf16.msra.mxu0 %v649
  %2231 = vmatpush.bf16.msra.mxu0 %v643
  %2232 = vmatpush.bf16.msra.mxu0 %v637
  %2233 = vmatmul.bf16.gmra.mxu0 %v2060
  %v2234 = vpop.f32.mrf.mxu0
  %v2235 = vadd.f32 %v334, %v2234
  %v2236 = vpop.f32.mrf.mxu0
  %2237 = vdwg.mxu0
  %2238 = vmatpush.bf16.msra.mxu0 %v727
  %2239 = vmatpush.bf16.msra.mxu0 %v721
  %2240 = vmatpush.bf16.msra.mxu0 %v715
  %2241 = vmatpush.bf16.msra.mxu0 %v709
  %2242 = vmatpush.bf16.msra.mxu0 %v703
  %2243 = vmatpush.bf16.msra.mxu0 %v697
  %2244 = vmatpush.bf16.msra.mxu0 %v691
  %2245 = vmatpush.bf16.msra.mxu0 %v685
  %2246 = vmatmul.bf16.gmra.mxu0 %v2120
  %v2247 = vpop.f32.mrf.mxu0
  %v2248 = vadd.f32 %v2235, %v2247
  %v2249 = vpop.f32.mrf.mxu0
  %2250 = vdwg.mxu0
  %2251 = vmatpush.bf16.msra.mxu0 %v680
  %2252 = vmatpush.bf16.msra.mxu0 %v674
  %2253 = vmatpush.bf16.msra.mxu0 %v668
  %2254 = vmatpush.bf16.msra.mxu0 %v662
  %2255 = vmatpush.bf16.msra.mxu0 %v656
  %2256 = vmatpush.bf16.msra.mxu0 %v650
  %2257 = vmatpush.bf16.msra.mxu0 %v644
  %2258 = vmatpush.bf16.msra.mxu0 %v638
  %2259 = vmatmul.bf16.gmra.mxu0 %v2060
  %v2260 = vpop.f32.mrf.mxu0
  %v2261 = vadd.f32 %v335, %v2260
  %v2262 = vpop.f32.mrf.mxu0
  %2263 = vdwg.mxu0
  %2264 = vmatpush.bf16.msra.mxu0 %v728
  %2265 = vmatpush.bf16.msra.mxu0 %v722
  %2266 = vmatpush.bf16.msra.mxu0 %v716
  %2267 = vmatpush.bf16.msra.mxu0 %v710
  %2268 = vmatpush.bf16.msra.mxu0 %v704
  %2269 = vmatpush.bf16.msra.mxu0 %v698
  %2270 = vmatpush.bf16.msra.mxu0 %v692
  %2271 = vmatpush.bf16.msra.mxu0 %v686
  %2272 = vmatmul.bf16.gmra.mxu0 %v2120
  %v2273 = vpop.f32.mrf.mxu0
  %v2274 = vadd.f32 %v2261, %v2273
  %v2275 = vpop.f32.mrf.mxu0
  %2276 = vdwg.mxu0
  %v2277 = vadd.f32 %v2117, %v2144
  %v2278 = vmul.f32 %v2277, 0.5
  %v2279 = vtanh.pop %v2278
  %v2280 = vmul.f32 %v2279, 0.5
  %v2281 = vadd.f32 %v2280, 0.5
  %v2282 = vadd.f32 %v2118, %v2170
  %v2283 = vmul.f32 %v2282, 0.5
  %v2284 = vtanh.pop %v2283
  %v2285 = vmul.f32 %v2284, 0.5
  %v2286 = vadd.f32 %v2285, 0.5
  %v2287 = vmul.f32 %v2281, %v2196
  %v2288 = vadd.f32 %v2119, %v2287
  %v2289 = vtanh.pop %v2288
  %v2290 = vsub.f32 1.0, %v2286
  %v2291 = vsub.f32 %v2289, %v2059
  %v2292 = vmul.f32 %v2290, %v2291
  %v2293 = vadd.f32 %v2059, %v2292
  %v2294 = vpack.c.bf16 %v2293, %v2293
  %2295 = vmatpush.bf16.msra.mxu0 %v1099
  %2296 = vmatpush.bf16.msra.mxu0 %v1096
  %2297 = vmatpush.bf16.msra.mxu0 %v1093
  %2298 = vmatpush.bf16.msra.mxu0 %v1090
  %2299 = vmatpush.bf16.msra.mxu0 %v1087
  %2300 = vmatpush.bf16.msra.mxu0 %v1084
  %2301 = vmatpush.bf16.msra.mxu0 %v1081
  %2302 = vmatpush.bf16.msra.mxu0 %v1078
  %2303 = vmatmul.bf16.gmra.mxu0 %v2294
  %v2304 = vpop.f32.mrf.mxu0
  %v2305 = vadd.f32 %v336, %v2304
  %v2306 = vpop.f32.mrf.mxu0
  %2307 = vdwg.mxu0
  %2308 = vmatpush.bf16.msra.mxu0 %v1100
  %2309 = vmatpush.bf16.msra.mxu0 %v1097
  %2310 = vmatpush.bf16.msra.mxu0 %v1094
  %2311 = vmatpush.bf16.msra.mxu0 %v1091
  %2312 = vmatpush.bf16.msra.mxu0 %v1088
  %2313 = vmatpush.bf16.msra.mxu0 %v1085
  %2314 = vmatpush.bf16.msra.mxu0 %v1082
  %2315 = vmatpush.bf16.msra.mxu0 %v1079
  %2316 = vmatmul.bf16.gmra.mxu0 %v2294
  %v2317 = vpop.f32.mrf.mxu0
  %v2318 = vadd.f32 %v337, %v2317
  %v2319 = vpop.f32.mrf.mxu0
  %2320 = vdwg.mxu0
  %2321 = vmatpush.bf16.msra.mxu0 %v1101
  %2322 = vmatpush.bf16.msra.mxu0 %v1098
  %2323 = vmatpush.bf16.msra.mxu0 %v1095
  %2324 = vmatpush.bf16.msra.mxu0 %v1092
  %2325 = vmatpush.bf16.msra.mxu0 %v1089
  %2326 = vmatpush.bf16.msra.mxu0 %v1086
  %2327 = vmatpush.bf16.msra.mxu0 %v1083
  %2328 = vmatpush.bf16.msra.mxu0 %v1080
  %2329 = vmatmul.bf16.gmra.mxu0 %v2294
  %v2330 = vpop.f32.mrf.mxu0
  %v2331 = vadd.f32 %v338, %v2330
  %v2332 = vpop.f32.mrf.mxu0
  %2333 = vdwg.mxu0
  %v2334 = vadd.f32 %v2305, %v2222
  %v2335 = vmul.f32 %v2334, 0.5
  %v2336 = vtanh.pop %v2335
  %v2337 = vmul.f32 %v2336, 0.5
  %v2338 = vadd.f32 %v2337, 0.5
  %v2339 = vadd.f32 %v2318, %v2248
  %v2340 = vmul.f32 %v2339, 0.5
  %v2341 = vtanh.pop %v2340
  %v2342 = vmul.f32 %v2341, 0.5
  %v2343 = vadd.f32 %v2342, 0.5
  %v2344 = vmul.f32 %v2338, %v2274
  %v2345 = vadd.f32 %v2331, %v2344
  %v2346 = vtanh.pop %v2345
  %v2347 = vsub.f32 1.0, %v2343
  %v2348 = vsub.f32 %v2346, %v2116
  %v2349 = vmul.f32 %v2347, %v2348
  %v2350 = vadd.f32 %v2116, %v2349
  %v2351 = vld [vmem:[#allocation2 + $0x90] sm:$0xff]
  %v2352 = vld [vmem:[#allocation2 + $0x98] sm:$0xff]
  %v2353 = vld [vmem:[#allocation2 + $0xa0] sm:$0xff]
  %v2354 = vpack.c.bf16 %v2350, %v2350
  %2355 = vmatpush.bf16.msra.mxu0 %v675
  %2356 = vmatpush.bf16.msra.mxu0 %v669
  %2357 = vmatpush.bf16.msra.mxu0 %v663
  %2358 = vmatpush.bf16.msra.mxu0 %v657
  %2359 = vmatpush.bf16.msra.mxu0 %v651
  %2360 = vmatpush.bf16.msra.mxu0 %v645
  %2361 = vmatpush.bf16.msra.mxu0 %v639
  %2362 = vmatpush.bf16.msra.mxu0 %v633
  %2363 = vmatmul.bf16.gmra.mxu0 %v2294
  %v2364 = vpop.f32.mrf.mxu0
  %v2365 = vadd.f32 %v330, %v2364
  %v2366 = vpop.f32.mrf.mxu0
  %2367 = vdwg.mxu0
  %2368 = vmatpush.bf16.msra.mxu0 %v723
  %2369 = vmatpush.bf16.msra.mxu0 %v717
  %2370 = vmatpush.bf16.msra.mxu0 %v711
  %2371 = vmatpush.bf16.msra.mxu0 %v705
  %2372 = vmatpush.bf16.msra.mxu0 %v699
  %2373 = vmatpush.bf16.msra.mxu0 %v693
  %2374 = vmatpush.bf16.msra.mxu0 %v687
  %2375 = vmatpush.bf16.msra.mxu0 %v681
  %2376 = vmatmul.bf16.gmra.mxu0 %v2354
  %v2377 = vpop.f32.mrf.mxu0
  %v2378 = vadd.f32 %v2365, %v2377
  %v2379 = vpop.f32.mrf.mxu0
  %2380 = vdwg.mxu0
  %2381 = vmatpush.bf16.msra.mxu0 %v676
  %2382 = vmatpush.bf16.msra.mxu0 %v670
  %2383 = vmatpush.bf16.msra.mxu0 %v664
  %2384 = vmatpush.bf16.msra.mxu0 %v658
  %2385 = vmatpush.bf16.msra.mxu0 %v652
  %2386 = vmatpush.bf16.msra.mxu0 %v646
  %2387 = vmatpush.bf16.msra.mxu0 %v640
  %2388 = vmatpush.bf16.msra.mxu0 %v634
  %2389 = vmatmul.bf16.gmra.mxu0 %v2294
  %v2390 = vpop.f32.mrf.mxu0
  %v2391 = vadd.f32 %v331, %v2390
  %v2392 = vpop.f32.mrf.mxu0
  %2393 = vdwg.mxu0
  %2394 = vmatpush.bf16.msra.mxu0 %v724
  %2395 = vmatpush.bf16.msra.mxu0 %v718
  %2396 = vmatpush.bf16.msra.mxu0 %v712
  %2397 = vmatpush.bf16.msra.mxu0 %v706
  %2398 = vmatpush.bf16.msra.mxu0 %v700
  %2399 = vmatpush.bf16.msra.mxu0 %v694
  %2400 = vmatpush.bf16.msra.mxu0 %v688
  %2401 = vmatpush.bf16.msra.mxu0 %v682
  %2402 = vmatmul.bf16.gmra.mxu0 %v2354
  %v2403 = vpop.f32.mrf.mxu0
  %v2404 = vadd.f32 %v2391, %v2403
  %v2405 = vpop.f32.mrf.mxu0
  %2406 = vdwg.mxu0
  %2407 = vmatpush.bf16.msra.mxu0 %v677
  %2408 = vmatpush.bf16.msra.mxu0 %v671
  %2409 = vmatpush.bf16.msra.mxu0 %v665
  %2410 = vmatpush.bf16.msra.mxu0 %v659
  %2411 = vmatpush.bf16.msra.mxu0 %v653
  %2412 = vmatpush.bf16.msra.mxu0 %v647
  %2413 = vmatpush.bf16.msra.mxu0 %v641
  %2414 = vmatpush.bf16.msra.mxu0 %v635
  %2415 = vmatmul.bf16.gmra.mxu0 %v2294
  %v2416 = vpop.f32.mrf.mxu0
  %v2417 = vadd.f32 %v332, %v2416
  %v2418 = vpop.f32.mrf.mxu0
  %2419 = vdwg.mxu0
  %2420 = vmatpush.bf16.msra.mxu0 %v725
  %2421 = vmatpush.bf16.msra.mxu0 %v719
  %2422 = vmatpush.bf16.msra.mxu0 %v713
  %2423 = vmatpush.bf16.msra.mxu0 %v707
  %2424 = vmatpush.bf16.msra.mxu0 %v701
  %2425 = vmatpush.bf16.msra.mxu0 %v695
  %2426 = vmatpush.bf16.msra.mxu0 %v689
  %2427 = vmatpush.bf16.msra.mxu0 %v683
  %2428 = vmatmul.bf16.gmra.mxu0 %v2354
  %v2429 = vpop.f32.mrf.mxu0
  %v2430 = vadd.f32 %v2417, %v2429
  %v2431 = vpop.f32.mrf.mxu0
  %2432 = vdwg.mxu0
  %2433 = vmatpush.bf16.msra.mxu0 %v678
  %2434 = vmatpush.bf16.msra.mxu0 %v672
  %2435 = vmatpush.bf16.msra.mxu0 %v666
  %2436 = vmatpush.bf16.msra.mxu0 %v660
  %2437 = vmatpush.bf16.msra.mxu0 %v654
  %2438 = vmatpush.bf16.msra.mxu0 %v648
  %2439 = vmatpush.bf16.msra.mxu0 %v642
  %2440 = vmatpush.bf16.msra.mxu0 %v636
  %2441 = vmatmul.bf16.gmra.mxu0 %v2294
  %v2442 = vpop.f32.mrf.mxu0
  %v2443 = vadd.f32 %v333, %v2442
  %v2444 = vpop.f32.mrf.mxu0
  %2445 = vdwg.mxu0
  %2446 = vmatpush.bf16.msra.mxu0 %v726
  %2447 = vmatpush.bf16.msra.mxu0 %v720
  %2448 = vmatpush.bf16.msra.mxu0 %v714
  %2449 = vmatpush.bf16.msra.mxu0 %v708
  %2450 = vmatpush.bf16.msra.mxu0 %v702
  %2451 = vmatpush.bf16.msra.mxu0 %v696
  %2452 = vmatpush.bf16.msra.mxu0 %v690
  %2453 = vmatpush.bf16.msra.mxu0 %v684
  %2454 = vmatmul.bf16.gmra.mxu0 %v2354
  %v2455 = vpop.f32.mrf.mxu0
  %v2456 = vadd.f32 %v2443, %v2455
  %v2457 = vpop.f32.mrf.mxu0
  %2458 = vdwg.mxu0
  %2459 = vmatpush.bf16.msra.mxu0 %v679
  %2460 = vmatpush.bf16.msra.mxu0 %v673
  %2461 = vmatpush.bf16.msra.mxu0 %v667
  %2462 = vmatpush.bf16.msra.mxu0 %v661
  %2463 = vmatpush.bf16.msra.mxu0 %v655
  %2464 = vmatpush.bf16.msra.mxu0 %v649
  %2465 = vmatpush.bf16.msra.mxu0 %v643
  %2466 = vmatpush.bf16.msra.mxu0 %v637
  %2467 = vmatmul.bf16.gmra.mxu0 %v2294
  %v2468 = vpop.f32.mrf.mxu0
  %v2469 = vadd.f32 %v334, %v2468
  %v2470 = vpop.f32.mrf.mxu0
  %2471 = vdwg.mxu0
  %2472 = vmatpush.bf16.msra.mxu0 %v727
  %2473 = vmatpush.bf16.msra.mxu0 %v721
  %2474 = vmatpush.bf16.msra.mxu0 %v715
  %2475 = vmatpush.bf16.msra.mxu0 %v709
  %2476 = vmatpush.bf16.msra.mxu0 %v703
  %2477 = vmatpush.bf16.msra.mxu0 %v697
  %2478 = vmatpush.bf16.msra.mxu0 %v691
  %2479 = vmatpush.bf16.msra.mxu0 %v685
  %2480 = vmatmul.bf16.gmra.mxu0 %v2354
  %v2481 = vpop.f32.mrf.mxu0
  %v2482 = vadd.f32 %v2469, %v2481
  %v2483 = vpop.f32.mrf.mxu0
  %2484 = vdwg.mxu0
  %2485 = vmatpush.bf16.msra.mxu0 %v680
  %2486 = vmatpush.bf16.msra.mxu0 %v674
  %2487 = vmatpush.bf16.msra.mxu0 %v668
  %2488 = vmatpush.bf16.msra.mxu0 %v662
  %2489 = vmatpush.bf16.msra.mxu0 %v656
  %2490 = vmatpush.bf16.msra.mxu0 %v650
  %2491 = vmatpush.bf16.msra.mxu0 %v644
  %2492 = vmatpush.bf16.msra.mxu0 %v638
  %2493 = vmatmul.bf16.gmra.mxu0 %v2294
  %v2494 = vpop.f32.mrf.mxu0
  %v2495 = vadd.f32 %v335, %v2494
  %v2496 = vpop.f32.mrf.mxu0
  %2497 = vdwg.mxu0
  %2498 = vmatpush.bf16.msra.mxu0 %v728
  %2499 = vmatpush.bf16.msra.mxu0 %v722
  %2500 = vmatpush.bf16.msra.mxu0 %v716
  %2501 = vmatpush.bf16.msra.mxu0 %v710
  %2502 = vmatpush.bf16.msra.mxu0 %v704
  %2503 = vmatpush.bf16.msra.mxu0 %v698
  %2504 = vmatpush.bf16.msra.mxu0 %v692
  %2505 = vmatpush.bf16.msra.mxu0 %v686
  %2506 = vmatmul.bf16.gmra.mxu0 %v2354
  %v2507 = vpop.f32.mrf.mxu0
  %v2508 = vadd.f32 %v2495, %v2507
  %v2509 = vpop.f32.mrf.mxu0
  %2510 = vdwg.mxu0
  %v2511 = vadd.f32 %v2351, %v2378
  %v2512 = vmul.f32 %v2511, 0.5
  %v2513 = vtanh.pop %v2512
  %v2514 = vmul.f32 %v2513, 0.5
  %v2515 = vadd.f32 %v2514, 0.5
  %v2516 = vadd.f32 %v2352, %v2404
  %v2517 = vmul.f32 %v2516, 0.5
  %v2518 = vtanh.pop %v2517
  %v2519 = vmul.f32 %v2518, 0.5
  %v2520 = vadd.f32 %v2519, 0.5
  %v2521 = vmul.f32 %v2515, %v2430
  %v2522 = vadd.f32 %v2353, %v2521
  %v2523 = vtanh.pop %v2522
  %v2524 = vsub.f32 1.0, %v2520
  %v2525 = vsub.f32 %v2523, %v2293
  %v2526 = vmul.f32 %v2524, %v2525
  %v2527 = vadd.f32 %v2293, %v2526
  %v2528 = vpack.c.bf16 %v2527, %v2527
  %2529 = vmatpush.bf16.msra.mxu0 %v1099
  %2530 = vmatpush.bf16.msra.mxu0 %v1096
  %2531 = vmatpush.bf16.msra.mxu0 %v1093
  %2532 = vmatpush.bf16.msra.mxu0 %v1090
  %2533 = vmatpush.bf16.msra.mxu0 %v1087
  %2534 = vmatpush.bf16.msra.mxu0 %v1084
  %2535 = vmatpush.bf16.msra.mxu0 %v1081
  %2536 = vmatpush.bf16.msra.mxu0 %v1078
  %2537 = vmatmul.bf16.gmra.mxu0 %v2528
  %v2538 = vpop.f32.mrf.mxu0
  %v2539 = vadd.f32 %v336, %v2538
  %v2540 = vpop.f32.mrf.mxu0
  %2541 = vdwg.mxu0
  %2542 = vmatpush.bf16.msra.mxu0 %v1100
  %2543 = vmatpush.bf16.msra.mxu0 %v1097
  %2544 = vmatpush.bf16.msra.mxu0 %v1094
  %2545 = vmatpush.bf16.msra.mxu0 %v1091
  %2546 = vmatpush.bf16.msra.mxu0 %v1088
  %2547 = vmatpush.bf16.msra.mxu0 %v1085
  %2548 = vmatpush.bf16.msra.mxu0 %v1082
  %2549 = vmatpush.bf16.msra.mxu0 %v1079
  %2550 = vmatmul.bf16.gmra.mxu0 %v2528
  %v2551 = vpop.f32.mrf.mxu0
  %v2552 = vadd.f32 %v337, %v2551
  %v2553 = vpop.f32.mrf.mxu0
  %2554 = vdwg.mxu0
  %2555 = vmatpush.bf16.msra.mxu0 %v1101
  %2556 = vmatpush.bf16.msra.mxu0 %v1098
  %2557 = vmatpush.bf16.msra.mxu0 %v1095
  %2558 = vmatpush.bf16.msra.mxu0 %v1092
  %2559 = vmatpush.bf16.msra.mxu0 %v1089
  %2560 = vmatpush.bf16.msra.mxu0 %v1086
  %2561 = vmatpush.bf16.msra.mxu0 %v1083
  %2562 = vmatpush.bf16.msra.mxu0 %v1080
  %2563 = vmatmul.bf16.gmra.mxu0 %v2528
  %v2564 = vpop.f32.mrf.mxu0
  %v2565 = vadd.f32 %v338, %v2564
  %v2566 = vpop.f32.mrf.mxu0
  %2567 = vdwg.mxu0
  %v2568 = vadd.f32 %v2539, %v2456
  %v2569 = vmul.f32 %v2568, 0.5
  %v2570 = vtanh.pop %v2569
  %v2571 = vmul.f32 %v2570, 0.5
  %v2572 = vadd.f32 %v2571, 0.5
  %v2573 = vadd.f32 %v2552, %v2482
  %v2574 = vmul.f32 %v2573, 0.5
  %v2575 = vtanh.pop %v2574
  %v2576 = vmul.f32 %v2575, 0.5
  %v2577 = vadd.f32 %v2576, 0.5
  %v2578 = vmul.f32 %v2572, %v2508
  %v2579 = vadd.f32 %v2565, %v2578
  %v2580 = vtanh.pop %v2579
  %v2581 = vsub.f32 1.0, %v2577
  %v2582 = vsub.f32 %v2580, %v2350
  %v2583 = vmul.f32 %v2581, %v2582
  %v2584 = vadd.f32 %v2350, %v2583
  %v2585 = vld [vmem:[#allocation2 + $0xa8] sm:$0xff]
  %v2586 = vld [vmem:[#allocation2 + $0xb0] sm:$0xff]
  %v2587 = vld [vmem:[#allocation2 + $0xb8] sm:$0xff]
  %v2588 = vpack.c.bf16 %v2584, %v2584
  %2589 = vmatpush.bf16.msra.mxu0 %v675
  %2590 = vmatpush.bf16.msra.mxu0 %v669
  %2591 = vmatpush.bf16.msra.mxu0 %v663
  %2592 = vmatpush.bf16.msra.mxu0 %v657
  %2593 = vmatpush.bf16.msra.mxu0 %v651
  %2594 = vmatpush.bf16.msra.mxu0 %v645
  %2595 = vmatpush.bf16.msra.mxu0 %v639
  %2596 = vmatpush.bf16.msra.mxu0 %v633
  %2597 = vmatmul.bf16.gmra.mxu0 %v2528
  %v2598 = vpop.f32.mrf.mxu0
  %v2599 = vadd.f32 %v330, %v2598
  %v2600 = vpop.f32.mrf.mxu0
  %2601 = vdwg.mxu0
  %2602 = vmatpush.bf16.msra.mxu0 %v723
  %2603 = vmatpush.bf16.msra.mxu0 %v717
  %2604 = vmatpush.bf16.msra.mxu0 %v711
  %2605 = vmatpush.bf16.msra.mxu0 %v705
  %2606 = vmatpush.bf16.msra.mxu0 %v699
  %2607 = vmatpush.bf16.msra.mxu0 %v693
  %2608 = vmatpush.bf16.msra.mxu0 %v687
  %2609 = vmatpush.bf16.msra.mxu0 %v681
  %2610 = vmatmul.bf16.gmra.mxu0 %v2588
  %v2611 = vpop.f32.mrf.mxu0
  %v2612 = vadd.f32 %v2599, %v2611
  %v2613 = vpop.f32.mrf.mxu0
  %2614 = vdwg.mxu0
  %2615 = vmatpush.bf16.msra.mxu0 %v676
  %2616 = vmatpush.bf16.msra.mxu0 %v670
  %2617 = vmatpush.bf16.msra.mxu0 %v664
  %2618 = vmatpush.bf16.msra.mxu0 %v658
  %2619 = vmatpush.bf16.msra.mxu0 %v652
  %2620 = vmatpush.bf16.msra.mxu0 %v646
  %2621 = vmatpush.bf16.msra.mxu0 %v640
  %2622 = vmatpush.bf16.msra.mxu0 %v634
  %2623 = vmatmul.bf16.gmra.mxu0 %v2528
  %v2624 = vpop.f32.mrf.mxu0
  %v2625 = vadd.f32 %v331, %v2624
  %v2626 = vpop.f32.mrf.mxu0
  %2627 = vdwg.mxu0
  %2628 = vmatpush.bf16.msra.mxu0 %v724
  %2629 = vmatpush.bf16.msra.mxu0 %v718
  %2630 = vmatpush.bf16.msra.mxu0 %v712
  %2631 = vmatpush.bf16.msra.mxu0 %v706
  %2632 = vmatpush.bf16.msra.mxu0 %v700
  %2633 = vmatpush.bf16.msra.mxu0 %v694
  %2634 = vmatpush.bf16.msra.mxu0 %v688
  %2635 = vmatpush.bf16.msra.mxu0 %v682
  %2636 = vmatmul.bf16.gmra.mxu0 %v2588
  %v2637 = vpop.f32.mrf.mxu0
  %v2638 = vadd.f32 %v2625, %v2637
  %v2639 = vpop.f32.mrf.mxu0
  %2640 = vdwg.mxu0
  %2641 = vmatpush.bf16.msra.mxu0 %v677
  %2642 = vmatpush.bf16.msra.mxu0 %v671
  %2643 = vmatpush.bf16.msra.mxu0 %v665
  %2644 = vmatpush.bf16.msra.mxu0 %v659
  %2645 = vmatpush.bf16.msra.mxu0 %v653
  %2646 = vmatpush.bf16.msra.mxu0 %v647
  %2647 = vmatpush.bf16.msra.mxu0 %v641
  %2648 = vmatpush.bf16.msra.mxu0 %v635
  %2649 = vmatmul.bf16.gmra.mxu0 %v2528
  %v2650 = vpop.f32.mrf.mxu0
  %v2651 = vadd.f32 %v332, %v2650
  %v2652 = vpop.f32.mrf.mxu0
  %2653 = vdwg.mxu0
  %2654 = vmatpush.bf16.msra.mxu0 %v725
  %2655 = vmatpush.bf16.msra.mxu0 %v719
  %2656 = vmatpush.bf16.msra.mxu0 %v713
  %2657 = vmatpush.bf16.msra.mxu0 %v707
  %2658 = vmatpush.bf16.msra.mxu0 %v701
  %2659 = vmatpush.bf16.msra.mxu0 %v695
  %2660 = vmatpush.bf16.msra.mxu0 %v689
  %2661 = vmatpush.bf16.msra.mxu0 %v683
  %2662 = vmatmul.bf16.gmra.mxu0 %v2588
  %v2663 = vpop.f32.mrf.mxu0
  %v2664 = vadd.f32 %v2651, %v2663
  %v2665 = vpop.f32.mrf.mxu0
  %2666 = vdwg.mxu0
  %2667 = vmatpush.bf16.msra.mxu0 %v678
  %2668 = vmatpush.bf16.msra.mxu0 %v672
  %2669 = vmatpush.bf16.msra.mxu0 %v666
  %2670 = vmatpush.bf16.msra.mxu0 %v660
  %2671 = vmatpush.bf16.msra.mxu0 %v654
  %2672 = vmatpush.bf16.msra.mxu0 %v648
  %2673 = vmatpush.bf16.msra.mxu0 %v642
  %2674 = vmatpush.bf16.msra.mxu0 %v636
  %2675 = vmatmul.bf16.gmra.mxu0 %v2528
  %v2676 = vpop.f32.mrf.mxu0
  %v2677 = vadd.f32 %v333, %v2676
  %v2678 = vpop.f32.mrf.mxu0
  %2679 = vdwg.mxu0
  %2680 = vmatpush.bf16.msra.mxu0 %v726
  %2681 = vmatpush.bf16.msra.mxu0 %v720
  %2682 = vmatpush.bf16.msra.mxu0 %v714
  %2683 = vmatpush.bf16.msra.mxu0 %v708
  %2684 = vmatpush.bf16.msra.mxu0 %v702
  %2685 = vmatpush.bf16.msra.mxu0 %v696
  %2686 = vmatpush.bf16.msra.mxu0 %v690
  %2687 = vmatpush.bf16.msra.mxu0 %v684
  %2688 = vmatmul.bf16.gmra.mxu0 %v2588
  %v2689 = vpop.f32.mrf.mxu0
  %v2690 = vadd.f32 %v2677, %v2689
  %v2691 = vpop.f32.mrf.mxu0
  %2692 = vdwg.mxu0
  %2693 = vmatpush.bf16.msra.mxu0 %v679
  %2694 = vmatpush.bf16.msra.mxu0 %v673
  %2695 = vmatpush.bf16.msra.mxu0 %v667
  %2696 = vmatpush.bf16.msra.mxu0 %v661
  %2697 = vmatpush.bf16.msra.mxu0 %v655
  %2698 = vmatpush.bf16.msra.mxu0 %v649
  %2699 = vmatpush.bf16.msra.mxu0 %v643
  %2700 = vmatpush.bf16.msra.mxu0 %v637
  %2701 = vmatmul.bf16.gmra.mxu0 %v2528
  %v2702 = vpop.f32.mrf.mxu0
  %v2703 = vadd.f32 %v334, %v2702
  %v2704 = vpop.f32.mrf.mxu0
  %2705 = vdwg.mxu0
  %2706 = vmatpush.bf16.msra.mxu0 %v727
  %2707 = vmatpush.bf16.msra.mxu0 %v721
  %2708 = vmatpush.bf16.msra.mxu0 %v715
  %2709 = vmatpush.bf16.msra.mxu0 %v709
  %2710 = vmatpush.bf16.msra.mxu0 %v703
  %2711 = vmatpush.bf16.msra.mxu0 %v697
  %2712 = vmatpush.bf16.msra.mxu0 %v691
  %2713 = vmatpush.bf16.msra.mxu0 %v685
  %2714 = vmatmul.bf16.gmra.mxu0 %v2588
  %v2715 = vpop.f32.mrf.mxu0
  %v2716 = vadd.f32 %v2703, %v2715
  %v2717 = vpop.f32.mrf.mxu0
  %2718 = vdwg.mxu0
  %2719 = vmatpush.bf16.msra.mxu0 %v680
  %2720 = vmatpush.bf16.msra.mxu0 %v674
  %2721 = vmatpush.bf16.msra.mxu0 %v668
  %2722 = vmatpush.bf16.msra.mxu0 %v662
  %2723 = vmatpush.bf16.msra.mxu0 %v656
  %2724 = vmatpush.bf16.msra.mxu0 %v650
  %2725 = vmatpush.bf16.msra.mxu0 %v644
  %2726 = vmatpush.bf16.msra.mxu0 %v638
  %2727 = vmatmul.bf16.gmra.mxu0 %v2528
  %v2728 = vpop.f32.mrf.mxu0
  %v2729 = vadd.f32 %v335, %v2728
  %v2730 = vpop.f32.mrf.mxu0
  %2731 = vdwg.mxu0
  %2732 = vmatpush.bf16.msra.mxu0 %v728
  %2733 = vmatpush.bf16.msra.mxu0 %v722
  %2734 = vmatpush.bf16.msra.mxu0 %v716
  %2735 = vmatpush.bf16.msra.mxu0 %v710
  %2736 = vmatpush.bf16.msra.mxu0 %v704
  %2737 = vmatpush.bf16.msra.mxu0 %v698
  %2738 = vmatpush.bf16.msra.mxu0 %v692
  %2739 = vmatpush.bf16.msra.mxu0 %v686
  %2740 = vmatmul.bf16.gmra.mxu0 %v2588
  %v2741 = vpop.f32.mrf.mxu0
  %v2742 = vadd.f32 %v2729, %v2741
  %v2743 = vpop.f32.mrf.mxu0
  %2744 = vdwg.mxu0
  %v2745 = vadd.f32 %v2585, %v2612
  %v2746 = vmul.f32 %v2745, 0.5
  %v2747 = vtanh.pop %v2746
  %v2748 = vmul.f32 %v2747, 0.5
  %v2749 = vadd.f32 %v2748, 0.5
  %v2750 = vadd.f32 %v2586, %v2638
  %v2751 = vmul.f32 %v2750, 0.5
  %v2752 = vtanh.pop %v2751
  %v2753 = vmul.f32 %v2752, 0.5
  %v2754 = vadd.f32 %v2753, 0.5
  %v2755 = vmul.f32 %v2749, %v2664
  %v2756 = vadd.f32 %v2587, %v2755
  %v2757 = vtanh.pop %v2756
  %v2758 = vsub.f32 1.0, %v2754
  %v2759 = vsub.f32 %v2757, %v2527
  %v2760 = vmul.f32 %v2758, %v2759
  %v2761 = vadd.f32 %v2527, %v2760
  %v2762 = vpack.c.bf16 %v2761, %v2761
  %2763 = vmatpush.bf16.msra.mxu0 %v1099
  %2764 = vmatpush.bf16.msra.mxu0 %v1096
  %2765 = vmatpush.bf16.msra.mxu0 %v1093
  %2766 = vmatpush.bf16.msra.mxu0 %v1090
  %2767 = vmatpush.bf16.msra.mxu0 %v1087
  %2768 = vmatpush.bf16.msra.mxu0 %v1084
  %2769 = vmatpush.bf16.msra.mxu0 %v1081
  %2770 = vmatpush.bf16.msra.mxu0 %v1078
  %2771 = vmatmul.bf16.gmra.mxu0 %v2762
  %v2772 = vpop.f32.mrf.mxu0
  %v2773 = vadd.f32 %v336, %v2772
  %v2774 = vpop.f32.mrf.mxu0
  %2775 = vdwg.mxu0
  %2776 = vmatpush.bf16.msra.mxu0 %v1100
  %2777 = vmatpush.bf16.msra.mxu0 %v1097
  %2778 = vmatpush.bf16.msra.mxu0 %v1094
  %2779 = vmatpush.bf16.msra.mxu0 %v1091
  %2780 = vmatpush.bf16.msra.mxu0 %v1088
  %2781 = vmatpush.bf16.msra.mxu0 %v1085
  %2782 = vmatpush.bf16.msra.mxu0 %v1082
  %2783 = vmatpush.bf16.msra.mxu0 %v1079
  %2784 = vmatmul.bf16.gmra.mxu0 %v2762
  %v2785 = vpop.f32.mrf.mxu0
  %v2786 = vadd.f32 %v337, %v2785
  %v2787 = vpop.f32.mrf.mxu0
  %2788 = vdwg.mxu0
  %2789 = vmatpush.bf16.msra.mxu0 %v1101
  %2790 = vmatpush.bf16.msra.mxu0 %v1098
  %2791 = vmatpush.bf16.msra.mxu0 %v1095
  %2792 = vmatpush.bf16.msra.mxu0 %v1092
  %2793 = vmatpush.bf16.msra.mxu0 %v1089
  %2794 = vmatpush.bf16.msra.mxu0 %v1086
  %2795 = vmatpush.bf16.msra.mxu0 %v1083
  %2796 = vmatpush.bf16.msra.mxu0 %v1080
  %2797 = vmatmul.bf16.gmra.mxu0 %v2762
  %v2798 = vpop.f32.mrf.mxu0
  %v2799 = vadd.f32 %v338, %v2798
  %v2800 = vpop.f32.mrf.mxu0
  %2801 = vdwg.mxu0
  %v2802 = vadd.f32 %v2773, %v2690
  %v2803 = vmul.f32 %v2802, 0.5
  %v2804 = vtanh.pop %v2803
  %v2805 = vmul.f32 %v2804, 0.5
  %v2806 = vadd.f32 %v2805, 0.5
  %v2807 = vadd.f32 %v2786, %v2716
  %v2808 = vmul.f32 %v2807, 0.5
  %v2809 = vtanh.pop %v2808
  %v2810 = vmul.f32 %v2809, 0.5
  %v2811 = vadd.f32 %v2810, 0.5
  %v2812 = vmul.f32 %v2806, %v2742
  %v2813 = vadd.f32 %v2799, %v2812
  %v2814 = vtanh.pop %v2813
  %v2815 = vsub.f32 1.0, %v2811
  %v2816 = vsub.f32 %v2814, %v2584
  %v2817 = vmul.f32 %v2815, %v2816
  %v2818 = vadd.f32 %v2584, %v2817
  %v2819 = vld [vmem:[%s1] sm:$0xf]
  %v2820 = vld [vmem:[%s5] sm:$0xf]
  %v2821 = vld [vmem:[%s5 + $0x4] sm:$0xf]
  %v2824 = vunpack.c.l.b16 %v2820
  %v2825 = vunpack.c.l.b16 %v2821
  %v2826 = vpack.c.b16 %v2825, %v2824
  %v2829 = vsel %vm78, %v2819, 0
  %2831 = vmatpush.bf16.msra.mxu0 0
  %2832 = vmatpush.bf16.msra.mxu0 0
  %2833 = vmatpush.bf16.msra.mxu0 0
  %2834 = vmatpush.bf16.msra.mxu0 0
  %2835 = vmatpush.bf16.msra.mxu0 0
  %2836 = vmatpush.bf16.msra.mxu0 0
  %2837 = vmatpush.bf16.msra.mxu0 0
  %2838 = vmatpush.bf16.msra.mxu0 %v2826
  %2839 = vmatmul.bf16.gmra.mxu0 %v2829
  %v2840 = vpop.f32.mrf.mxu0
  %v2841 = vadd.f32 %v340, %v2840
  %v2842 = vpop.f32.mrf.mxu0
  %2843 = vdwg.mxu0
  %v2844 = vmul.f32 %v2841, 0.01
  %v2845 = vmax.f32 %v2841, %v2844
  %v2846 = vpack.c.bf16 %v2845, %v2845
  %s2847 = scalar_lea.vmem %s5, 8
  %v2848 = vld [vmem:[%s2847] sm:$0xf]
  %v2849 = vld [vmem:[%s2847 + $0x4] sm:$0xf]
  %v2852 = vunpack.c.l.b16 %v2848
  %v2853 = vunpack.c.l.b16 %v2849
  %v2854 = vpack.c.b16 %v2853, %v2852
  %v2857 = vsel %vm78, %v2846, 0
  %2859 = vmatpush.bf16.msra.mxu0 0
  %2860 = vmatpush.bf16.msra.mxu0 0
  %2861 = vmatpush.bf16.msra.mxu0 0
  %2862 = vmatpush.bf16.msra.mxu0 0
  %2863 = vmatpush.bf16.msra.mxu0 0
  %2864 = vmatpush.bf16.msra.mxu0 0
  %2865 = vmatpush.bf16.msra.mxu0 0
  %2866 = vmatpush.bf16.msra.mxu0 %v2854
  %2867 = vmatmul.bf16.gmra.mxu0 %v2857
  %v2868 = vpop.f32.mrf.mxu0
  %v2869 = vadd.f32 %v2845, %v2868
  %v2870 = vpop.f32.mrf.mxu0
  %2871 = vdwg.mxu0
  %2873 = vrot.lane.b32.xlu0 %v340, 112
  %v2874 = vpop.permute.xlu0 %2873
  %v2876 = vadd.f32 %v2869, %v2874
  %v2877 = vmul.f32 %v2876, 0.01
  %v2878 = vmax.f32 %v2876, %v2877
  %v2879 = vpack.c.bf16 %v2878, %v2878
  %s2880 = scalar_lea.vmem %s5, 16
  %v2881 = vld [vmem:[%s2880] sm:$0xf]
  %v2882 = vld [vmem:[%s2880 + $0x4] sm:$0xf]
  %v2885 = vunpack.c.l.b16 %v2881
  %v2886 = vunpack.c.l.b16 %v2882
  %v2887 = vpack.c.b16 %v2886, %v2885
  %v2890 = vsel %vm78, %v2879, 0
  %2892 = vmatpush.bf16.msra.mxu0 0
  %2893 = vmatpush.bf16.msra.mxu0 0
  %2894 = vmatpush.bf16.msra.mxu0 0
  %2895 = vmatpush.bf16.msra.mxu0 0
  %2896 = vmatpush.bf16.msra.mxu0 0
  %2897 = vmatpush.bf16.msra.mxu0 0
  %2898 = vmatpush.bf16.msra.mxu0 0
  %2899 = vmatpush.bf16.msra.mxu0 %v2887
  %2900 = vmatmul.bf16.gmra.mxu0 %v2890
  %v2901 = vpop.f32.mrf.mxu0
  %v2902 = vadd.f32 %v2878, %v2901
  %v2903 = vpop.f32.mrf.mxu0
  %2904 = vdwg.mxu0
  %2905 = vrot.lane.b32.xlu0 %v340, 96
  %v2906 = vpop.permute.xlu0 %2905
  %v2908 = vadd.f32 %v2902, %v2906
  %v2909 = vmul.f32 %v2908, 0.01
  %v2910 = vmax.f32 %v2908, %v2909
  %v2911 = vpack.c.bf16 %v2818, %v2818
  %v2912 = vld [vmem:[%s6] sm:$0xf]
  %v2913 = vld [vmem:[%s6 + $0x4] sm:$0xf]
  %v2914 = vld [vmem:[%s6 + $0x8] sm:$0xf]
  %v2915 = vld [vmem:[%s6 + $0xc] sm:$0xf]
  %v2916 = vld [vmem:[%s6 + $0x10] sm:$0xf]
  %v2917 = vld [vmem:[%s6 + $0x14] sm:$0xf]
  %v2918 = vld [vmem:[%s6 + $0x18] sm:$0xf]
  %v2919 = vld [vmem:[%s6 + $0x1c] sm:$0xf]
  %v2920 = vld [vmem:[%s6 + $0x20] sm:$0xf]
  %v2921 = vld [vmem:[%s6 + $0x24] sm:$0xf]
  %v2922 = vld [vmem:[%s6 + $0x28] sm:$0xf]
  %v2923 = vld [vmem:[%s6 + $0x2c] sm:$0xf]
  %v2924 = vld [vmem:[%s6 + $0x30] sm:$0xf]
  %v2925 = vld [vmem:[%s6 + $0x34] sm:$0xf]
  %v2926 = vld [vmem:[%s6 + $0x38] sm:$0xf]
  %v2927 = vld [vmem:[%s6 + $0x3c] sm:$0xf]
  %v2928 = vpack.c.bf16 %v2910, %v2910
  %v2929 = vld [vmem:[%s6 + $0x40] sm:$0xf]
  %v2930 = vld [vmem:[%s6 + $0x44] sm:$0xf]
  %v2933 = vunpack.c.l.b16 %v2929
  %v2934 = vunpack.c.l.b16 %v2930
  %v2935 = vpack.c.b16 %v2934, %v2933
  %v2938 = vsel %vm78, %v2928, 0
  %2940 = vmatpush.bf16.msra.mxu0 0
  %2941 = vmatpush.bf16.msra.mxu0 0
  %2942 = vmatpush.bf16.msra.mxu0 0
  %2943 = vmatpush.bf16.msra.mxu0 0
  %2944 = vmatpush.bf16.msra.mxu0 0
  %2945 = vmatpush.bf16.msra.mxu0 0
  %2946 = vmatpush.bf16.msra.mxu0 0
  %2947 = vmatpush.bf16.msra.mxu0 %v2935
  %2948 = vmatmul.bf16.gmra.mxu0 %v2938
  %v2949 = vpop.f32.mrf.mxu0
  %v2950 = vadd.f32 0.0, %v2949
  %v2951 = vpop.f32.mrf.mxu0
  %2952 = vdwg.mxu0
  %v2969 = vunpack.c.l.b16 %v2912
  %v2970 = vunpack.c.l.b16 %v2913
  %v2971 = vunpack.c.l.b16 %v2914
  %v2972 = vunpack.c.l.b16 %v2915
  %v2973 = vunpack.c.l.b16 %v2916
  %v2974 = vunpack.c.l.b16 %v2917
  %v2975 = vunpack.c.l.b16 %v2918
  %v2976 = vunpack.c.l.b16 %v2919
  %v2977 = vunpack.c.l.b16 %v2920
  %v2978 = vunpack.c.l.b16 %v2921
  %v2979 = vunpack.c.l.b16 %v2922
  %v2980 = vunpack.c.l.b16 %v2923
  %v2981 = vunpack.c.l.b16 %v2924
  %v2982 = vunpack.c.l.b16 %v2925
  %v2983 = vunpack.c.l.b16 %v2926
  %v2984 = vunpack.c.l.b16 %v2927
  %v2985 = vpack.c.b16 %v2970, %v2969
  %v2986 = vpack.c.b16 %v2972, %v2971
  %v2987 = vpack.c.b16 %v2974, %v2973
  %v2988 = vpack.c.b16 %v2976, %v2975
  %v2989 = vpack.c.b16 %v2978, %v2977
  %v2990 = vpack.c.b16 %v2980, %v2979
  %v2991 = vpack.c.b16 %v2982, %v2981
  %v2992 = vpack.c.b16 %v2984, %v2983
  %3001 = vmatpush.bf16.msra.mxu0 %v2992
  %3002 = vmatpush.bf16.msra.mxu0 %v2991
  %3003 = vmatpush.bf16.msra.mxu0 %v2990
  %3004 = vmatpush.bf16.msra.mxu0 %v2989
  %3005 = vmatpush.bf16.msra.mxu0 %v2988
  %3006 = vmatpush.bf16.msra.mxu0 %v2987
  %3007 = vmatpush.bf16.msra.mxu0 %v2986
  %3008 = vmatpush.bf16.msra.mxu0 %v2985
  %3009 = vmatmul.bf16.gmra.mxu0 %v2911
  %v3010 = vpop.f32.mrf.mxu0
  %v3011 = vadd.f32 %v2950, %v3010
  %v3012 = vpop.f32.mrf.mxu0
  %3013 = vdwg.mxu0
  %v3014 = vadd.f32 %v3011, %v339
  %3015 = vst [vmem:[%s8] sm:$0xff] %v3014
  // Predicated region
  $region34: #{gru_dnn_forward.1} parent=0 // pred_check
    _
  $region35: #{gru_dnn_forward.1} parent=0 // pred_check_branch
    %3017 = sbr.rel (0) target = $region37
  $region36: #{gru_dnn_forward.1} parent=0 // pred_region
    _
  $region37: #{gru_dnn_forward.1} parent=0 // pred_fallthru
    _
  // Predicated region
  $region38: #{gru_dnn_forward.1} parent=0 // pred_check
    _
  $region39: #{gru_dnn_forward.1} parent=0 // pred_check_branch
    %3019 = sbr.rel (0) target = $region41
  $region40: #{gru_dnn_forward.1} parent=0 // pred_region
    _
  $region41: #{gru_dnn_forward.1} parent=0 // pred_fallthru
    _

</llo_original>
